<compile_context>
chip_gen: v7x
topology: tpu7x:2x2x1
jax: 0.10.0
libtpu: 0.0.40
codegen_flags: <defaults>
</compile_context>

<pallas_src>
import functools

import jax
import jax.numpy as jnp
from jax.experimental import pallas as pl
from jax.experimental.pallas import tpu as pltpu

EPS = 1e-5                  # PyTorch LayerNorm default eps
MXU_DTYPE = jnp.bfloat16    # dtype fed to the MXU; accumulation stays f32

PARAM_ORDER = (
    "ln1_g", "ln1_b",
    "wqkv", "bqkv",          # fused q/k/v projection (scale folded into q part)
    "wo", "bo",              # out-projection, stored (H*dh, D)
    "ln2_g", "ln2_b",
    "w1", "b1", "w2", "b2",
)


def _layer_norm(x, gamma, beta):
    """Row-wise LayerNorm in f32; gamma/beta are (1, D)."""
    mu = jnp.mean(x, axis=-1, keepdims=True)
    var = jnp.mean(jnp.square(x - mu), axis=-1, keepdims=True)
    return (x - mu) * jax.lax.rsqrt(var + EPS) * gamma + beta


def _split_heads(x2d, n_heads, head_dim):
    """(rows, H*dh) -> (H, rows, dh) via static lane slices + leading-dim stack
    (avoids an in-kernel (1, 0, 2) transpose)."""
    return jnp.stack(
        [x2d[:, h * head_dim:(h + 1) * head_dim] for h in range(n_heads)],
        axis=0)


def transformer_block_kernel(x_ref,
                             ln1_g_ref, ln1_b_ref,
                             wqkv_ref, bqkv_ref,
                             wo_ref, bo_ref,
                             ln2_g_ref, ln2_b_ref,
                             w1_ref, b1_ref, w2_ref, b2_ref,
                             o_ref,
                             xn1_scr, k_scr, v_scr,
                             *, n_heads, head_dim, tile_n):
    t = pl.program_id(1)
    row_start = t * tile_n
    if tile_n % 8 == 0:
        row_start = pl.multiple_of(row_start, 8)
    d_attn = n_heads * head_dim

    # ---- once per batch row (t == 0): full-row LN1 and the K/V projection ----
    # Scratch persists across grid steps; the seq-tile axis is "arbitrary" and
    # iterates fastest, so these values are valid for every tile of this row.
    @pl.when(t == 0)
    def _():
        x_full = x_ref[0].astype(jnp.float32)                          # (N, D)
        xn_full = _layer_norm(x_full, ln1_g_ref[...], ln1_b_ref[...])
        xn_bf = xn_full.astype(MXU_DTYPE)
        xn1_scr[...] = xn_bf
        kv = jnp.dot(xn_bf, wqkv_ref[:, d_attn:],                      # (N, 2*Da)
                     preferred_element_type=jnp.float32) + bqkv_ref[:, d_attn:]
        kv_bf = kv.astype(MXU_DTYPE)
        k_scr[...] = _split_heads(kv_bf[:, :d_attn], n_heads, head_dim)  # (H,N,dh)
        v_scr[...] = _split_heads(kv_bf[:, d_attn:], n_heads, head_dim)  # (H,N,dh)

    # ---- per seq tile: Q, attention, out-proj, residual, LN2, MLP, residual --
    x_tile = x_ref[0, pl.ds(row_start, tile_n), :].astype(jnp.float32)   # (T, D)
    xn_tile = xn1_scr[pl.ds(row_start, tile_n), :]                       # (T, D) bf16

    # Q projection; the 1/sqrt(head_dim) scale is pre-folded into wq / bq.
    q = jnp.dot(xn_tile, wqkv_ref[:, :d_attn],
                preferred_element_type=jnp.float32) + bqkv_ref[:, :d_attn]
    q3 = _split_heads(q.astype(MXU_DTYPE), n_heads, head_dim)            # (H, T, dh)
    k3 = k_scr[...]                                                      # (H, N, dh)
    v3 = v_scr[...]                                                      # (H, N, dh)

    # Head-batched attention (leading batch dim -> batched MXU matmuls).
    s = jnp.einsum("hqd,hkd->hqk", q3, k3,
                   preferred_element_type=jnp.float32)                   # (H, T, N)
    s = s - jnp.max(s, axis=-1, keepdims=True)
    p = jnp.exp(s)
    p = p * pl.reciprocal(jnp.sum(p, axis=-1, keepdims=True), approx=True)
    ctx = jnp.einsum("hqk,hkd->hqd", p.astype(MXU_DTYPE), v3,
                     preferred_element_type=jnp.float32)                 # (H, T, dh)

    # Head-concat output projection: one K = H*dh matmul (full MXU depth).
    ctx_cat = jnp.concatenate([ctx[h] for h in range(n_heads)], axis=-1)  # (T, Da)
    attn = jnp.dot(ctx_cat.astype(MXU_DTYPE), wo_ref[...],
                   preferred_element_type=jnp.float32) + bo_ref[...]
    # Dropout on the attention output: identity at inference.
    y = attn + x_tile

    # ---- sublayer 2: LayerNorm -> MLP (Linear, GELU, Linear) -> residual ----
    yn = _layer_norm(y, ln2_g_ref[...], ln2_b_ref[...])
    h1 = jnp.dot(yn.astype(MXU_DTYPE), w1_ref[...],
                 preferred_element_type=jnp.float32) + b1_ref[...]
    # TODO(synk): PyTorch nn.GELU() default is exact erf-GELU; tanh approx here.
    h1 = jax.nn.gelu(h1, approximate=True)
    h2 = jnp.dot(h1.astype(MXU_DTYPE), w2_ref[...],
                 preferred_element_type=jnp.float32) + b2_ref[...]
    # MLP dropouts: identity at inference.
    o_ref[0] = (h2 + y).astype(o_ref.dtype)


def _const_index_spec(shape):
    """Full-array block with a constant block index (fetched once, resident)."""
    n = len(shape)
    return pl.BlockSpec(shape, lambda *_, _n=n: (0,) * _n)


def _pick_seq_tile(n, target):
    """Largest multiple-of-8 divisor of n that is <= target; else the full n."""
    if n <= target:
        return n
    t = (target // 8) * 8
    while t >= 8:
        if n % t == 0:
            return t
        t -= 8
    return n


def _vmem_budget():
    """Generation-aware (vmem_limit_bytes, seq_tile_target)."""
    try:
        cap = int(pltpu.get_tpu_info().vmem_capacity_bytes)
    except Exception:
        cap = 64 * 1024 * 1024
    if cap >= 96 * 1024 * 1024:        # v5e / v6e: 128 MiB physical VMEM
        return 96 * 1024 * 1024, 512
    return 48 * 1024 * 1024, 256       # v7x: 64 MiB physical VMEM


def transformer_block_apply(x, params, *, n_heads, head_dim, seq_tile=None):
    B, N, D = x.shape
    vmem_limit, tile_target = _vmem_budget()
    tile_n = seq_tile if seq_tile is not None else _pick_seq_tile(N, tile_target)
    assert N % tile_n == 0
    num_tiles = N // tile_n

    kernel = functools.partial(transformer_block_kernel,
                               n_heads=n_heads, head_dim=head_dim, tile_n=tile_n)
    param_list = [params[name] for name in PARAM_ORDER]

    # x: one full sequence row per batch index; constant block index across the
    # seq-tile axis so it is DMA'd only once per row.
    in_specs = [pl.BlockSpec((1, N, D), lambda b, t: (b, 0, 0))]
    # Weights/biases: whole array, constant index -> fetched once and resident.
    in_specs += [_const_index_spec(p.shape) for p in param_list]

    out_specs = pl.BlockSpec((1, tile_n, D), lambda b, t: (b, t, 0))

    return pl.pallas_call(
        kernel,
        out_shape=jax.ShapeDtypeStruct((B, N, D), x.dtype),
        grid_spec=pltpu.PrefetchScalarGridSpec(
            num_scalar_prefetch=0,
            grid=(B, num_tiles),
            in_specs=in_specs,
            out_specs=out_specs,
            scratch_shapes=[
                pltpu.VMEM((N, D), MXU_DTYPE),                   # LN1(x) full row
                pltpu.VMEM((n_heads, N, head_dim), MXU_DTYPE),   # K (head-split)
                pltpu.VMEM((n_heads, N, head_dim), MXU_DTYPE),   # V (head-split)
            ],
        ),
        compiler_params=pltpu.CompilerParams(
            # batch "parallel" (megacore splits rows); seq-tile "arbitrary" so
            # the per-row K/V scratch is never split across cores.
            dimension_semantics=("parallel", "arbitrary"),
            vmem_limit_bytes=vmem_limit,
        ),
    )(x, *param_list)


def init_block_params(key, token_dim, head_dim, n_heads, mlp_hidden):
    """Deterministic synthetic parameters (PyTorch-like uniform Linear init)."""
    d_attn = head_dim * n_heads
    keys = jax.random.split(key, 6)

    def linear(k, fan_in, fan_out):
        bound = 1.0 / (fan_in ** 0.5)
        kw, kb = jax.random.split(k)
        w = jax.random.uniform(kw, (fan_in, fan_out), jnp.float32, -bound, bound)
        b = jax.random.uniform(kb, (1, fan_out), jnp.float32, -bound, bound)
        return w, b

    wq, bq = linear(keys[0], token_dim, d_attn)
    wk, bk = linear(keys[1], token_dim, d_attn)
    wv, bv = linear(keys[2], token_dim, d_attn)
    wo, bo = linear(keys[3], d_attn, token_dim)
    w1, b1 = linear(keys[4], token_dim, mlp_hidden)
    w2, b2 = linear(keys[5], mlp_hidden, token_dim)

    # Fold the 1/sqrt(head_dim) attention scale into the q projection so the
    # kernel never scales the (H, T, N) scores.
    scale = 1.0 / (head_dim ** 0.5)
    wq = wq * scale
    bq = bq * scale

    # Fused qkv projection: one weight buffer / DMA inside the kernel.
    wqkv = jnp.concatenate([wq, wk, wv], axis=1)              # (D, 3*Da)
    bqkv = jnp.concatenate([bq, bk, bv], axis=1)              # (1, 3*Da)

    return {
        "ln1_g": jnp.ones((1, token_dim), jnp.float32),
        "ln1_b": jnp.zeros((1, token_dim), jnp.float32),
        "wqkv": wqkv.astype(MXU_DTYPE), "bqkv": bqkv,
        "wo": wo.astype(MXU_DTYPE), "bo": bo,                 # (Da, D) / (1, D)
        "ln2_g": jnp.ones((1, token_dim), jnp.float32),
        "ln2_b": jnp.zeros((1, token_dim), jnp.float32),
        "w1": w1.astype(MXU_DTYPE), "b1": b1,
        "w2": w2.astype(MXU_DTYPE), "b2": b2,
    }


def transformer_apply(x, all_params, *, n_heads, head_dim):
    """Sequentially apply every transformer block (the `Transformer.forward`)."""
    # TODO(synk): bf16 activations at the layer boundary would halve the
    # inter-layer HBM traffic (keep LN/softmax stats f32 as in-kernel now).
    out = x
    for params in all_params:
        out = transformer_block_apply(out, params,
                                      n_heads=n_heads, head_dim=head_dim)
    return out


if __name__ == "__main__":
    # Small ViT-ish configuration.
    n_layers = 2
    batch = 2
    seq = 8
    token_dim = 32
    head_dim = 8
    n_heads = 4
    mlp_hidden = 64
    dropout_p = 0.0  # identity at inference

    root = jax.random.PRNGKey(0)
    x_key, *layer_keys = jax.random.split(root, n_layers + 1)

    x = jax.random.normal(x_key, (batch, seq, token_dim), dtype=jnp.float32)
    all_params = [
        init_block_params(layer_keys[i], token_dim, head_dim, n_heads, mlp_hidden)
        for i in range(n_layers)
    ]

    fwd = jax.jit(functools.partial(transformer_apply,
                                    n_heads=n_heads, head_dim=head_dim))
    out = jax.block_until_ready(fwd(x, all_params))

    assert out.shape == (batch, seq, token_dim)
    assert bool(jnp.all(jnp.isfinite(out)))
    print("KERNEL_OK")
</pallas_src>

<mosaic_0001>
module attributes {stable_mosaic.version = 11 : i64} {
  func.func @transformer_block_kernel(%arg0: i32, %arg1: i32, %arg2: memref<1x8x32xf32, #tpu.memory_space<vmem>>, %arg3: memref<1x32xf32, #tpu.memory_space<vmem>>, %arg4: memref<1x32xf32, #tpu.memory_space<vmem>>, %arg5: memref<32x96xbf16, #tpu.memory_space<vmem>>, %arg6: memref<1x96xf32, #tpu.memory_space<vmem>>, %arg7: memref<32x32xbf16, #tpu.memory_space<vmem>>, %arg8: memref<1x32xf32, #tpu.memory_space<vmem>>, %arg9: memref<1x32xf32, #tpu.memory_space<vmem>>, %arg10: memref<1x32xf32, #tpu.memory_space<vmem>>, %arg11: memref<32x64xbf16, #tpu.memory_space<vmem>>, %arg12: memref<1x64xf32, #tpu.memory_space<vmem>>, %arg13: memref<64x32xbf16, #tpu.memory_space<vmem>>, %arg14: memref<1x32xf32, #tpu.memory_space<vmem>>, %arg15: memref<1x8x32xf32, #tpu.memory_space<vmem>>, %arg16: memref<8x32xbf16, #tpu.memory_space<vmem>>, %arg17: memref<4x8x8xbf16, #tpu.memory_space<vmem>>, %arg18: memref<4x8x8xbf16, #tpu.memory_space<vmem>>) attributes {dimension_semantics = [#tpu.dimension_semantics<parallel>, #tpu.dimension_semantics<arbitrary>], iteration_bounds = array<i64: 2, 1>, scalar_prefetch = 0 : i64, scratch_operands = 3 : i64, tpu.core_type = #tpu.core_type<tc>, window_params = [{transform_indices = @transform_0, window_bounds = array<i64: 1, 8, 32>}, {pipeline_mode = #tpu.pipeline_mode<synchronous>, transform_indices = @transform_1, window_bounds = array<i64: 1, 32>}, {pipeline_mode = #tpu.pipeline_mode<synchronous>, transform_indices = @transform_2, window_bounds = array<i64: 1, 32>}, {pipeline_mode = #tpu.pipeline_mode<synchronous>, transform_indices = @transform_3, window_bounds = array<i64: 32, 96>}, {pipeline_mode = #tpu.pipeline_mode<synchronous>, transform_indices = @transform_4, window_bounds = array<i64: 1, 96>}, {pipeline_mode = #tpu.pipeline_mode<synchronous>, transform_indices = @transform_5, window_bounds = array<i64: 32, 32>}, {pipeline_mode = #tpu.pipeline_mode<synchronous>, transform_indices = @transform_6, window_bounds = array<i64: 1, 32>}, {pipeline_mode = #tpu.pipeline_mode<synchronous>, transform_indices = @transform_7, window_bounds = array<i64: 1, 32>}, {pipeline_mode = #tpu.pipeline_mode<synchronous>, transform_indices = @transform_8, window_bounds = array<i64: 1, 32>}, {pipeline_mode = #tpu.pipeline_mode<synchronous>, transform_indices = @transform_9, window_bounds = array<i64: 32, 64>}, {pipeline_mode = #tpu.pipeline_mode<synchronous>, transform_indices = @transform_10, window_bounds = array<i64: 1, 64>}, {pipeline_mode = #tpu.pipeline_mode<synchronous>, transform_indices = @transform_11, window_bounds = array<i64: 64, 32>}, {pipeline_mode = #tpu.pipeline_mode<synchronous>, transform_indices = @transform_12, window_bounds = array<i64: 1, 32>}, {transform_indices = @transform_13, window_bounds = array<i64: 1, 8, 32>}]} {
    %c8_i32 = arith.constant 8 : i32
    %0 = arith.muli %arg1, %c8_i32 : i32
    %1 = tpu.assume_multiple %0, 8 : i32
    %c0_i32 = arith.constant 0 : i32
    %2 = arith.cmpi eq, %arg1, %c0_i32 : i32
    %3 = arith.extui %2 : i1 to i32
    %c0_i32_0 = arith.constant 0 : i32
    %4 = arith.cmpi ne, %3, %c0_i32_0 : i32
    scf.if %4 {
      %c0_48 = arith.constant 0 : index
      %c0_49 = arith.constant 0 : index
      %c0_50 = arith.constant 0 : index
      %109 = vector.load %arg2[%c0_48, %c0_49, %c0_50] : memref<1x8x32xf32, #tpu.memory_space<vmem>>, vector<1x8x32xf32>
      %110 = vector.shape_cast %109 : vector<1x8x32xf32> to vector<8x32xf32>
      %c0_51 = arith.constant 0 : index
      %c0_52 = arith.constant 0 : index
      %111 = vector.load %arg3[%c0_51, %c0_52] : memref<1x32xf32, #tpu.memory_space<vmem>>, vector<1x32xf32>
      %c0_53 = arith.constant 0 : index
      %c0_54 = arith.constant 0 : index
      %112 = vector.load %arg4[%c0_53, %c0_54] : memref<1x32xf32, #tpu.memory_space<vmem>>, vector<1x32xf32>
      %cst_55 = arith.constant dense<0.000000e+00> : vector<8xf32>
      %113 = vector.multi_reduction <add>, %110, %cst_55 [1] : vector<8x32xf32> to vector<8xf32>
      %114 = vector.shape_cast %113 : vector<8xf32> to vector<8x1xf32>
      %cst_56 = arith.constant 3.200000e+01 : f32
      %115 = vector.broadcast %cst_56 : f32 to vector<8x1xf32>
      %116 = arith.divf %114, %115 : vector<8x1xf32>
      %117 = vector.broadcast %116 : vector<8x1xf32> to vector<8x32xf32>
      %118 = arith.subf %110, %117 : vector<8x32xf32>
      %119 = arith.mulf %118, %118 : vector<8x32xf32>
      %cst_57 = arith.constant dense<0.000000e+00> : vector<8xf32>
      %120 = vector.multi_reduction <add>, %119, %cst_57 [1] : vector<8x32xf32> to vector<8xf32>
      %121 = vector.shape_cast %120 : vector<8xf32> to vector<8x1xf32>
      %cst_58 = arith.constant 3.200000e+01 : f32
      %122 = vector.broadcast %cst_58 : f32 to vector<8x1xf32>
      %123 = arith.divf %121, %122 : vector<8x1xf32>
      %124 = vector.broadcast %116 : vector<8x1xf32> to vector<8x32xf32>
      %125 = arith.subf %110, %124 : vector<8x32xf32>
      %cst_59 = arith.constant 9.99999974E-6 : f32
      %126 = vector.broadcast %cst_59 : f32 to vector<8x1xf32>
      %127 = arith.addf %123, %126 : vector<8x1xf32>
      %128 = math.rsqrt %127 : vector<8x1xf32>
      %129 = vector.broadcast %128 : vector<8x1xf32> to vector<8x32xf32>
      %130 = arith.mulf %125, %129 : vector<8x32xf32>
      %131 = vector.broadcast %111 : vector<1x32xf32> to vector<8x32xf32>
      %132 = arith.mulf %130, %131 : vector<8x32xf32>
      %133 = vector.broadcast %112 : vector<1x32xf32> to vector<8x32xf32>
      %134 = arith.addf %132, %133 : vector<8x32xf32>
      %135 = arith.truncf %134 : vector<8x32xf32> to vector<8x32xbf16>
      %c0_60 = arith.constant 0 : index
      %c0_61 = arith.constant 0 : index
      %136 = vector.load %arg16[%c0_60, %c0_61] : memref<8x32xbf16, #tpu.memory_space<vmem>>, vector<8x32xbf16>
      tpu.vector_store %arg16[%c0_60, %c0_61], %135 {strides = array<i32>} : memref<8x32xbf16, #tpu.memory_space<vmem>>, vector<8x32xbf16>,
      %c0_62 = arith.constant 0 : index
      %c32 = arith.constant 32 : index
      %137 = vector.load %arg5[%c0_62, %c32] : memref<32x96xbf16, #tpu.memory_space<vmem>>, vector<32x64xbf16>
      %cst_63 = arith.constant dense<0.000000e+00> : vector<8x64xf32>
      %138 = tpu.matmul %135, %137, %cst_63 {dimension_numbers = #tpu.dot_dimension_numbers<[1], [0], [0], [1], [0, 0, 1, 1], [], []>} : vector<8x32xbf16>, vector<32x64xbf16>, vector<8x64xf32> -> vector<8x64xf32>
      %c0_64 = arith.constant 0 : index
      %c32_65 = arith.constant 32 : index
      %139 = vector.load %arg6[%c0_64, %c32_65] : memref<1x96xf32, #tpu.memory_space<vmem>>, vector<1x64xf32>
      %140 = vector.broadcast %139 : vector<1x64xf32> to vector<8x64xf32>
      %141 = arith.addf %138, %140 : vector<8x64xf32>
      %142 = arith.truncf %141 : vector<8x64xf32> to vector<8x64xbf16>
      %143 = vector.extract_strided_slice %142 {offsets = [0, 0], sizes = [8, 32], strides = [1, 1]} : vector<8x64xbf16> to vector<8x32xbf16>
      %144 = vector.extract_strided_slice %143 {offsets = [0, 0], sizes = [8, 8], strides = [1, 1]} : vector<8x32xbf16> to vector<8x8xbf16>
      %145 = vector.extract_strided_slice %143 {offsets = [0, 8], sizes = [8, 8], strides = [1, 1]} : vector<8x32xbf16> to vector<8x8xbf16>
      %146 = vector.extract_strided_slice %143 {offsets = [0, 16], sizes = [8, 8], strides = [1, 1]} : vector<8x32xbf16> to vector<8x8xbf16>
      %147 = vector.extract_strided_slice %143 {offsets = [0, 24], sizes = [8, 8], strides = [1, 1]} : vector<8x32xbf16> to vector<8x8xbf16>
      %148 = vector.shape_cast %144 : vector<8x8xbf16> to vector<1x8x8xbf16>
      %149 = vector.shape_cast %145 : vector<8x8xbf16> to vector<1x8x8xbf16>
      %150 = vector.shape_cast %146 : vector<8x8xbf16> to vector<1x8x8xbf16>
      %151 = vector.shape_cast %147 : vector<8x8xbf16> to vector<1x8x8xbf16>
      %152 = tpu.concatenate %148, %149, %150, %151 in 0 : vector<1x8x8xbf16>, vector<1x8x8xbf16>, vector<1x8x8xbf16>, vector<1x8x8xbf16> -> vector<4x8x8xbf16>
      %c0_66 = arith.constant 0 : index
      %c0_67 = arith.constant 0 : index
      %c0_68 = arith.constant 0 : index
      %153 = vector.load %arg17[%c0_66, %c0_67, %c0_68] : memref<4x8x8xbf16, #tpu.memory_space<vmem>>, vector<4x8x8xbf16>
      tpu.vector_store %arg17[%c0_66, %c0_67, %c0_68], %152 {strides = array<i32>} : memref<4x8x8xbf16, #tpu.memory_space<vmem>>, vector<4x8x8xbf16>,
      %154 = vector.extract_strided_slice %142 {offsets = [0, 32], sizes = [8, 32], strides = [1, 1]} : vector<8x64xbf16> to vector<8x32xbf16>
      %155 = vector.extract_strided_slice %154 {offsets = [0, 0], sizes = [8, 8], strides = [1, 1]} : vector<8x32xbf16> to vector<8x8xbf16>
      %156 = vector.extract_strided_slice %154 {offsets = [0, 8], sizes = [8, 8], strides = [1, 1]} : vector<8x32xbf16> to vector<8x8xbf16>
      %157 = vector.extract_strided_slice %154 {offsets = [0, 16], sizes = [8, 8], strides = [1, 1]} : vector<8x32xbf16> to vector<8x8xbf16>
      %158 = vector.extract_strided_slice %154 {offsets = [0, 24], sizes = [8, 8], strides = [1, 1]} : vector<8x32xbf16> to vector<8x8xbf16>
      %159 = vector.shape_cast %155 : vector<8x8xbf16> to vector<1x8x8xbf16>
      %160 = vector.shape_cast %156 : vector<8x8xbf16> to vector<1x8x8xbf16>
      %161 = vector.shape_cast %157 : vector<8x8xbf16> to vector<1x8x8xbf16>
      %162 = vector.shape_cast %158 : vector<8x8xbf16> to vector<1x8x8xbf16>
      %163 = tpu.concatenate %159, %160, %161, %162 in 0 : vector<1x8x8xbf16>, vector<1x8x8xbf16>, vector<1x8x8xbf16>, vector<1x8x8xbf16> -> vector<4x8x8xbf16>
      %c0_69 = arith.constant 0 : index
      %c0_70 = arith.constant 0 : index
      %c0_71 = arith.constant 0 : index
      %164 = vector.load %arg18[%c0_69, %c0_70, %c0_71] : memref<4x8x8xbf16, #tpu.memory_space<vmem>>, vector<4x8x8xbf16>
      tpu.vector_store %arg18[%c0_69, %c0_70, %c0_71], %163 {strides = array<i32>} : memref<4x8x8xbf16, #tpu.memory_space<vmem>>, vector<4x8x8xbf16>,
    } else {
    }
    %c0 = arith.constant 0 : index
    %5 = arith.index_cast %1 : i32 to index
    %c0_1 = arith.constant 0 : index
    %6 = vector.load %arg2[%c0, %5, %c0_1] : memref<1x8x32xf32, #tpu.memory_space<vmem>>, vector<1x8x32xf32>
    %7 = vector.shape_cast %6 : vector<1x8x32xf32> to vector<8x32xf32>
    %8 = arith.index_cast %1 : i32 to index
    %c0_2 = arith.constant 0 : index
    %9 = vector.load %arg16[%8, %c0_2] : memref<8x32xbf16, #tpu.memory_space<vmem>>, vector<8x32xbf16>
    %c0_3 = arith.constant 0 : index
    %c0_4 = arith.constant 0 : index
    %10 = vector.load %arg5[%c0_3, %c0_4] : memref<32x96xbf16, #tpu.memory_space<vmem>>, vector<32x32xbf16>
    %cst = arith.constant dense<0.000000e+00> : vector<8x32xf32>
    %11 = tpu.matmul %9, %10, %cst {dimension_numbers = #tpu.dot_dimension_numbers<[1], [0], [0], [1], [0, 0, 1, 1], [], []>} : vector<8x32xbf16>, vector<32x32xbf16>, vector<8x32xf32> -> vector<8x32xf32>
    %c0_5 = arith.constant 0 : index
    %c0_6 = arith.constant 0 : index
    %12 = vector.load %arg6[%c0_5, %c0_6] : memref<1x96xf32, #tpu.memory_space<vmem>>, vector<1x32xf32>
    %13 = vector.broadcast %12 : vector<1x32xf32> to vector<8x32xf32>
    %14 = arith.addf %11, %13 : vector<8x32xf32>
    %15 = arith.truncf %14 : vector<8x32xf32> to vector<8x32xbf16>
    %16 = vector.extract_strided_slice %15 {offsets = [0, 0], sizes = [8, 8], strides = [1, 1]} : vector<8x32xbf16> to vector<8x8xbf16>
    %17 = vector.extract_strided_slice %15 {offsets = [0, 8], sizes = [8, 8], strides = [1, 1]} : vector<8x32xbf16> to vector<8x8xbf16>
    %18 = vector.extract_strided_slice %15 {offsets = [0, 16], sizes = [8, 8], strides = [1, 1]} : vector<8x32xbf16> to vector<8x8xbf16>
    %19 = vector.extract_strided_slice %15 {offsets = [0, 24], sizes = [8, 8], strides = [1, 1]} : vector<8x32xbf16> to vector<8x8xbf16>
    %20 = vector.shape_cast %16 : vector<8x8xbf16> to vector<1x8x8xbf16>
    %21 = vector.shape_cast %17 : vector<8x8xbf16> to vector<1x8x8xbf16>
    %22 = vector.shape_cast %18 : vector<8x8xbf16> to vector<1x8x8xbf16>
    %23 = vector.shape_cast %19 : vector<8x8xbf16> to vector<1x8x8xbf16>
    %24 = tpu.concatenate %20, %21, %22, %23 in 0 : vector<1x8x8xbf16>, vector<1x8x8xbf16>, vector<1x8x8xbf16>, vector<1x8x8xbf16> -> vector<4x8x8xbf16>
    %c0_7 = arith.constant 0 : index
    %c0_8 = arith.constant 0 : index
    %c0_9 = arith.constant 0 : index
    %25 = vector.load %arg17[%c0_7, %c0_8, %c0_9] : memref<4x8x8xbf16, #tpu.memory_space<vmem>>, vector<4x8x8xbf16>
    %c0_10 = arith.constant 0 : index
    %c0_11 = arith.constant 0 : index
    %c0_12 = arith.constant 0 : index
    %26 = vector.load %arg18[%c0_10, %c0_11, %c0_12] : memref<4x8x8xbf16, #tpu.memory_space<vmem>>, vector<4x8x8xbf16>
    "tpu.trace_start"() <{level = 10 : i32, message = "hqd,hkd->hqk"}> : () -> ()
    %cst_13 = arith.constant dense<0.000000e+00> : vector<4x8x8xf32>
    %27 = tpu.matmul %24, %25, %cst_13 {dimension_numbers = #tpu.dot_dimension_numbers<[2], [2], [1], [1], [0, 0, 0, 1, 1, 1], [0], [0]>} : vector<4x8x8xbf16>, vector<4x8x8xbf16>, vector<4x8x8xf32> -> vector<4x8x8xf32>
    "tpu.trace_stop"() : () -> ()
    %cst_14 = arith.constant dense<0xFF800000> : vector<4x8xf32>
    %28 = vector.multi_reduction <maximumf>, %27, %cst_14 [2] : vector<4x8x8xf32> to vector<4x8xf32>
    %29 = vector.shape_cast %28 : vector<4x8xf32> to vector<4x8x1xf32>
    %30 = vector.broadcast %29 : vector<4x8x1xf32> to vector<4x8x8xf32>
    %31 = arith.subf %27, %30 : vector<4x8x8xf32>
    %32 = math.exp %31 : vector<4x8x8xf32>
    %cst_15 = arith.constant dense<0.000000e+00> : vector<4x8xf32>
    %33 = vector.multi_reduction <add>, %32, %cst_15 [2] : vector<4x8x8xf32> to vector<4x8xf32>
    %34 = vector.shape_cast %33 : vector<4x8xf32> to vector<4x8x1xf32>
    %35 = tpu.reciprocal %34 {approx = true} : vector<4x8x1xf32> -> vector<4x8x1xf32>
    %36 = vector.broadcast %35 : vector<4x8x1xf32> to vector<4x8x8xf32>
    %37 = arith.mulf %32, %36 : vector<4x8x8xf32>
    %38 = arith.truncf %37 : vector<4x8x8xf32> to vector<4x8x8xbf16>
    "tpu.trace_start"() <{level = 10 : i32, message = "hqk,hkd->hqd"}> : () -> ()
    %cst_16 = arith.constant dense<0.000000e+00> : vector<4x8x8xf32>
    %39 = tpu.matmul %38, %26, %cst_16 {dimension_numbers = #tpu.dot_dimension_numbers<[2], [1], [1], [2], [0, 0, 0, 1, 1, 2], [0], [0]>} : vector<4x8x8xbf16>, vector<4x8x8xbf16>, vector<4x8x8xf32> -> vector<4x8x8xf32>
    "tpu.trace_stop"() : () -> ()
    %40 = vector.extract_strided_slice %39 {offsets = [0, 0, 0], sizes = [1, 8, 8], strides = [1, 1, 1]} : vector<4x8x8xf32> to vector<1x8x8xf32>
    %41 = vector.shape_cast %40 : vector<1x8x8xf32> to vector<8x8xf32>
    %42 = vector.extract_strided_slice %39 {offsets = [1, 0, 0], sizes = [1, 8, 8], strides = [1, 1, 1]} : vector<4x8x8xf32> to vector<1x8x8xf32>
    %43 = vector.shape_cast %42 : vector<1x8x8xf32> to vector<8x8xf32>
    %44 = vector.extract_strided_slice %39 {offsets = [2, 0, 0], sizes = [1, 8, 8], strides = [1, 1, 1]} : vector<4x8x8xf32> to vector<1x8x8xf32>
    %45 = vector.shape_cast %44 : vector<1x8x8xf32> to vector<8x8xf32>
    %46 = vector.extract_strided_slice %39 {offsets = [3, 0, 0], sizes = [1, 8, 8], strides = [1, 1, 1]} : vector<4x8x8xf32> to vector<1x8x8xf32>
    %47 = vector.shape_cast %46 : vector<1x8x8xf32> to vector<8x8xf32>
    %48 = tpu.concatenate %41, %43, %45, %47 in 1 : vector<8x8xf32>, vector<8x8xf32>, vector<8x8xf32>, vector<8x8xf32> -> vector<8x32xf32>
    %49 = arith.truncf %48 : vector<8x32xf32> to vector<8x32xbf16>
    %c0_17 = arith.constant 0 : index
    %c0_18 = arith.constant 0 : index
    %50 = vector.load %arg7[%c0_17, %c0_18] : memref<32x32xbf16, #tpu.memory_space<vmem>>, vector<32x32xbf16>
    %cst_19 = arith.constant dense<0.000000e+00> : vector<8x32xf32>
    %51 = tpu.matmul %49, %50, %cst_19 {dimension_numbers = #tpu.dot_dimension_numbers<[1], [0], [0], [1], [0, 0, 1, 1], [], []>} : vector<8x32xbf16>, vector<32x32xbf16>, vector<8x32xf32> -> vector<8x32xf32>
    %c0_20 = arith.constant 0 : index
    %c0_21 = arith.constant 0 : index
    %52 = vector.load %arg8[%c0_20, %c0_21] : memref<1x32xf32, #tpu.memory_space<vmem>>, vector<1x32xf32>
    %53 = vector.broadcast %52 : vector<1x32xf32> to vector<8x32xf32>
    %54 = arith.addf %51, %53 : vector<8x32xf32>
    %55 = arith.addf %54, %7 : vector<8x32xf32>
    %c0_22 = arith.constant 0 : index
    %c0_23 = arith.constant 0 : index
    %56 = vector.load %arg9[%c0_22, %c0_23] : memref<1x32xf32, #tpu.memory_space<vmem>>, vector<1x32xf32>
    %c0_24 = arith.constant 0 : index
    %c0_25 = arith.constant 0 : index
    %57 = vector.load %arg10[%c0_24, %c0_25] : memref<1x32xf32, #tpu.memory_space<vmem>>, vector<1x32xf32>
    %cst_26 = arith.constant dense<0.000000e+00> : vector<8xf32>
    %58 = vector.multi_reduction <add>, %55, %cst_26 [1] : vector<8x32xf32> to vector<8xf32>
    %59 = vector.shape_cast %58 : vector<8xf32> to vector<8x1xf32>
    %cst_27 = arith.constant 3.200000e+01 : f32
    %60 = vector.broadcast %cst_27 : f32 to vector<8x1xf32>
    %61 = arith.divf %59, %60 : vector<8x1xf32>
    %62 = vector.broadcast %61 : vector<8x1xf32> to vector<8x32xf32>
    %63 = arith.subf %55, %62 : vector<8x32xf32>
    %64 = arith.mulf %63, %63 : vector<8x32xf32>
    %cst_28 = arith.constant dense<0.000000e+00> : vector<8xf32>
    %65 = vector.multi_reduction <add>, %64, %cst_28 [1] : vector<8x32xf32> to vector<8xf32>
    %66 = vector.shape_cast %65 : vector<8xf32> to vector<8x1xf32>
    %cst_29 = arith.constant 3.200000e+01 : f32
    %67 = vector.broadcast %cst_29 : f32 to vector<8x1xf32>
    %68 = arith.divf %66, %67 : vector<8x1xf32>
    %69 = vector.broadcast %61 : vector<8x1xf32> to vector<8x32xf32>
    %70 = arith.subf %55, %69 : vector<8x32xf32>
    %cst_30 = arith.constant 9.99999974E-6 : f32
    %71 = vector.broadcast %cst_30 : f32 to vector<8x1xf32>
    %72 = arith.addf %68, %71 : vector<8x1xf32>
    %73 = math.rsqrt %72 : vector<8x1xf32>
    %74 = vector.broadcast %73 : vector<8x1xf32> to vector<8x32xf32>
    %75 = arith.mulf %70, %74 : vector<8x32xf32>
    %76 = vector.broadcast %56 : vector<1x32xf32> to vector<8x32xf32>
    %77 = arith.mulf %75, %76 : vector<8x32xf32>
    %78 = vector.broadcast %57 : vector<1x32xf32> to vector<8x32xf32>
    %79 = arith.addf %77, %78 : vector<8x32xf32>
    %80 = arith.truncf %79 : vector<8x32xf32> to vector<8x32xbf16>
    %c0_31 = arith.constant 0 : index
    %c0_32 = arith.constant 0 : index
    %81 = vector.load %arg11[%c0_31, %c0_32] : memref<32x64xbf16, #tpu.memory_space<vmem>>, vector<32x64xbf16>
    %cst_33 = arith.constant dense<0.000000e+00> : vector<8x64xf32>
    %82 = tpu.matmul %80, %81, %cst_33 {dimension_numbers = #tpu.dot_dimension_numbers<[1], [0], [0], [1], [0, 0, 1, 1], [], []>} : vector<8x32xbf16>, vector<32x64xbf16>, vector<8x64xf32> -> vector<8x64xf32>
    %c0_34 = arith.constant 0 : index
    %c0_35 = arith.constant 0 : index
    %83 = vector.load %arg12[%c0_34, %c0_35] : memref<1x64xf32, #tpu.memory_space<vmem>>, vector<1x64xf32>
    %84 = vector.broadcast %83 : vector<1x64xf32> to vector<8x64xf32>
    %85 = arith.addf %82, %84 : vector<8x64xf32>
    %86 = arith.mulf %85, %85 : vector<8x64xf32>
    %87 = arith.mulf %85, %86 : vector<8x64xf32>
    %cst_36 = arith.constant 4.471500e-02 : f32
    %88 = vector.broadcast %cst_36 : f32 to vector<8x64xf32>
    %89 = arith.mulf %88, %87 : vector<8x64xf32>
    %90 = arith.addf %85, %89 : vector<8x64xf32>
    %cst_37 = arith.constant 0.797884583 : f32
    %91 = vector.broadcast %cst_37 : f32 to vector<8x64xf32>
    %92 = arith.mulf %91, %90 : vector<8x64xf32>
    %93 = math.tanh %92 : vector<8x64xf32>
    %cst_38 = arith.constant 1.000000e+00 : f32
    %94 = vector.broadcast %cst_38 : f32 to vector<8x64xf32>
    %95 = arith.addf %94, %93 : vector<8x64xf32>
    %cst_39 = arith.constant 5.000000e-01 : f32
    %96 = vector.broadcast %cst_39 : f32 to vector<8x64xf32>
    %97 = arith.mulf %96, %95 : vector<8x64xf32>
    %98 = arith.mulf %85, %97 : vector<8x64xf32>
    %99 = arith.truncf %98 : vector<8x64xf32> to vector<8x64xbf16>
    %c0_40 = arith.constant 0 : index
    %c0_41 = arith.constant 0 : index
    %100 = vector.load %arg13[%c0_40, %c0_41] : memref<64x32xbf16, #tpu.memory_space<vmem>>, vector<64x32xbf16>
    %cst_42 = arith.constant dense<0.000000e+00> : vector<8x32xf32>
    %101 = tpu.matmul %99, %100, %cst_42 {dimension_numbers = #tpu.dot_dimension_numbers<[1], [0], [0], [1], [0, 0, 1, 1], [], []>} : vector<8x64xbf16>, vector<64x32xbf16>, vector<8x32xf32> -> vector<8x32xf32>
    %c0_43 = arith.constant 0 : index
    %c0_44 = arith.constant 0 : index
    %102 = vector.load %arg14[%c0_43, %c0_44] : memref<1x32xf32, #tpu.memory_space<vmem>>, vector<1x32xf32>
    %103 = vector.broadcast %102 : vector<1x32xf32> to vector<8x32xf32>
    %104 = arith.addf %101, %103 : vector<8x32xf32>
    %105 = arith.addf %104, %55 : vector<8x32xf32>
    %c0_45 = arith.constant 0 : index
    %c0_46 = arith.constant 0 : index
    %c0_47 = arith.constant 0 : index
    %106 = vector.load %arg15[%c0_45, %c0_46, %c0_47] : memref<1x8x32xf32, #tpu.memory_space<vmem>>, vector<1x8x32xf32>
    %107 = vector.shape_cast %106 : vector<1x8x32xf32> to vector<8x32xf32>
    %108 = vector.shape_cast %105 : vector<8x32xf32> to vector<1x8x32xf32>
    tpu.vector_store %arg15[%c0_45, %c0_46, %c0_47], %108 {strides = array<i32>} : memref<1x8x32xf32, #tpu.memory_space<vmem>>, vector<1x8x32xf32>,
    return
  }
  func.func @transform_0(%arg0: i32, %arg1: i32) -> (i32, i32, i32) {
    %c0_i32 = arith.constant 0 : i32
    %c0_i32_0 = arith.constant 0 : i32
    %c0_i32_1 = arith.constant 0 : i32
    return %arg0, %c0_i32, %c0_i32_0 : i32, i32, i32
  }
  func.func @transform_1(%arg0: i32, %arg1: i32) -> (i32, i32) {
    %c0_i32 = arith.constant 0 : i32
    %c0_i32_0 = arith.constant 0 : i32
    %c0_i32_1 = arith.constant 0 : i32
    return %c0_i32, %c0_i32_0 : i32, i32
  }
  func.func @transform_2(%arg0: i32, %arg1: i32) -> (i32, i32) {
    %c0_i32 = arith.constant 0 : i32
    %c0_i32_0 = arith.constant 0 : i32
    %c0_i32_1 = arith.constant 0 : i32
    return %c0_i32, %c0_i32_0 : i32, i32
  }
  func.func @transform_3(%arg0: i32, %arg1: i32) -> (i32, i32) {
    %c0_i32 = arith.constant 0 : i32
    %c0_i32_0 = arith.constant 0 : i32
    %c0_i32_1 = arith.constant 0 : i32
    return %c0_i32, %c0_i32_0 : i32, i32
  }
  func.func @transform_4(%arg0: i32, %arg1: i32) -> (i32, i32) {
    %c0_i32 = arith.constant 0 : i32
    %c0_i32_0 = arith.constant 0 : i32
    %c0_i32_1 = arith.constant 0 : i32
    return %c0_i32, %c0_i32_0 : i32, i32
  }
  func.func @transform_5(%arg0: i32, %arg1: i32) -> (i32, i32) {
    %c0_i32 = arith.constant 0 : i32
    %c0_i32_0 = arith.constant 0 : i32
    %c0_i32_1 = arith.constant 0 : i32
    return %c0_i32, %c0_i32_0 : i32, i32
  }
  func.func @transform_6(%arg0: i32, %arg1: i32) -> (i32, i32) {
    %c0_i32 = arith.constant 0 : i32
    %c0_i32_0 = arith.constant 0 : i32
    %c0_i32_1 = arith.constant 0 : i32
    return %c0_i32, %c0_i32_0 : i32, i32
  }
  func.func @transform_7(%arg0: i32, %arg1: i32) -> (i32, i32) {
    %c0_i32 = arith.constant 0 : i32
    %c0_i32_0 = arith.constant 0 : i32
    %c0_i32_1 = arith.constant 0 : i32
    return %c0_i32, %c0_i32_0 : i32, i32
  }
  func.func @transform_8(%arg0: i32, %arg1: i32) -> (i32, i32) {
    %c0_i32 = arith.constant 0 : i32
    %c0_i32_0 = arith.constant 0 : i32
    %c0_i32_1 = arith.constant 0 : i32
    return %c0_i32, %c0_i32_0 : i32, i32
  }
  func.func @transform_9(%arg0: i32, %arg1: i32) -> (i32, i32) {
    %c0_i32 = arith.constant 0 : i32
    %c0_i32_0 = arith.constant 0 : i32
    %c0_i32_1 = arith.constant 0 : i32
    return %c0_i32, %c0_i32_0 : i32, i32
  }
  func.func @transform_10(%arg0: i32, %arg1: i32) -> (i32, i32) {
    %c0_i32 = arith.constant 0 : i32
    %c0_i32_0 = arith.constant 0 : i32
    %c0_i32_1 = arith.constant 0 : i32
    return %c0_i32, %c0_i32_0 : i32, i32
  }
  func.func @transform_11(%arg0: i32, %arg1: i32) -> (i32, i32) {
    %c0_i32 = arith.constant 0 : i32
    %c0_i32_0 = arith.constant 0 : i32
    %c0_i32_1 = arith.constant 0 : i32
    return %c0_i32, %c0_i32_0 : i32, i32
  }
  func.func @transform_12(%arg0: i32, %arg1: i32) -> (i32, i32) {
    %c0_i32 = arith.constant 0 : i32
    %c0_i32_0 = arith.constant 0 : i32
    %c0_i32_1 = arith.constant 0 : i32
    return %c0_i32, %c0_i32_0 : i32, i32
  }
  func.func @transform_13(%arg0: i32, %arg1: i32) -> (i32, i32, i32) {
    %c0_i32 = arith.constant 0 : i32
    %c0_i32_0 = arith.constant 0 : i32
    return %arg0, %arg1, %c0_i32 : i32, i32, i32
  }
}

module attributes {stable_mosaic.version = 11 : i64} {
  func.func @transformer_block_kernel(%arg0: i32, %arg1: i32, %arg2: memref<1x8x32xf32, #tpu.memory_space<vmem>>, %arg3: memref<1x32xf32, #tpu.memory_space<vmem>>, %arg4: memref<1x32xf32, #tpu.memory_space<vmem>>, %arg5: memref<32x96xbf16, #tpu.memory_space<vmem>>, %arg6: memref<1x96xf32, #tpu.memory_space<vmem>>, %arg7: memref<32x32xbf16, #tpu.memory_space<vmem>>, %arg8: memref<1x32xf32, #tpu.memory_space<vmem>>, %arg9: memref<1x32xf32, #tpu.memory_space<vmem>>, %arg10: memref<1x32xf32, #tpu.memory_space<vmem>>, %arg11: memref<32x64xbf16, #tpu.memory_space<vmem>>, %arg12: memref<1x64xf32, #tpu.memory_space<vmem>>, %arg13: memref<64x32xbf16, #tpu.memory_space<vmem>>, %arg14: memref<1x32xf32, #tpu.memory_space<vmem>>, %arg15: memref<1x8x32xf32, #tpu.memory_space<vmem>>, %arg16: memref<8x32xbf16, #tpu.memory_space<vmem>>, %arg17: memref<4x8x8xbf16, #tpu.memory_space<vmem>>, %arg18: memref<4x8x8xbf16, #tpu.memory_space<vmem>>) attributes {dimension_semantics = [#tpu.dimension_semantics<parallel>, #tpu.dimension_semantics<arbitrary>], iteration_bounds = array<i64: 2, 1>, scalar_prefetch = 0 : i64, scratch_operands = 3 : i64, tpu.core_type = #tpu.core_type<tc>, window_params = [{transform_indices = @transform_0, window_bounds = array<i64: 1, 8, 32>}, {pipeline_mode = #tpu.pipeline_mode<synchronous>, transform_indices = @transform_1, window_bounds = array<i64: 1, 32>}, {pipeline_mode = #tpu.pipeline_mode<synchronous>, transform_indices = @transform_2, window_bounds = array<i64: 1, 32>}, {pipeline_mode = #tpu.pipeline_mode<synchronous>, transform_indices = @transform_3, window_bounds = array<i64: 32, 96>}, {pipeline_mode = #tpu.pipeline_mode<synchronous>, transform_indices = @transform_4, window_bounds = array<i64: 1, 96>}, {pipeline_mode = #tpu.pipeline_mode<synchronous>, transform_indices = @transform_5, window_bounds = array<i64: 32, 32>}, {pipeline_mode = #tpu.pipeline_mode<synchronous>, transform_indices = @transform_6, window_bounds = array<i64: 1, 32>}, {pipeline_mode = #tpu.pipeline_mode<synchronous>, transform_indices = @transform_7, window_bounds = array<i64: 1, 32>}, {pipeline_mode = #tpu.pipeline_mode<synchronous>, transform_indices = @transform_8, window_bounds = array<i64: 1, 32>}, {pipeline_mode = #tpu.pipeline_mode<synchronous>, transform_indices = @transform_9, window_bounds = array<i64: 32, 64>}, {pipeline_mode = #tpu.pipeline_mode<synchronous>, transform_indices = @transform_10, window_bounds = array<i64: 1, 64>}, {pipeline_mode = #tpu.pipeline_mode<synchronous>, transform_indices = @transform_11, window_bounds = array<i64: 64, 32>}, {pipeline_mode = #tpu.pipeline_mode<synchronous>, transform_indices = @transform_12, window_bounds = array<i64: 1, 32>}, {transform_indices = @transform_13, window_bounds = array<i64: 1, 8, 32>}]} {
    %c8_i32 = arith.constant 8 : i32
    %0 = arith.muli %arg1, %c8_i32 : i32
    %1 = tpu.assume_multiple %0, 8 : i32
    %c0_i32 = arith.constant 0 : i32
    %2 = arith.cmpi eq, %arg1, %c0_i32 : i32
    %3 = arith.extui %2 : i1 to i32
    %c0_i32_0 = arith.constant 0 : i32
    %4 = arith.cmpi ne, %3, %c0_i32_0 : i32
    scf.if %4 {
      %c0_48 = arith.constant 0 : index
      %c0_49 = arith.constant 0 : index
      %c0_50 = arith.constant 0 : index
      %109 = vector.load %arg2[%c0_48, %c0_49, %c0_50] : memref<1x8x32xf32, #tpu.memory_space<vmem>>, vector<1x8x32xf32>
      %110 = vector.shape_cast %109 : vector<1x8x32xf32> to vector<8x32xf32>
      %c0_51 = arith.constant 0 : index
      %c0_52 = arith.constant 0 : index
      %111 = vector.load %arg3[%c0_51, %c0_52] : memref<1x32xf32, #tpu.memory_space<vmem>>, vector<1x32xf32>
      %c0_53 = arith.constant 0 : index
      %c0_54 = arith.constant 0 : index
      %112 = vector.load %arg4[%c0_53, %c0_54] : memref<1x32xf32, #tpu.memory_space<vmem>>, vector<1x32xf32>
      %cst_55 = arith.constant dense<0.000000e+00> : vector<8xf32>
      %113 = vector.multi_reduction <add>, %110, %cst_55 [1] : vector<8x32xf32> to vector<8xf32>
      %114 = vector.shape_cast %113 : vector<8xf32> to vector<8x1xf32>
      %cst_56 = arith.constant 3.200000e+01 : f32
      %115 = vector.broadcast %cst_56 : f32 to vector<8x1xf32>
      %116 = arith.divf %114, %115 : vector<8x1xf32>
      %117 = vector.broadcast %116 : vector<8x1xf32> to vector<8x32xf32>
      %118 = arith.subf %110, %117 : vector<8x32xf32>
      %119 = arith.mulf %118, %118 : vector<8x32xf32>
      %cst_57 = arith.constant dense<0.000000e+00> : vector<8xf32>
      %120 = vector.multi_reduction <add>, %119, %cst_57 [1] : vector<8x32xf32> to vector<8xf32>
      %121 = vector.shape_cast %120 : vector<8xf32> to vector<8x1xf32>
      %cst_58 = arith.constant 3.200000e+01 : f32
      %122 = vector.broadcast %cst_58 : f32 to vector<8x1xf32>
      %123 = arith.divf %121, %122 : vector<8x1xf32>
      %124 = vector.broadcast %116 : vector<8x1xf32> to vector<8x32xf32>
      %125 = arith.subf %110, %124 : vector<8x32xf32>
      %cst_59 = arith.constant 9.99999974E-6 : f32
      %126 = vector.broadcast %cst_59 : f32 to vector<8x1xf32>
      %127 = arith.addf %123, %126 : vector<8x1xf32>
      %128 = math.rsqrt %127 : vector<8x1xf32>
      %129 = vector.broadcast %128 : vector<8x1xf32> to vector<8x32xf32>
      %130 = arith.mulf %125, %129 : vector<8x32xf32>
      %131 = vector.broadcast %111 : vector<1x32xf32> to vector<8x32xf32>
      %132 = arith.mulf %130, %131 : vector<8x32xf32>
      %133 = vector.broadcast %112 : vector<1x32xf32> to vector<8x32xf32>
      %134 = arith.addf %132, %133 : vector<8x32xf32>
      %135 = arith.truncf %134 : vector<8x32xf32> to vector<8x32xbf16>
      %c0_60 = arith.constant 0 : index
      %c0_61 = arith.constant 0 : index
      %136 = vector.load %arg16[%c0_60, %c0_61] : memref<8x32xbf16, #tpu.memory_space<vmem>>, vector<8x32xbf16>
      tpu.vector_store %arg16[%c0_60, %c0_61], %135 {strides = array<i32>} : memref<8x32xbf16, #tpu.memory_space<vmem>>, vector<8x32xbf16>,
      %c0_62 = arith.constant 0 : index
      %c32 = arith.constant 32 : index
      %137 = vector.load %arg5[%c0_62, %c32] : memref<32x96xbf16, #tpu.memory_space<vmem>>, vector<32x64xbf16>
      %cst_63 = arith.constant dense<0.000000e+00> : vector<8x64xf32>
      %138 = tpu.matmul %135, %137, %cst_63 {dimension_numbers = #tpu.dot_dimension_numbers<[1], [0], [0], [1], [0, 0, 1, 1], [], []>} : vector<8x32xbf16>, vector<32x64xbf16>, vector<8x64xf32> -> vector<8x64xf32>
      %c0_64 = arith.constant 0 : index
      %c32_65 = arith.constant 32 : index
      %139 = vector.load %arg6[%c0_64, %c32_65] : memref<1x96xf32, #tpu.memory_space<vmem>>, vector<1x64xf32>
      %140 = vector.broadcast %139 : vector<1x64xf32> to vector<8x64xf32>
      %141 = arith.addf %138, %140 : vector<8x64xf32>
      %142 = arith.truncf %141 : vector<8x64xf32> to vector<8x64xbf16>
      %143 = vector.extract_strided_slice %142 {offsets = [0, 0], sizes = [8, 32], strides = [1, 1]} : vector<8x64xbf16> to vector<8x32xbf16>
      %144 = vector.extract_strided_slice %143 {offsets = [0, 0], sizes = [8, 8], strides = [1, 1]} : vector<8x32xbf16> to vector<8x8xbf16>
      %145 = vector.extract_strided_slice %143 {offsets = [0, 8], sizes = [8, 8], strides = [1, 1]} : vector<8x32xbf16> to vector<8x8xbf16>
      %146 = vector.extract_strided_slice %143 {offsets = [0, 16], sizes = [8, 8], strides = [1, 1]} : vector<8x32xbf16> to vector<8x8xbf16>
      %147 = vector.extract_strided_slice %143 {offsets = [0, 24], sizes = [8, 8], strides = [1, 1]} : vector<8x32xbf16> to vector<8x8xbf16>
      %148 = vector.shape_cast %144 : vector<8x8xbf16> to vector<1x8x8xbf16>
      %149 = vector.shape_cast %145 : vector<8x8xbf16> to vector<1x8x8xbf16>
      %150 = vector.shape_cast %146 : vector<8x8xbf16> to vector<1x8x8xbf16>
      %151 = vector.shape_cast %147 : vector<8x8xbf16> to vector<1x8x8xbf16>
      %152 = tpu.concatenate %148, %149, %150, %151 in 0 : vector<1x8x8xbf16>, vector<1x8x8xbf16>, vector<1x8x8xbf16>, vector<1x8x8xbf16> -> vector<4x8x8xbf16>
      %c0_66 = arith.constant 0 : index
      %c0_67 = arith.constant 0 : index
      %c0_68 = arith.constant 0 : index
      %153 = vector.load %arg17[%c0_66, %c0_67, %c0_68] : memref<4x8x8xbf16, #tpu.memory_space<vmem>>, vector<4x8x8xbf16>
      tpu.vector_store %arg17[%c0_66, %c0_67, %c0_68], %152 {strides = array<i32>} : memref<4x8x8xbf16, #tpu.memory_space<vmem>>, vector<4x8x8xbf16>,
      %154 = vector.extract_strided_slice %142 {offsets = [0, 32], sizes = [8, 32], strides = [1, 1]} : vector<8x64xbf16> to vector<8x32xbf16>
      %155 = vector.extract_strided_slice %154 {offsets = [0, 0], sizes = [8, 8], strides = [1, 1]} : vector<8x32xbf16> to vector<8x8xbf16>
      %156 = vector.extract_strided_slice %154 {offsets = [0, 8], sizes = [8, 8], strides = [1, 1]} : vector<8x32xbf16> to vector<8x8xbf16>
      %157 = vector.extract_strided_slice %154 {offsets = [0, 16], sizes = [8, 8], strides = [1, 1]} : vector<8x32xbf16> to vector<8x8xbf16>
      %158 = vector.extract_strided_slice %154 {offsets = [0, 24], sizes = [8, 8], strides = [1, 1]} : vector<8x32xbf16> to vector<8x8xbf16>
      %159 = vector.shape_cast %155 : vector<8x8xbf16> to vector<1x8x8xbf16>
      %160 = vector.shape_cast %156 : vector<8x8xbf16> to vector<1x8x8xbf16>
      %161 = vector.shape_cast %157 : vector<8x8xbf16> to vector<1x8x8xbf16>
      %162 = vector.shape_cast %158 : vector<8x8xbf16> to vector<1x8x8xbf16>
      %163 = tpu.concatenate %159, %160, %161, %162 in 0 : vector<1x8x8xbf16>, vector<1x8x8xbf16>, vector<1x8x8xbf16>, vector<1x8x8xbf16> -> vector<4x8x8xbf16>
      %c0_69 = arith.constant 0 : index
      %c0_70 = arith.constant 0 : index
      %c0_71 = arith.constant 0 : index
      %164 = vector.load %arg18[%c0_69, %c0_70, %c0_71] : memref<4x8x8xbf16, #tpu.memory_space<vmem>>, vector<4x8x8xbf16>
      tpu.vector_store %arg18[%c0_69, %c0_70, %c0_71], %163 {strides = array<i32>} : memref<4x8x8xbf16, #tpu.memory_space<vmem>>, vector<4x8x8xbf16>,
    } else {
    }
    %c0 = arith.constant 0 : index
    %5 = arith.index_cast %1 : i32 to index
    %c0_1 = arith.constant 0 : index
    %6 = vector.load %arg2[%c0, %5, %c0_1] : memref<1x8x32xf32, #tpu.memory_space<vmem>>, vector<1x8x32xf32>
    %7 = vector.shape_cast %6 : vector<1x8x32xf32> to vector<8x32xf32>
    %8 = arith.index_cast %1 : i32 to index
    %c0_2 = arith.constant 0 : index
    %9 = vector.load %arg16[%8, %c0_2] : memref<8x32xbf16, #tpu.memory_space<vmem>>, vector<8x32xbf16>
    %c0_3 = arith.constant 0 : index
    %c0_4 = arith.constant 0 : index
    %10 = vector.load %arg5[%c0_3, %c0_4] : memref<32x96xbf16, #tpu.memory_space<vmem>>, vector<32x32xbf16>
    %cst = arith.constant dense<0.000000e+00> : vector<8x32xf32>
    %11 = tpu.matmul %9, %10, %cst {dimension_numbers = #tpu.dot_dimension_numbers<[1], [0], [0], [1], [0, 0, 1, 1], [], []>} : vector<8x32xbf16>, vector<32x32xbf16>, vector<8x32xf32> -> vector<8x32xf32>
    %c0_5 = arith.constant 0 : index
    %c0_6 = arith.constant 0 : index
    %12 = vector.load %arg6[%c0_5, %c0_6] : memref<1x96xf32, #tpu.memory_space<vmem>>, vector<1x32xf32>
    %13 = vector.broadcast %12 : vector<1x32xf32> to vector<8x32xf32>
    %14 = arith.addf %11, %13 : vector<8x32xf32>
    %15 = arith.truncf %14 : vector<8x32xf32> to vector<8x32xbf16>
    %16 = vector.extract_strided_slice %15 {offsets = [0, 0], sizes = [8, 8], strides = [1, 1]} : vector<8x32xbf16> to vector<8x8xbf16>
    %17 = vector.extract_strided_slice %15 {offsets = [0, 8], sizes = [8, 8], strides = [1, 1]} : vector<8x32xbf16> to vector<8x8xbf16>
    %18 = vector.extract_strided_slice %15 {offsets = [0, 16], sizes = [8, 8], strides = [1, 1]} : vector<8x32xbf16> to vector<8x8xbf16>
    %19 = vector.extract_strided_slice %15 {offsets = [0, 24], sizes = [8, 8], strides = [1, 1]} : vector<8x32xbf16> to vector<8x8xbf16>
    %20 = vector.shape_cast %16 : vector<8x8xbf16> to vector<1x8x8xbf16>
    %21 = vector.shape_cast %17 : vector<8x8xbf16> to vector<1x8x8xbf16>
    %22 = vector.shape_cast %18 : vector<8x8xbf16> to vector<1x8x8xbf16>
    %23 = vector.shape_cast %19 : vector<8x8xbf16> to vector<1x8x8xbf16>
    %24 = tpu.concatenate %20, %21, %22, %23 in 0 : vector<1x8x8xbf16>, vector<1x8x8xbf16>, vector<1x8x8xbf16>, vector<1x8x8xbf16> -> vector<4x8x8xbf16>
    %c0_7 = arith.constant 0 : index
    %c0_8 = arith.constant 0 : index
    %c0_9 = arith.constant 0 : index
    %25 = vector.load %arg17[%c0_7, %c0_8, %c0_9] : memref<4x8x8xbf16, #tpu.memory_space<vmem>>, vector<4x8x8xbf16>
    %c0_10 = arith.constant 0 : index
    %c0_11 = arith.constant 0 : index
    %c0_12 = arith.constant 0 : index
    %26 = vector.load %arg18[%c0_10, %c0_11, %c0_12] : memref<4x8x8xbf16, #tpu.memory_space<vmem>>, vector<4x8x8xbf16>
    "tpu.trace_start"() <{level = 10 : i32, message = "hqd,hkd->hqk"}> : () -> ()
    %cst_13 = arith.constant dense<0.000000e+00> : vector<4x8x8xf32>
    %27 = tpu.matmul %24, %25, %cst_13 {dimension_numbers = #tpu.dot_dimension_numbers<[2], [2], [1], [1], [0, 0, 0, 1, 1, 1], [0], [0]>} : vector<4x8x8xbf16>, vector<4x8x8xbf16>, vector<4x8x8xf32> -> vector<4x8x8xf32>
    "tpu.trace_stop"() : () -> ()
    %cst_14 = arith.constant dense<0xFF800000> : vector<4x8xf32>
    %28 = vector.multi_reduction <maximumf>, %27, %cst_14 [2] : vector<4x8x8xf32> to vector<4x8xf32>
    %29 = vector.shape_cast %28 : vector<4x8xf32> to vector<4x8x1xf32>
    %30 = vector.broadcast %29 : vector<4x8x1xf32> to vector<4x8x8xf32>
    %31 = arith.subf %27, %30 : vector<4x8x8xf32>
    %32 = math.exp %31 : vector<4x8x8xf32>
    %cst_15 = arith.constant dense<0.000000e+00> : vector<4x8xf32>
    %33 = vector.multi_reduction <add>, %32, %cst_15 [2] : vector<4x8x8xf32> to vector<4x8xf32>
    %34 = vector.shape_cast %33 : vector<4x8xf32> to vector<4x8x1xf32>
    %35 = tpu.reciprocal %34 {approx = true} : vector<4x8x1xf32> -> vector<4x8x1xf32>
    %36 = vector.broadcast %35 : vector<4x8x1xf32> to vector<4x8x8xf32>
    %37 = arith.mulf %32, %36 : vector<4x8x8xf32>
    %38 = arith.truncf %37 : vector<4x8x8xf32> to vector<4x8x8xbf16>
    "tpu.trace_start"() <{level = 10 : i32, message = "hqk,hkd->hqd"}> : () -> ()
    %cst_16 = arith.constant dense<0.000000e+00> : vector<4x8x8xf32>
    %39 = tpu.matmul %38, %26, %cst_16 {dimension_numbers = #tpu.dot_dimension_numbers<[2], [1], [1], [2], [0, 0, 0, 1, 1, 2], [0], [0]>} : vector<4x8x8xbf16>, vector<4x8x8xbf16>, vector<4x8x8xf32> -> vector<4x8x8xf32>
    "tpu.trace_stop"() : () -> ()
    %40 = vector.extract_strided_slice %39 {offsets = [0, 0, 0], sizes = [1, 8, 8], strides = [1, 1, 1]} : vector<4x8x8xf32> to vector<1x8x8xf32>
    %41 = vector.shape_cast %40 : vector<1x8x8xf32> to vector<8x8xf32>
    %42 = vector.extract_strided_slice %39 {offsets = [1, 0, 0], sizes = [1, 8, 8], strides = [1, 1, 1]} : vector<4x8x8xf32> to vector<1x8x8xf32>
    %43 = vector.shape_cast %42 : vector<1x8x8xf32> to vector<8x8xf32>
    %44 = vector.extract_strided_slice %39 {offsets = [2, 0, 0], sizes = [1, 8, 8], strides = [1, 1, 1]} : vector<4x8x8xf32> to vector<1x8x8xf32>
    %45 = vector.shape_cast %44 : vector<1x8x8xf32> to vector<8x8xf32>
    %46 = vector.extract_strided_slice %39 {offsets = [3, 0, 0], sizes = [1, 8, 8], strides = [1, 1, 1]} : vector<4x8x8xf32> to vector<1x8x8xf32>
    %47 = vector.shape_cast %46 : vector<1x8x8xf32> to vector<8x8xf32>
    %48 = tpu.concatenate %41, %43, %45, %47 in 1 : vector<8x8xf32>, vector<8x8xf32>, vector<8x8xf32>, vector<8x8xf32> -> vector<8x32xf32>
    %49 = arith.truncf %48 : vector<8x32xf32> to vector<8x32xbf16>
    %c0_17 = arith.constant 0 : index
    %c0_18 = arith.constant 0 : index
    %50 = vector.load %arg7[%c0_17, %c0_18] : memref<32x32xbf16, #tpu.memory_space<vmem>>, vector<32x32xbf16>
    %cst_19 = arith.constant dense<0.000000e+00> : vector<8x32xf32>
    %51 = tpu.matmul %49, %50, %cst_19 {dimension_numbers = #tpu.dot_dimension_numbers<[1], [0], [0], [1], [0, 0, 1, 1], [], []>} : vector<8x32xbf16>, vector<32x32xbf16>, vector<8x32xf32> -> vector<8x32xf32>
    %c0_20 = arith.constant 0 : index
    %c0_21 = arith.constant 0 : index
    %52 = vector.load %arg8[%c0_20, %c0_21] : memref<1x32xf32, #tpu.memory_space<vmem>>, vector<1x32xf32>
    %53 = vector.broadcast %52 : vector<1x32xf32> to vector<8x32xf32>
    %54 = arith.addf %51, %53 : vector<8x32xf32>
    %55 = arith.addf %54, %7 : vector<8x32xf32>
    %c0_22 = arith.constant 0 : index
    %c0_23 = arith.constant 0 : index
    %56 = vector.load %arg9[%c0_22, %c0_23] : memref<1x32xf32, #tpu.memory_space<vmem>>, vector<1x32xf32>
    %c0_24 = arith.constant 0 : index
    %c0_25 = arith.constant 0 : index
    %57 = vector.load %arg10[%c0_24, %c0_25] : memref<1x32xf32, #tpu.memory_space<vmem>>, vector<1x32xf32>
    %cst_26 = arith.constant dense<0.000000e+00> : vector<8xf32>
    %58 = vector.multi_reduction <add>, %55, %cst_26 [1] : vector<8x32xf32> to vector<8xf32>
    %59 = vector.shape_cast %58 : vector<8xf32> to vector<8x1xf32>
    %cst_27 = arith.constant 3.200000e+01 : f32
    %60 = vector.broadcast %cst_27 : f32 to vector<8x1xf32>
    %61 = arith.divf %59, %60 : vector<8x1xf32>
    %62 = vector.broadcast %61 : vector<8x1xf32> to vector<8x32xf32>
    %63 = arith.subf %55, %62 : vector<8x32xf32>
    %64 = arith.mulf %63, %63 : vector<8x32xf32>
    %cst_28 = arith.constant dense<0.000000e+00> : vector<8xf32>
    %65 = vector.multi_reduction <add>, %64, %cst_28 [1] : vector<8x32xf32> to vector<8xf32>
    %66 = vector.shape_cast %65 : vector<8xf32> to vector<8x1xf32>
    %cst_29 = arith.constant 3.200000e+01 : f32
    %67 = vector.broadcast %cst_29 : f32 to vector<8x1xf32>
    %68 = arith.divf %66, %67 : vector<8x1xf32>
    %69 = vector.broadcast %61 : vector<8x1xf32> to vector<8x32xf32>
    %70 = arith.subf %55, %69 : vector<8x32xf32>
    %cst_30 = arith.constant 9.99999974E-6 : f32
    %71 = vector.broadcast %cst_30 : f32 to vector<8x1xf32>
    %72 = arith.addf %68, %71 : vector<8x1xf32>
    %73 = math.rsqrt %72 : vector<8x1xf32>
    %74 = vector.broadcast %73 : vector<8x1xf32> to vector<8x32xf32>
    %75 = arith.mulf %70, %74 : vector<8x32xf32>
    %76 = vector.broadcast %56 : vector<1x32xf32> to vector<8x32xf32>
    %77 = arith.mulf %75, %76 : vector<8x32xf32>
    %78 = vector.broadcast %57 : vector<1x32xf32> to vector<8x32xf32>
    %79 = arith.addf %77, %78 : vector<8x32xf32>
    %80 = arith.truncf %79 : vector<8x32xf32> to vector<8x32xbf16>
    %c0_31 = arith.constant 0 : index
    %c0_32 = arith.constant 0 : index
    %81 = vector.load %arg11[%c0_31, %c0_32] : memref<32x64xbf16, #tpu.memory_space<vmem>>, vector<32x64xbf16>
    %cst_33 = arith.constant dense<0.000000e+00> : vector<8x64xf32>
    %82 = tpu.matmul %80, %81, %cst_33 {dimension_numbers = #tpu.dot_dimension_numbers<[1], [0], [0], [1], [0, 0, 1, 1], [], []>} : vector<8x32xbf16>, vector<32x64xbf16>, vector<8x64xf32> -> vector<8x64xf32>
    %c0_34 = arith.constant 0 : index
    %c0_35 = arith.constant 0 : index
    %83 = vector.load %arg12[%c0_34, %c0_35] : memref<1x64xf32, #tpu.memory_space<vmem>>, vector<1x64xf32>
    %84 = vector.broadcast %83 : vector<1x64xf32> to vector<8x64xf32>
    %85 = arith.addf %82, %84 : vector<8x64xf32>
    %86 = arith.mulf %85, %85 : vector<8x64xf32>
    %87 = arith.mulf %85, %86 : vector<8x64xf32>
    %cst_36 = arith.constant 4.471500e-02 : f32
    %88 = vector.broadcast %cst_36 : f32 to vector<8x64xf32>
    %89 = arith.mulf %88, %87 : vector<8x64xf32>
    %90 = arith.addf %85, %89 : vector<8x64xf32>
    %cst_37 = arith.constant 0.797884583 : f32
    %91 = vector.broadcast %cst_37 : f32 to vector<8x64xf32>
    %92 = arith.mulf %91, %90 : vector<8x64xf32>
    %93 = math.tanh %92 : vector<8x64xf32>
    %cst_38 = arith.constant 1.000000e+00 : f32
    %94 = vector.broadcast %cst_38 : f32 to vector<8x64xf32>
    %95 = arith.addf %94, %93 : vector<8x64xf32>
    %cst_39 = arith.constant 5.000000e-01 : f32
    %96 = vector.broadcast %cst_39 : f32 to vector<8x64xf32>
    %97 = arith.mulf %96, %95 : vector<8x64xf32>
    %98 = arith.mulf %85, %97 : vector<8x64xf32>
    %99 = arith.truncf %98 : vector<8x64xf32> to vector<8x64xbf16>
    %c0_40 = arith.constant 0 : index
    %c0_41 = arith.constant 0 : index
    %100 = vector.load %arg13[%c0_40, %c0_41] : memref<64x32xbf16, #tpu.memory_space<vmem>>, vector<64x32xbf16>
    %cst_42 = arith.constant dense<0.000000e+00> : vector<8x32xf32>
    %101 = tpu.matmul %99, %100, %cst_42 {dimension_numbers = #tpu.dot_dimension_numbers<[1], [0], [0], [1], [0, 0, 1, 1], [], []>} : vector<8x64xbf16>, vector<64x32xbf16>, vector<8x32xf32> -> vector<8x32xf32>
    %c0_43 = arith.constant 0 : index
    %c0_44 = arith.constant 0 : index
    %102 = vector.load %arg14[%c0_43, %c0_44] : memref<1x32xf32, #tpu.memory_space<vmem>>, vector<1x32xf32>
    %103 = vector.broadcast %102 : vector<1x32xf32> to vector<8x32xf32>
    %104 = arith.addf %101, %103 : vector<8x32xf32>
    %105 = arith.addf %104, %55 : vector<8x32xf32>
    %c0_45 = arith.constant 0 : index
    %c0_46 = arith.constant 0 : index
    %c0_47 = arith.constant 0 : index
    %106 = vector.load %arg15[%c0_45, %c0_46, %c0_47] : memref<1x8x32xf32, #tpu.memory_space<vmem>>, vector<1x8x32xf32>
    %107 = vector.shape_cast %106 : vector<1x8x32xf32> to vector<8x32xf32>
    %108 = vector.shape_cast %105 : vector<8x32xf32> to vector<1x8x32xf32>
    tpu.vector_store %arg15[%c0_45, %c0_46, %c0_47], %108 {strides = array<i32>} : memref<1x8x32xf32, #tpu.memory_space<vmem>>, vector<1x8x32xf32>,
    return
  }
  func.func @transform_0(%arg0: i32, %arg1: i32) -> (i32, i32, i32) {
    %c0_i32 = arith.constant 0 : i32
    %c0_i32_0 = arith.constant 0 : i32
    %c0_i32_1 = arith.constant 0 : i32
    return %arg0, %c0_i32, %c0_i32_0 : i32, i32, i32
  }
  func.func @transform_1(%arg0: i32, %arg1: i32) -> (i32, i32) {
    %c0_i32 = arith.constant 0 : i32
    %c0_i32_0 = arith.constant 0 : i32
    %c0_i32_1 = arith.constant 0 : i32
    return %c0_i32, %c0_i32_0 : i32, i32
  }
  func.func @transform_2(%arg0: i32, %arg1: i32) -> (i32, i32) {
    %c0_i32 = arith.constant 0 : i32
    %c0_i32_0 = arith.constant 0 : i32
    %c0_i32_1 = arith.constant 0 : i32
    return %c0_i32, %c0_i32_0 : i32, i32
  }
  func.func @transform_3(%arg0: i32, %arg1: i32) -> (i32, i32) {
    %c0_i32 = arith.constant 0 : i32
    %c0_i32_0 = arith.constant 0 : i32
    %c0_i32_1 = arith.constant 0 : i32
    return %c0_i32, %c0_i32_0 : i32, i32
  }
  func.func @transform_4(%arg0: i32, %arg1: i32) -> (i32, i32) {
    %c0_i32 = arith.constant 0 : i32
    %c0_i32_0 = arith.constant 0 : i32
    %c0_i32_1 = arith.constant 0 : i32
    return %c0_i32, %c0_i32_0 : i32, i32
  }
  func.func @transform_5(%arg0: i32, %arg1: i32) -> (i32, i32) {
    %c0_i32 = arith.constant 0 : i32
    %c0_i32_0 = arith.constant 0 : i32
    %c0_i32_1 = arith.constant 0 : i32
    return %c0_i32, %c0_i32_0 : i32, i32
  }
  func.func @transform_6(%arg0: i32, %arg1: i32) -> (i32, i32) {
    %c0_i32 = arith.constant 0 : i32
    %c0_i32_0 = arith.constant 0 : i32
    %c0_i32_1 = arith.constant 0 : i32
    return %c0_i32, %c0_i32_0 : i32, i32
  }
  func.func @transform_7(%arg0: i32, %arg1: i32) -> (i32, i32) {
    %c0_i32 = arith.constant 0 : i32
    %c0_i32_0 = arith.constant 0 : i32
    %c0_i32_1 = arith.constant 0 : i32
    return %c0_i32, %c0_i32_0 : i32, i32
  }
  func.func @transform_8(%arg0: i32, %arg1: i32) -> (i32, i32) {
    %c0_i32 = arith.constant 0 : i32
    %c0_i32_0 = arith.constant 0 : i32
    %c0_i32_1 = arith.constant 0 : i32
    return %c0_i32, %c0_i32_0 : i32, i32
  }
  func.func @transform_9(%arg0: i32, %arg1: i32) -> (i32, i32) {
    %c0_i32 = arith.constant 0 : i32
    %c0_i32_0 = arith.constant 0 : i32
    %c0_i32_1 = arith.constant 0 : i32
    return %c0_i32, %c0_i32_0 : i32, i32
  }
  func.func @transform_10(%arg0: i32, %arg1: i32) -> (i32, i32) {
    %c0_i32 = arith.constant 0 : i32
    %c0_i32_0 = arith.constant 0 : i32
    %c0_i32_1 = arith.constant 0 : i32
    return %c0_i32, %c0_i32_0 : i32, i32
  }
  func.func @transform_11(%arg0: i32, %arg1: i32) -> (i32, i32) {
    %c0_i32 = arith.constant 0 : i32
    %c0_i32_0 = arith.constant 0 : i32
    %c0_i32_1 = arith.constant 0 : i32
    return %c0_i32, %c0_i32_0 : i32, i32
  }
  func.func @transform_12(%arg0: i32, %arg1: i32) -> (i32, i32) {
    %c0_i32 = arith.constant 0 : i32
    %c0_i32_0 = arith.constant 0 : i32
    %c0_i32_1 = arith.constant 0 : i32
    return %c0_i32, %c0_i32_0 : i32, i32
  }
  func.func @transform_13(%arg0: i32, %arg1: i32) -> (i32, i32, i32) {
    %c0_i32 = arith.constant 0 : i32
    %c0_i32_0 = arith.constant 0 : i32
    return %arg0, %arg1, %c0_i32 : i32, i32, i32
  }
}

</mosaic_0001>

<llo_original>
// kernel: transformer_apply.2
$region0: #{transformer_apply.2}
  #allocation0 [shape = 'u32[]', space=smem, size = 0x4, offset = 0x4, fixed_abs, tag = 'smem constant byte address 0x4 - core index']
  #allocation1 [shape = 'u32[144,128]{1,0:T(1,128)}', space=vmem, size = 0x12000, scoped, tag = 'internal scratch']
  #allocation2 [shape = 'bf16[8,32]{1,0:T(8,128)(2,1)}', space=vmem, size = 0x800, scoped, tag = 'scratch operand']
  #allocation3 [shape = 'bf16[4,8,8]{2,1,0:T(8,128)(2,1)}', space=vmem, size = 0x2000, scoped, tag = 'scratch operand']
  #allocation4 [shape = 'bf16[4,8,8]{2,1,0:T(8,128)(2,1)}', space=vmem, size = 0x2000, scoped, tag = 'scratch operand']
  %s0 = inlined_call_operand.vmem [shape: f32[2,8,32], index: 0, kind: input, shape index: {}]
  %s1 = inlined_call_operand.vmem [shape: f32[1,32], index: 1, kind: input, shape index: {}]
  %s2 = inlined_call_operand.vmem [shape: f32[1,32], index: 2, kind: input, shape index: {}]
  %s3 = inlined_call_operand.vmem [shape: bf16[32,96], index: 3, kind: input, shape index: {}]
  %s4 = inlined_call_operand.hbm [shape: f32[1,96], index: 4, kind: input, shape index: {}]
  %s5 = inlined_call_operand.vmem [shape: bf16[32,32], index: 5, kind: input, shape index: {}]
  %s6 = inlined_call_operand.hbm [shape: f32[1,32], index: 6, kind: input, shape index: {}]
  %s7 = inlined_call_operand.hbm [shape: f32[1,32], index: 7, kind: input, shape index: {}]
  %s8 = inlined_call_operand.hbm [shape: f32[1,32], index: 8, kind: input, shape index: {}]
  %s9 = inlined_call_operand.vmem [shape: bf16[32,64], index: 9, kind: input, shape index: {}]
  %s10 = inlined_call_operand.hbm [shape: f32[1,64], index: 10, kind: input, shape index: {}]
  %s11 = inlined_call_operand.vmem [shape: bf16[64,32], index: 11, kind: input, shape index: {}]
  %s12 = inlined_call_operand.hbm [shape: f32[1,32], index: 12, kind: input, shape index: {}]
  %s13 = inlined_call_operand.vmem [shape: f32[2,8,32], index: 13, kind: output, shape index: {}]
  %s14 = sld [smem:[#allocation0]]
  $region113: #{transformer_apply.2} parent=0
    _
  %s16 = ssub.s32 1, %s14
  %s17 = scalar_select 0, %s16, %s14
  $region1: #{transformer_apply.2} parent=0
    #allocation5 [shape = 'u8[512]{0}', space=vmem, size = 0x400, scoped, tag = 'input window, operand 4, single buffered']
    #allocation6 [shape = 's32[2]{0}', space=sflag, size = 0x8, scoped, tag = 'scoped memory for transformer_apply.2']
    #allocation7 [shape = 'u8[512]{0}', space=vmem, size = 0x400, scoped, tag = 'input window, operand 6, single buffered']
    #allocation8 [shape = 's32[1]{0}', space=sflag, size = 0x4, scoped, tag = 'scoped memory for transformer_apply.2']
    #allocation9 [shape = 'u8[512]{0}', space=vmem, size = 0x400, scoped, tag = 'input window, operand 7, single buffered']
    #allocation10 [shape = 'u8[512]{0}', space=vmem, size = 0x400, scoped, tag = 'input window, operand 8, single buffered']
    #allocation11 [shape = 's32[1]{0}', space=sflag, size = 0x4, scoped, tag = 'scoped memory for transformer_apply.2']
    #allocation12 [shape = 'u8[512]{0}', space=vmem, size = 0x400, scoped, tag = 'input window, operand 10, single buffered']
    #allocation13 [shape = 'u8[512]{0}', space=vmem, size = 0x400, scoped, tag = 'input window, operand 12, single buffered']
    #allocation14 [shape = 's32[1]{0}', space=sflag, size = 0x4, scoped, tag = 'scoped memory for transformer_apply.2']
    %18 = vsyncpa [#allocation6], 0
    %19 = vsyncpa [#allocation8], 0
    %20 = vsyncpa [#allocation11], 0
    %21 = vsyncpa [#allocation14], 0
    loop: start=0, step=1, limit=4
    $region2: #{transformer_apply.2} parent=1 // loop_pre_header
      _
    $region3: #{transformer_apply.2} parent=1 // loop_header
      %s23 = sphi 0, %s27
      %p24 = scmp.ge.s32.totalorder %s23, 4
      %s30 = sphi 0, %s42
      %s31 = sphi 0, %s38
      %s32 = sphi 0, %s30
      %s33 = sphi 0, %s31
      %s34 = sphi 0, %s32
      %s35 = sphi 0, %s33
      %s45 = sphi 0, %s47
      %s48 = sphi 0, %s45
      %s49 = sphi 0, %s48
      %s65 = sphi 0, %s49
      %s69 = sphi 0, %s69
      %s71 = sphi 0, %s69
      %s72 = sphi 0, %s71
      %s86 = sphi 0, %s72
      %s90 = sphi 0, %s90
      %s92 = sphi 0, %s90
      %s93 = sphi 0, %s92
      %s107 = sphi 0, %s93
      %s111 = sphi 0, %s111
      %s113 = sphi 0, %s111
      %s114 = sphi 0, %s113
      %s128 = sphi 0, %s114
      %s132 = sphi 0, %s132
      %s134 = sphi 0, %s132
      %s135 = sphi 0, %s134
      %s149 = sphi 0, %s135
      %s153 = sphi 0, %s153
      %s155 = sphi 0, %s153
      %s156 = sphi 0, %s155
      %s170 = sphi 0, %s156
      %s174 = sphi 0, %s174
      %s176 = sphi 0, %s174
      %s177 = sphi 0, %s176
      %s191 = sphi 0, %s177
      %s195 = sphi 0, %s195
      %s197 = sphi 0, %s195
      %s198 = sphi 0, %s197
      %s212 = sphi 0, %s198
      %s216 = sphi 0, %s216
      %s218 = sphi 0, %s216
      %s219 = sphi 0, %s218
      %s233 = sphi 0, %s219
      %s237 = sphi 0, %s237
      %s239 = sphi 0, %s237
      %s240 = sphi 0, %s239
      %s254 = sphi 0, %s240
      %s258 = sphi 0, %s258
      %s260 = sphi 0, %s258
      %s261 = sphi 0, %s260
      %s275 = sphi 0, %s261
      %s279 = sphi 0, %s279
      %s281 = sphi 0, %s279
      %s282 = sphi 0, %s281
      %s296 = sphi 0, %s282
      %s300 = sphi 0, %s300
      %s302 = sphi 0, %s300
      %s303 = sphi 0, %s302
      %s317 = sphi 0, %s303
      %s325 = sphi 0, %s327
      %s328 = sphi 0, %s325
      %s329 = sphi 0, %s328
      %s345 = sphi 0, %s329
    $region4: #{transformer_apply.2} parent=1 // loop_header_branch
      %26 = sbr.rel (%p24) target = $region8
    $region5: #{transformer_apply.2} parent=1 // loop_body
      %s28 = ssub.s32 %s23, 1
      %s29 = ssub.s32 %s23, 2
      %s36 = sadd.s32 1, %s31
      %p37 = scmp.ge.s32.totalorder %s36, 1
      %s38 = scalar_select %p37, 0, %s36
      %s39 = sadd.s32 1, %s30
      %s40 = scalar_select %p37, %s39, %s30
      %p41 = scmp.ge.s32.totalorder %s40, 2
      %s42 = scalar_select %p41, 0, %s40
      %s43 = ssub.s32 %s30, %s42
      %p44 = scmp.eq.s32.totalorder %s43, 0
      %s46 = sadd.s32 %s45, 1
      %s47 = scalar_select %p44, %s45, %s46
      %p50 = pneg %p44
      %p51 = scmp.eq.s32.totalorder %s23, 1
      %p52 = por %p50, %p51
      %p53 = scmp.ne.s32.totalorder %s45, %s48
      %p54 = scmp.eq.s32.totalorder %s23, 0
      %p55 = por %p53, %p54
      %p56 = scmp.ne.s32.totalorder %s45, %s48
      %p57 = scmp.eq.s32.totalorder %s28, 1
      %p58 = por %p56, %p57
      %p59 = scmp.ne.s32.totalorder %s48, %s49
      %p60 = scmp.eq.s32.totalorder %s28, 0
      %p61 = por %p59, %p60
      %p62 = scmp.ne.s32.totalorder %s48, %s49
      %p63 = scmp.eq.s32.totalorder %s29, 1
      %p64 = por %p62, %p63
      %p66 = scmp.ne.s32.totalorder %s49, %s65
      %p67 = scmp.eq.s32.totalorder %s29, 0
      %p68 = por %p66, %p67
      %s70 = sadd.s32 %s69, 1
      %p73 = scmp.eq.s32.totalorder %s23, 1
      %p74 = scmp.ne.s32.totalorder %s69, %s71
      %p75 = scmp.eq.s32.totalorder %s23, 0
      %p76 = por %p74, %p75
      %p77 = scmp.ne.s32.totalorder %s69, %s71
      %p78 = scmp.eq.s32.totalorder %s28, 1
      %p79 = por %p77, %p78
      %p80 = scmp.ne.s32.totalorder %s71, %s72
      %p81 = scmp.eq.s32.totalorder %s28, 0
      %p82 = por %p80, %p81
      %p83 = scmp.ne.s32.totalorder %s71, %s72
      %p84 = scmp.eq.s32.totalorder %s29, 1
      %p85 = por %p83, %p84
      %p87 = scmp.ne.s32.totalorder %s72, %s86
      %p88 = scmp.eq.s32.totalorder %s29, 0
      %p89 = por %p87, %p88
      %s91 = sadd.s32 %s90, 1
      %p94 = scmp.eq.s32.totalorder %s23, 1
      %p95 = scmp.ne.s32.totalorder %s90, %s92
      %p96 = scmp.eq.s32.totalorder %s23, 0
      %p97 = por %p95, %p96
      %p98 = scmp.ne.s32.totalorder %s90, %s92
      %p99 = scmp.eq.s32.totalorder %s28, 1
      %p100 = por %p98, %p99
      %p101 = scmp.ne.s32.totalorder %s92, %s93
      %p102 = scmp.eq.s32.totalorder %s28, 0
      %p103 = por %p101, %p102
      %p104 = scmp.ne.s32.totalorder %s92, %s93
      %p105 = scmp.eq.s32.totalorder %s29, 1
      %p106 = por %p104, %p105
      %p108 = scmp.ne.s32.totalorder %s93, %s107
      %p109 = scmp.eq.s32.totalorder %s29, 0
      %p110 = por %p108, %p109
      %s112 = sadd.s32 %s111, 1
      %p115 = scmp.eq.s32.totalorder %s23, 1
      %p116 = scmp.ne.s32.totalorder %s111, %s113
      %p117 = scmp.eq.s32.totalorder %s23, 0
      %p118 = por %p116, %p117
      %p119 = scmp.ne.s32.totalorder %s111, %s113
      %p120 = scmp.eq.s32.totalorder %s28, 1
      %p121 = por %p119, %p120
      %p122 = scmp.ne.s32.totalorder %s113, %s114
      %p123 = scmp.eq.s32.totalorder %s28, 0
      %p124 = por %p122, %p123
      %p125 = scmp.ne.s32.totalorder %s113, %s114
      %p126 = scmp.eq.s32.totalorder %s29, 1
      %p127 = por %p125, %p126
      %p129 = scmp.ne.s32.totalorder %s114, %s128
      %p130 = scmp.eq.s32.totalorder %s29, 0
      %p131 = por %p129, %p130
      %s133 = sadd.s32 %s132, 1
      %p136 = scmp.eq.s32.totalorder %s23, 1
      %p137 = scmp.ne.s32.totalorder %s132, %s134
      %p138 = scmp.eq.s32.totalorder %s23, 0
      %p139 = por %p137, %p138
      %p140 = scmp.ne.s32.totalorder %s132, %s134
      %p141 = scmp.eq.s32.totalorder %s28, 1
      %p142 = por %p140, %p141
      %p143 = scmp.ne.s32.totalorder %s134, %s135
      %p144 = scmp.eq.s32.totalorder %s28, 0
      %p145 = por %p143, %p144
      %p146 = scmp.ne.s32.totalorder %s134, %s135
      %p147 = scmp.eq.s32.totalorder %s29, 1
      %p148 = por %p146, %p147
      %p150 = scmp.ne.s32.totalorder %s135, %s149
      %p151 = scmp.eq.s32.totalorder %s29, 0
      %p152 = por %p150, %p151
      %s154 = sadd.s32 %s153, 1
      %p157 = scmp.eq.s32.totalorder %s23, 1
      %p158 = scmp.ne.s32.totalorder %s153, %s155
      %p159 = scmp.eq.s32.totalorder %s23, 0
      %p160 = por %p158, %p159
      %p161 = scmp.ne.s32.totalorder %s153, %s155
      %p162 = scmp.eq.s32.totalorder %s28, 1
      %p163 = por %p161, %p162
      %p164 = scmp.ne.s32.totalorder %s155, %s156
      %p165 = scmp.eq.s32.totalorder %s28, 0
      %p166 = por %p164, %p165
      %p167 = scmp.ne.s32.totalorder %s155, %s156
      %p168 = scmp.eq.s32.totalorder %s29, 1
      %p169 = por %p167, %p168
      %p171 = scmp.ne.s32.totalorder %s156, %s170
      %p172 = scmp.eq.s32.totalorder %s29, 0
      %p173 = por %p171, %p172
      %s175 = sadd.s32 %s174, 1
      %p178 = scmp.eq.s32.totalorder %s23, 1
      %p179 = scmp.ne.s32.totalorder %s174, %s176
      %p180 = scmp.eq.s32.totalorder %s23, 0
      %p181 = por %p179, %p180
      %p182 = scmp.ne.s32.totalorder %s174, %s176
      %p183 = scmp.eq.s32.totalorder %s28, 1
      %p184 = por %p182, %p183
      %p185 = scmp.ne.s32.totalorder %s176, %s177
      %p186 = scmp.eq.s32.totalorder %s28, 0
      %p187 = por %p185, %p186
      %p188 = scmp.ne.s32.totalorder %s176, %s177
      %p189 = scmp.eq.s32.totalorder %s29, 1
      %p190 = por %p188, %p189
      %p192 = scmp.ne.s32.totalorder %s177, %s191
      %p193 = scmp.eq.s32.totalorder %s29, 0
      %p194 = por %p192, %p193
      %s196 = sadd.s32 %s195, 1
      %p199 = scmp.eq.s32.totalorder %s23, 1
      %p200 = scmp.ne.s32.totalorder %s195, %s197
      %p201 = scmp.eq.s32.totalorder %s23, 0
      %p202 = por %p200, %p201
      %p203 = scmp.ne.s32.totalorder %s195, %s197
      %p204 = scmp.eq.s32.totalorder %s28, 1
      %p205 = por %p203, %p204
      %p206 = scmp.ne.s32.totalorder %s197, %s198
      %p207 = scmp.eq.s32.totalorder %s28, 0
      %p208 = por %p206, %p207
      %p209 = scmp.ne.s32.totalorder %s197, %s198
      %p210 = scmp.eq.s32.totalorder %s29, 1
      %p211 = por %p209, %p210
      %p213 = scmp.ne.s32.totalorder %s198, %s212
      %p214 = scmp.eq.s32.totalorder %s29, 0
      %p215 = por %p213, %p214
      %s217 = sadd.s32 %s216, 1
      %p220 = scmp.eq.s32.totalorder %s23, 1
      %p221 = scmp.ne.s32.totalorder %s216, %s218
      %p222 = scmp.eq.s32.totalorder %s23, 0
      %p223 = por %p221, %p222
      %p224 = scmp.ne.s32.totalorder %s216, %s218
      %p225 = scmp.eq.s32.totalorder %s28, 1
      %p226 = por %p224, %p225
      %p227 = scmp.ne.s32.totalorder %s218, %s219
      %p228 = scmp.eq.s32.totalorder %s28, 0
      %p229 = por %p227, %p228
      %p230 = scmp.ne.s32.totalorder %s218, %s219
      %p231 = scmp.eq.s32.totalorder %s29, 1
      %p232 = por %p230, %p231
      %p234 = scmp.ne.s32.totalorder %s219, %s233
      %p235 = scmp.eq.s32.totalorder %s29, 0
      %p236 = por %p234, %p235
      %s238 = sadd.s32 %s237, 1
      %p241 = scmp.eq.s32.totalorder %s23, 1
      %p242 = scmp.ne.s32.totalorder %s237, %s239
      %p243 = scmp.eq.s32.totalorder %s23, 0
      %p244 = por %p242, %p243
      %p245 = scmp.ne.s32.totalorder %s237, %s239
      %p246 = scmp.eq.s32.totalorder %s28, 1
      %p247 = por %p245, %p246
      %p248 = scmp.ne.s32.totalorder %s239, %s240
      %p249 = scmp.eq.s32.totalorder %s28, 0
      %p250 = por %p248, %p249
      %p251 = scmp.ne.s32.totalorder %s239, %s240
      %p252 = scmp.eq.s32.totalorder %s29, 1
      %p253 = por %p251, %p252
      %p255 = scmp.ne.s32.totalorder %s240, %s254
      %p256 = scmp.eq.s32.totalorder %s29, 0
      %p257 = por %p255, %p256
      %s259 = sadd.s32 %s258, 1
      %p262 = scmp.eq.s32.totalorder %s23, 1
      %p263 = scmp.ne.s32.totalorder %s258, %s260
      %p264 = scmp.eq.s32.totalorder %s23, 0
      %p265 = por %p263, %p264
      %p266 = scmp.ne.s32.totalorder %s258, %s260
      %p267 = scmp.eq.s32.totalorder %s28, 1
      %p268 = por %p266, %p267
      %p269 = scmp.ne.s32.totalorder %s260, %s261
      %p270 = scmp.eq.s32.totalorder %s28, 0
      %p271 = por %p269, %p270
      %p272 = scmp.ne.s32.totalorder %s260, %s261
      %p273 = scmp.eq.s32.totalorder %s29, 1
      %p274 = por %p272, %p273
      %p276 = scmp.ne.s32.totalorder %s261, %s275
      %p277 = scmp.eq.s32.totalorder %s29, 0
      %p278 = por %p276, %p277
      %s280 = sadd.s32 %s279, 1
      %p283 = scmp.eq.s32.totalorder %s23, 1
      %p284 = scmp.ne.s32.totalorder %s279, %s281
      %p285 = scmp.eq.s32.totalorder %s23, 0
      %p286 = por %p284, %p285
      %p287 = scmp.ne.s32.totalorder %s279, %s281
      %p288 = scmp.eq.s32.totalorder %s28, 1
      %p289 = por %p287, %p288
      %p290 = scmp.ne.s32.totalorder %s281, %s282
      %p291 = scmp.eq.s32.totalorder %s28, 0
      %p292 = por %p290, %p291
      %p293 = scmp.ne.s32.totalorder %s281, %s282
      %p294 = scmp.eq.s32.totalorder %s29, 1
      %p295 = por %p293, %p294
      %p297 = scmp.ne.s32.totalorder %s282, %s296
      %p298 = scmp.eq.s32.totalorder %s29, 0
      %p299 = por %p297, %p298
      %s301 = sadd.s32 %s300, 1
      %p304 = scmp.eq.s32.totalorder %s23, 1
      %p305 = scmp.ne.s32.totalorder %s300, %s302
      %p306 = scmp.eq.s32.totalorder %s23, 0
      %p307 = por %p305, %p306
      %p308 = scmp.ne.s32.totalorder %s300, %s302
      %p309 = scmp.eq.s32.totalorder %s28, 1
      %p310 = por %p308, %p309
      %p311 = scmp.ne.s32.totalorder %s302, %s303
      %p312 = scmp.eq.s32.totalorder %s28, 0
      %p313 = por %p311, %p312
      %p314 = scmp.ne.s32.totalorder %s302, %s303
      %p315 = scmp.eq.s32.totalorder %s29, 1
      %p316 = por %p314, %p315
      %p318 = scmp.ne.s32.totalorder %s303, %s317
      %p319 = scmp.eq.s32.totalorder %s29, 0
      %p320 = por %p318, %p319
      %s321 = ssub.s32 %s30, %s42
      %s322 = ssub.s32 %s31, %s38
      %s323 = sor.u32 %s321, %s322
      %p324 = scmp.eq.s32.totalorder %s323, 0
      %s326 = sadd.s32 %s325, 1
      %s327 = scalar_select %p324, %s325, %s326
      %p330 = pneg %p324
      %p331 = scmp.eq.s32.totalorder %s23, 1
      %p332 = por %p330, %p331
      %p333 = scmp.ne.s32.totalorder %s325, %s328
      %p334 = scmp.eq.s32.totalorder %s23, 0
      %p335 = por %p333, %p334
      %p336 = scmp.ne.s32.totalorder %s325, %s328
      %p337 = scmp.eq.s32.totalorder %s28, 1
      %p338 = por %p336, %p337
      %p339 = scmp.ne.s32.totalorder %s328, %s329
      %p340 = scmp.eq.s32.totalorder %s28, 0
      %p341 = por %p339, %p340
      %p342 = scmp.ne.s32.totalorder %s328, %s329
      %p343 = scmp.eq.s32.totalorder %s29, 1
      %p344 = por %p342, %p343
      %p346 = scmp.ne.s32.totalorder %s329, %s345
      %p347 = scmp.eq.s32.totalorder %s29, 0
      %p348 = por %p346, %p347
      %p349 = scmp.le.s32.totalorder 1, %s23
      %p350 = scmp.lt.s32.totalorder %s23, 3
      %p351 = pnand %p349, %p350
      %p352 = pneg %p351
      // Predicated region
      $region9: #{transformer_apply.2} parent=5 // pred_check
        _
      $region10: #{transformer_apply.2} parent=5 // pred_check_branch
        %354 = sbr.rel (%p351) target = $region12
      $region11: #{transformer_apply.2} parent=5 // pred_region
        %s355 = ssub.s32 %s23, 1
        // Predicated region
        $region13: #{transformer_apply.2} parent=11 // pred_check
          %p356 = pneg %p82
        $region14: #{transformer_apply.2} parent=11 // pred_check_branch
          %358 = sbr.rel (%p356) target = $region16
        $region15: #{transformer_apply.2} parent=11 // pred_region
          _
        $region16: #{transformer_apply.2} parent=11 // pred_fallthru
          _
        // Predicated region
        $region17: #{transformer_apply.2} parent=11 // pred_check
          %p359 = pneg %p103
        $region18: #{transformer_apply.2} parent=11 // pred_check_branch
          %361 = sbr.rel (%p359) target = $region20
        $region19: #{transformer_apply.2} parent=11 // pred_region
          _
        $region20: #{transformer_apply.2} parent=11 // pred_fallthru
          _
        // Predicated region
        $region21: #{transformer_apply.2} parent=11 // pred_check
          %p362 = pneg %p124
        $region22: #{transformer_apply.2} parent=11 // pred_check_branch
          %364 = sbr.rel (%p362) target = $region24
        $region23: #{transformer_apply.2} parent=11 // pred_region
          _
        $region24: #{transformer_apply.2} parent=11 // pred_fallthru
          _
        // Predicated region
        $region25: #{transformer_apply.2} parent=11 // pred_check
          %p365 = pneg %p145
        $region26: #{transformer_apply.2} parent=11 // pred_check_branch
          %367 = sbr.rel (%p365) target = $region28
        $region27: #{transformer_apply.2} parent=11 // pred_region
          %s369 = ssub.s32 16, 16
          %370 = vsyncadd [#allocation6], %s369
          %s372 = sshll.u32 [#allocation5], 4
          %s373 = int_to_ptr.vmem [resolvable:$true] %s372
          %375 = dma.hbm_to_vmem [thread:$0]  %s4, 16, %s373, [#allocation6]
        $region28: #{transformer_apply.2} parent=11 // pred_fallthru
          _
        // Predicated region
        $region29: #{transformer_apply.2} parent=11 // pred_check
          %p376 = pneg %p166
        $region30: #{transformer_apply.2} parent=11 // pred_check_branch
          %378 = sbr.rel (%p376) target = $region32
        $region31: #{transformer_apply.2} parent=11 // pred_region
          _
        $region32: #{transformer_apply.2} parent=11 // pred_fallthru
          _
        // Predicated region
        $region33: #{transformer_apply.2} parent=11 // pred_check
          %p379 = pneg %p187
        $region34: #{transformer_apply.2} parent=11 // pred_check_branch
          %381 = sbr.rel (%p379) target = $region36
        $region35: #{transformer_apply.2} parent=11 // pred_region
          %s383 = ssub.s32 16, 16
          %384 = vsyncadd [#allocation8], %s383
          %s386 = sshll.u32 [#allocation7], 4
          %s387 = int_to_ptr.vmem [resolvable:$true] %s386
          %389 = dma.hbm_to_vmem [thread:$0]  %s6, 16, %s387, [#allocation8]
        $region36: #{transformer_apply.2} parent=11 // pred_fallthru
          _
        // Predicated region
        $region37: #{transformer_apply.2} parent=11 // pred_check
          %p390 = pneg %p208
        $region38: #{transformer_apply.2} parent=11 // pred_check_branch
          %392 = sbr.rel (%p390) target = $region40
        $region39: #{transformer_apply.2} parent=11 // pred_region
          %s394 = ssub.s32 16, 16
          %395 = vsyncadd [#allocation8], %s394
          %s397 = sshll.u32 [#allocation9], 4
          %s398 = int_to_ptr.vmem [resolvable:$true] %s397
          %400 = dma.hbm_to_vmem [thread:$0]  %s7, 16, %s398, [#allocation8]
        $region40: #{transformer_apply.2} parent=11 // pred_fallthru
          _
        // Predicated region
        $region41: #{transformer_apply.2} parent=11 // pred_check
          %p401 = pneg %p229
        $region42: #{transformer_apply.2} parent=11 // pred_check_branch
          %403 = sbr.rel (%p401) target = $region44
        $region43: #{transformer_apply.2} parent=11 // pred_region
          %s405 = ssub.s32 16, 16
          %406 = vsyncadd [#allocation11], %s405
          %s408 = sshll.u32 [#allocation10], 4
          %s409 = int_to_ptr.vmem [resolvable:$true] %s408
          %411 = dma.hbm_to_vmem [thread:$0]  %s8, 16, %s409, [#allocation11]
        $region44: #{transformer_apply.2} parent=11 // pred_fallthru
          _
        // Predicated region
        $region45: #{transformer_apply.2} parent=11 // pred_check
          %p412 = pneg %p250
        $region46: #{transformer_apply.2} parent=11 // pred_check_branch
          %414 = sbr.rel (%p412) target = $region48
        $region47: #{transformer_apply.2} parent=11 // pred_region
          _
        $region48: #{transformer_apply.2} parent=11 // pred_fallthru
          _
        // Predicated region
        $region49: #{transformer_apply.2} parent=11 // pred_check
          %p415 = pneg %p271
        $region50: #{transformer_apply.2} parent=11 // pred_check_branch
          %417 = sbr.rel (%p415) target = $region52
        $region51: #{transformer_apply.2} parent=11 // pred_region
          %s419 = ssub.s32 16, 16
          %420 = vsyncadd [#allocation11], %s419
          %s422 = sshll.u32 [#allocation12], 4
          %s423 = int_to_ptr.vmem [resolvable:$true] %s422
          %425 = dma.hbm_to_vmem [thread:$0]  %s10, 16, %s423, [#allocation11]
        $region52: #{transformer_apply.2} parent=11 // pred_fallthru
          _
        // Predicated region
        $region53: #{transformer_apply.2} parent=11 // pred_check
          %p426 = pneg %p292
        $region54: #{transformer_apply.2} parent=11 // pred_check_branch
          %428 = sbr.rel (%p426) target = $region56
        $region55: #{transformer_apply.2} parent=11 // pred_region
          _
        $region56: #{transformer_apply.2} parent=11 // pred_fallthru
          _
        // Predicated region
        $region57: #{transformer_apply.2} parent=11 // pred_check
          %p429 = pneg %p313
        $region58: #{transformer_apply.2} parent=11 // pred_check_branch
          %431 = sbr.rel (%p429) target = $region60
        $region59: #{transformer_apply.2} parent=11 // pred_region
          %s433 = ssub.s32 16, 16
          %434 = vsyncadd [#allocation14], %s433
          %s436 = sshll.u32 [#allocation13], 4
          %s437 = int_to_ptr.vmem [resolvable:$true] %s436
          %439 = dma.hbm_to_vmem [thread:$0]  %s12, 16, %s437, [#allocation14]
        $region60: #{transformer_apply.2} parent=11 // pred_fallthru
          _
      $region12: #{transformer_apply.2} parent=5 // pred_fallthru
        _
      %p440 = scmp.lt.s32.totalorder %s23, 2
      // Predicated region
      $region61: #{transformer_apply.2} parent=5 // pred_check
        %p441 = pneg %p440
      $region62: #{transformer_apply.2} parent=5 // pred_check_branch
        %443 = sbr.rel (%p441) target = $region64
      $region63: #{transformer_apply.2} parent=5 // pred_region
        // Predicated region
        $region65: #{transformer_apply.2} parent=63 // pred_check
          %p444 = pneg %p55
        $region66: #{transformer_apply.2} parent=63 // pred_check_branch
          %446 = sbr.rel (%p444) target = $region68
        $region67: #{transformer_apply.2} parent=63 // pred_region
          %p447 = scmp.lt.s32.totalorder %s30, 1
          %s448 = scalar_select %p447, %s30, 1
          %s449 = smul.addr %s448, 8
          %s450 = scalar_lea.vmem %s0, %s449
        $region68: #{transformer_apply.2} parent=63 // pred_fallthru
          _
      $region64: #{transformer_apply.2} parent=5 // pred_fallthru
        _
      %p451 = scmp.le.s32.totalorder 1, %s23
      %p452 = scmp.lt.s32.totalorder %s23, 3
      %p453 = pnand %p451, %p452
      %p454 = pneg %p453
      // Predicated region
      $region69: #{transformer_apply.2} parent=5 // pred_check
        _
      $region70: #{transformer_apply.2} parent=5 // pred_check_branch
        %456 = sbr.rel (%p453) target = $region72
      $region71: #{transformer_apply.2} parent=5 // pred_region
        %s457 = ssub.s32 %s23, 1
        // Predicated region
        $region73: #{transformer_apply.2} parent=71 // pred_check
          %p458 = pneg %p145
        $region74: #{transformer_apply.2} parent=71 // pred_check_branch
          %460 = sbr.rel (%p458) target = $region76
        $region75: #{transformer_apply.2} parent=71 // pred_region
          %461 = dma.done [#allocation6], 16
        $region76: #{transformer_apply.2} parent=71 // pred_fallthru
          _
        // Predicated region
        $region77: #{transformer_apply.2} parent=71 // pred_check
          %p462 = pneg %p187
        $region78: #{transformer_apply.2} parent=71 // pred_check_branch
          %464 = sbr.rel (%p462) target = $region80
        $region79: #{transformer_apply.2} parent=71 // pred_region
          %465 = dma.done [#allocation8], 16
        $region80: #{transformer_apply.2} parent=71 // pred_fallthru
          _
        // Predicated region
        $region81: #{transformer_apply.2} parent=71 // pred_check
          %p466 = pneg %p208
        $region82: #{transformer_apply.2} parent=71 // pred_check_branch
          %468 = sbr.rel (%p466) target = $region84
        $region83: #{transformer_apply.2} parent=71 // pred_region
          %469 = dma.done [#allocation8], 16
        $region84: #{transformer_apply.2} parent=71 // pred_fallthru
          _
        // Predicated region
        $region85: #{transformer_apply.2} parent=71 // pred_check
          %p470 = pneg %p229
        $region86: #{transformer_apply.2} parent=71 // pred_check_branch
          %472 = sbr.rel (%p470) target = $region88
        $region87: #{transformer_apply.2} parent=71 // pred_region
          %473 = dma.done [#allocation11], 16
        $region88: #{transformer_apply.2} parent=71 // pred_fallthru
          _
        // Predicated region
        $region89: #{transformer_apply.2} parent=71 // pred_check
          %p474 = pneg %p271
        $region90: #{transformer_apply.2} parent=71 // pred_check_branch
          %476 = sbr.rel (%p474) target = $region92
        $region91: #{transformer_apply.2} parent=71 // pred_region
          %477 = dma.done [#allocation11], 16
        $region92: #{transformer_apply.2} parent=71 // pred_fallthru
          _
        // Predicated region
        $region93: #{transformer_apply.2} parent=71 // pred_check
          %p478 = pneg %p313
        $region94: #{transformer_apply.2} parent=71 // pred_check_branch
          %480 = sbr.rel (%p478) target = $region96
        $region95: #{transformer_apply.2} parent=71 // pred_region
          %481 = dma.done [#allocation14], 16
        $region96: #{transformer_apply.2} parent=71 // pred_fallthru
          _
        %p482 = scmp.lt.s32.totalorder %s32, 1
        %s483 = scalar_select %p482, %s32, 1
        %s484 = smul.addr %s483, 8
        %s485 = scalar_lea.vmem %s0, %s484
        %p486 = pneg %p61
        %p487 = pneg %p58
        %p488 = pneg %p82
        %p489 = pneg %p79
        %p490 = pneg %p103
        %p491 = pneg %p100
        %p492 = pneg %p124
        %p493 = pneg %p121
        %p494 = pneg %p145
        %p495 = pneg %p142
        %p496 = pneg %p166
        %p497 = pneg %p163
        %p498 = pneg %p187
        %p499 = pneg %p184
        %p500 = pneg %p208
        %p501 = pneg %p205
        %p502 = pneg %p229
        %p503 = pneg %p226
        %p504 = pneg %p250
        %p505 = pneg %p247
        %p506 = pneg %p271
        %p507 = pneg %p268
        %p508 = pneg %p292
        %p509 = pneg %p289
        %p510 = pneg %p313
        %p511 = pneg %p310
        %p512 = pneg %p341
        %p513 = pneg %p338
        %p514 = scmp.lt.s32.totalorder %s32, 1
        %s515 = scalar_select %p514, %s32, 1
        %p516 = scmp.lt.s32.totalorder %s33, 0
        %s517 = scalar_select %p516, %s33, 0
        %s518 = sadd.s32 %s517, %s515
        %s519 = smul.addr %s518, 8
        %s520 = scalar_lea.vmem %s13, %s519
        %p521 = scmp.lt.s32.totalorder %s32, 1
        %s522 = scalar_select %p521, %s32, 1
        %s523 = smul.addr %s522, 8
        %s524 = scalar_lea.vmem %s0, %s523
        %p525 = scmp.lt.s32.totalorder %s32, 1
        %s526 = scalar_select %p525, %s32, 1
        %p527 = scmp.lt.s32.totalorder %s33, 0
        %s528 = scalar_select %p527, %s33, 0
        %s529 = sadd.s32 %s528, %s526
        %s530 = smul.addr %s529, 8
        %s531 = scalar_lea.vmem %s13, %s530
        %s533 = smul.u32 %s33, 8
        %p534 = scmp.eq.s32.totalorder %s33, 0
        // Predicated region
        $region97: #{transformer_apply.2} parent=71 // pred_check
          %p535 = pneg %p534
        $region98: #{transformer_apply.2} parent=71 // pred_check_branch
          %537 = sbr.rel (%p535) target = $region100
        $region99: #{transformer_apply.2} parent=71 // pred_region
          %v538 = vld [vmem:[%s524] sm:$0xff]
          %v539 = vld [vmem:[%s1] sm:$0x1]
          %v540 = vld [vmem:[%s2] sm:$0x1]
          %vm541 = vcmask 261120
          %v542 = vsel %vm541, %v538, 0.0
          %543 = vadd.xlane.f32.xlu0 %v542
          %v544 = vpop.xlane.xlu0 %543
          %v545 = vrcp.pop 32.0
          %v546 = vmul.f32 %v544, %v545
          %v547 = vsub.f32 %v538, %v546
          %v548 = vmul.f32 %v547, %v547
          %v549 = vsel %vm541, %v548, 0.0
          %550 = vadd.xlane.f32.xlu0 %v549
          %v551 = vpop.xlane.xlu0 %550
          %v552 = vmul.f32 %v551, %v545
          %v553 = vadd.f32 %v552, 1e-05
          %v554 = vrsqrt.pop %v553
          %v555 = vmul.f32 %v547, %v554
          %v557 = vlaneseq
          %v558 = vshrl.u32 %v557, 7
          %v559 = vsub.s32 0, %v558
          %v560 = vrot.slane %v539, %v559
          %v562 = vmul.f32 %v555, %v560
          %v564 = vlaneseq
          %v565 = vshrl.u32 %v564, 7
          %v566 = vsub.s32 0, %v565
          %v567 = vrot.slane %v540, %v566
          %v569 = vadd.f32 %v562, %v567
          %v570 = vpack.c.bf16 %v569, %v569
          %vm571 = vcmask 257024
          %572 = vst.msk [vmem:[#allocation2] sm:$0xf] %vm571, %v570
          %v573 = vld [vmem:[%s3] sm:$0xf]
          %v574 = vld [vmem:[%s3 + $0x4] sm:$0xf]
          %v575 = vld [vmem:[%s3 + $0x8] sm:$0xf]
          %v576 = vld [vmem:[%s3 + $0xc] sm:$0xf]
          %v577 = vld [vmem:[#allocation5] sm:$0x1]
          %v579 = vlaneseq
          %v580 = vshrl.u32 %v579, 7
          %v581 = vsub.s32 0, %v580
          %v582 = vrot.slane %v577, %v581
          %v587 = vunpack.c.l.b16 %v573
          %v588 = vunpack.c.l.b16 %v574
          %v589 = vunpack.c.l.b16 %v575
          %v590 = vunpack.c.l.b16 %v576
          %v591 = vpack.c.b16 %v588, %v587
          %v592 = vpack.c.b16 %v590, %v589
          %593 = vrot.lane.b32.xlu0 %v591, 96
          %v594 = vpop.permute.xlu0 %593
          %595 = vrot.lane.b32.xlu0 %v592, 96
          %v596 = vpop.permute.xlu0 %595
          %599 = vrot.lane.b32.xlu0 %v582, 96
          %v600 = vpop.permute.xlu0 %599
          %v603 = vsel %vm541, %v570, 0
          %605 = vmatprep.subr.bf16.mxu0 0
          %606 = vmatpush1.bf16.msra.mxu0 %v594
          %607 = vmatprep.subr.bf16.mxu0 0
          %608 = vmatpush1.bf16.msra.mxu0 %v596
          %609 = vmatprep.subr.bf16.mxu0 0
          %610 = vmatpush1.bf16.msra.mxu0 0
          %611 = vmatprep.subr.bf16.mxu0 0
          %612 = vmatpush1.bf16.msra.mxu0 0
          %613 = vmatprep.subr.bf16.mxu0 0
          %614 = vmatpush1.bf16.msra.mxu0 0
          %615 = vmatprep.subr.bf16.mxu0 0
          %616 = vmatpush1.bf16.msra.mxu0 0
          %617 = vmatprep.subr.bf16.mxu0 0
          %618 = vmatpush1.bf16.msra.mxu0 0
          %619 = vmatprep.subr.bf16.mxu0 0
          %620 = vmatpush1.bf16.msra.mxu0 0
          %621 = vmatprep.subr.bf16.mxu0 0
          %622 = vmatpush1.bf16.msra.mxu0 0
          %623 = vmatprep.subr.bf16.mxu0 0
          %624 = vmatpush1.bf16.msra.mxu0 0
          %625 = vmatprep.subr.bf16.mxu0 0
          %626 = vmatpush1.bf16.msra.mxu0 0
          %627 = vmatprep.subr.bf16.mxu0 0
          %628 = vmatpush1.bf16.msra.mxu0 0
          %629 = vmatprep.subr.bf16.mxu0 0
          %630 = vmatpush1.bf16.msra.mxu0 0
          %631 = vmatprep.subr.bf16.mxu0 0
          %632 = vmatpush1.bf16.msra.mxu0 0
          %633 = vmatprep.subr.bf16.mxu0 0
          %634 = vmatpush1.bf16.msra.mxu0 0
          %635 = vmatprep.subr.bf16.mxu0 0
          %636 = vmatpush1.bf16.msra.mxu0 0
          %637 = vmatprep.mubr.bf16.mxu0 0
          %638 = vmatmul.mubr.bf16.gmra.mrb[0].mxu0 %v603
          %v639 = vpop.f32.mrb[0].mxu0
          %v640 = vadd.f32 %v600, %v639
          %v641 = vpop.f32.mrb[0].mxu0
          %v642 = vpop.f32.mrb[0].mxu0
          %v643 = vpop.f32.mrb[0].mxu0
          %644 = vdwg.mxu0
          %v645 = vpack.c.bf16 %v640, %v640
          %647 = vrot.lane.b32.xlu0 %v645, 120
          %v648 = vpop.permute.xlu0 %647
          %650 = vrot.lane.b32.xlu0 %v645, 112
          %v651 = vpop.permute.xlu0 %650
          %653 = vrot.lane.b32.xlu0 %v645, 104
          %v654 = vpop.permute.xlu0 %653
          %vm656 = vcmask 60416
          %657 = vst.msk [vmem:[#allocation3] sm:$0xf] %vm656, %v645
          %658 = vst.msk [vmem:[#allocation3 + $0x4] sm:$0xf] %vm656, %v648
          %659 = vst.msk [vmem:[#allocation3 + $0x8] sm:$0xf] %vm656, %v651
          %660 = vst.msk [vmem:[#allocation3 + $0xc] sm:$0xf] %vm656, %v654
          %v661 = vunpack.c.l.b16 %v645
          %v662 = vunpack.c.l.b16 %v648
          %v663 = vunpack.c.l.b16 %v651
          %v664 = vunpack.c.l.b16 %v654
          %v665 = vpack.c.b16 %v661, %v661
          %v666 = vpack.c.b16 %v662, %v662
          %v667 = vpack.c.b16 %v663, %v663
          %v668 = vpack.c.b16 %v664, %v664
          %669 = vrot.lane.b32.xlu0 %v665, 96
          %v670 = vpop.permute.xlu0 %669
          %671 = vrot.lane.b32.xlu0 %v666, 96
          %v672 = vpop.permute.xlu0 %671
          %673 = vrot.lane.b32.xlu0 %v667, 96
          %v674 = vpop.permute.xlu0 %673
          %675 = vrot.lane.b32.xlu0 %v668, 96
          %v676 = vpop.permute.xlu0 %675
          %681 = vst.msk [vmem:[#allocation4] sm:$0xf] %vm656, %v670
          %682 = vst.msk [vmem:[#allocation4 + $0x4] sm:$0xf] %vm656, %v672
          %683 = vst.msk [vmem:[#allocation4 + $0x8] sm:$0xf] %vm656, %v674
          %684 = vst.msk [vmem:[#allocation4 + $0xc] sm:$0xf] %vm656, %v676
        $region100: #{transformer_apply.2} parent=71 // pred_fallthru
          _
        %s685 = scalar_lea.vmem %s524, %s533
        %v686 = vld [vmem:[%s685] sm:$0xff]
        %s687 = sshra.s32 %s533, 3
        %s688 = sand.u32 %s533, 7
        %s689 = smul.addr %s687, 4
        %s690 = scalar_lea.vmem [#allocation2], %s689
        %v691 = vld [vmem:[%s690] sm:$0xf]
        %v692 = vld [vmem:[%s3] sm:$0xf]
        %v693 = vld [vmem:[%s3 + $0x4] sm:$0xf]
        %v694 = vld [vmem:[%s3 + $0x8] sm:$0xf]
        %v695 = vld [vmem:[%s3 + $0xc] sm:$0xf]
        %v696 = vld [vmem:[#allocation5] sm:$0x1]
        %v698 = vlaneseq
        %v699 = vshrl.u32 %v698, 7
        %v700 = vsub.s32 0, %v699
        %v701 = vrot.slane %v696, %v700
        %v707 = vunpack.c.l.b16 %v692
        %v708 = vunpack.c.l.b16 %v693
        %v709 = vunpack.c.l.b16 %v694
        %v710 = vunpack.c.l.b16 %v695
        %v711 = vpack.c.b16 %v708, %v707
        %v712 = vpack.c.b16 %v710, %v709
        %vm715 = vcmask 261120
        %v717 = vsel %vm715, %v691, 0
        %719 = vmatprep.subr.bf16.mxu0 0
        %720 = vmatpush1.bf16.msra.mxu0 %v711
        %721 = vmatprep.subr.bf16.mxu0 0
        %722 = vmatpush1.bf16.msra.mxu0 %v712
        %723 = vmatprep.subr.bf16.mxu0 0
        %724 = vmatpush1.bf16.msra.mxu0 0
        %725 = vmatprep.subr.bf16.mxu0 0
        %726 = vmatpush1.bf16.msra.mxu0 0
        %727 = vmatprep.subr.bf16.mxu0 0
        %728 = vmatpush1.bf16.msra.mxu0 0
        %729 = vmatprep.subr.bf16.mxu0 0
        %730 = vmatpush1.bf16.msra.mxu0 0
        %731 = vmatprep.subr.bf16.mxu0 0
        %732 = vmatpush1.bf16.msra.mxu0 0
        %733 = vmatprep.subr.bf16.mxu0 0
        %734 = vmatpush1.bf16.msra.mxu0 0
        %735 = vmatprep.subr.bf16.mxu0 0
        %736 = vmatpush1.bf16.msra.mxu0 0
        %737 = vmatprep.subr.bf16.mxu0 0
        %738 = vmatpush1.bf16.msra.mxu0 0
        %739 = vmatprep.subr.bf16.mxu0 0
        %740 = vmatpush1.bf16.msra.mxu0 0
        %741 = vmatprep.subr.bf16.mxu0 0
        %742 = vmatpush1.bf16.msra.mxu0 0
        %743 = vmatprep.subr.bf16.mxu0 0
        %744 = vmatpush1.bf16.msra.mxu0 0
        %745 = vmatprep.subr.bf16.mxu0 0
        %746 = vmatpush1.bf16.msra.mxu0 0
        %747 = vmatprep.subr.bf16.mxu0 0
        %748 = vmatpush1.bf16.msra.mxu0 0
        %749 = vmatprep.subr.bf16.mxu0 0
        %750 = vmatpush1.bf16.msra.mxu0 0
        %751 = vmatprep.mubr.bf16.mxu0 0
        %752 = vmatmul.mubr.bf16.gmra.mrb[0].mxu0 %v717
        %v753 = vpop.f32.mrb[0].mxu0
        %v754 = vadd.f32 %v701, %v753
        %v755 = vpop.f32.mrb[0].mxu0
        %v756 = vpop.f32.mrb[0].mxu0
        %v757 = vpop.f32.mrb[0].mxu0
        %758 = vdwg.mxu0
        %v759 = vpack.c.bf16 %v754, %v754
        %761 = vrot.lane.b32.xlu0 %v759, 120
        %v762 = vpop.permute.xlu0 %761
        %763 = vrot.lane.b32.xlu0 %v759, 112
        %v764 = vpop.permute.xlu0 %763
        %765 = vrot.lane.b32.xlu0 %v759, 104
        %v766 = vpop.permute.xlu0 %765
        %v767 = vld [vmem:[#allocation3] sm:$0xf]
        %v768 = vld [vmem:[#allocation3 + $0x4] sm:$0xf]
        %v769 = vld [vmem:[#allocation3 + $0x8] sm:$0xf]
        %v770 = vld [vmem:[#allocation3 + $0xc] sm:$0xf]
        %v771 = vld [vmem:[#allocation4] sm:$0xf]
        %v772 = vld [vmem:[#allocation4 + $0x4] sm:$0xf]
        %v773 = vld [vmem:[#allocation4 + $0x8] sm:$0xf]
        %v774 = vld [vmem:[#allocation4 + $0xc] sm:$0xf]
        %vm775 = vcmask 64512
        %v777 = vsel %vm775, %v759, 0
        %v780 = vsel %vm775, %v767, 0
        %782 = vmatprep.subr.bf16.mxu0 0
        %783 = vmatpush1.bf16.xpose.msra.mxu0 %v780
        %784 = vmatprep.subr.bf16.mxu0 0
        %785 = vmatpush1.bf16.xpose.msra.mxu0 0
        %786 = vmatprep.subr.bf16.mxu0 0
        %787 = vmatpush1.bf16.xpose.msra.mxu0 0
        %788 = vmatprep.subr.bf16.mxu0 0
        %789 = vmatpush1.bf16.xpose.msra.mxu0 0
        %790 = vmatprep.subr.bf16.mxu0 0
        %791 = vmatpush1.bf16.xpose.msra.mxu0 0
        %792 = vmatprep.subr.bf16.mxu0 0
        %793 = vmatpush1.bf16.xpose.msra.mxu0 0
        %794 = vmatprep.subr.bf16.mxu0 0
        %795 = vmatpush1.bf16.xpose.msra.mxu0 0
        %796 = vmatprep.subr.bf16.mxu0 0
        %797 = vmatpush1.bf16.xpose.msra.mxu0 0
        %798 = vmatprep.subr.bf16.mxu0 0
        %799 = vmatpush1.bf16.xpose.msra.mxu0 0
        %800 = vmatprep.subr.bf16.mxu0 0
        %801 = vmatpush1.bf16.xpose.msra.mxu0 0
        %802 = vmatprep.subr.bf16.mxu0 0
        %803 = vmatpush1.bf16.xpose.msra.mxu0 0
        %804 = vmatprep.subr.bf16.mxu0 0
        %805 = vmatpush1.bf16.xpose.msra.mxu0 0
        %806 = vmatprep.subr.bf16.mxu0 0
        %807 = vmatpush1.bf16.xpose.msra.mxu0 0
        %808 = vmatprep.subr.bf16.mxu0 0
        %809 = vmatpush1.bf16.xpose.msra.mxu0 0
        %810 = vmatprep.subr.bf16.mxu0 0
        %811 = vmatpush1.bf16.xpose.msra.mxu0 0
        %812 = vmatprep.subr.bf16.mxu0 0
        %813 = vmatpush1.bf16.xpose.msra.mxu0 0
        %814 = vmatprep.mubr.bf16.mxu0 0
        %815 = vmatmul.mubr.bf16.gmra.mrb[0].mxu0 %v777
        %v816 = vpop.f32.mrb[0].mxu0
        %v817 = vadd.f32 0.0, %v816
        %v818 = vpop.f32.mrb[0].mxu0
        %v819 = vpop.f32.mrb[0].mxu0
        %v820 = vpop.f32.mrb[0].mxu0
        %821 = vdwg.mxu0
        %v823 = vsel %vm775, %v762, 0
        %v826 = vsel %vm775, %v768, 0
        %828 = vmatprep.subr.bf16.mxu0 0
        %829 = vmatpush1.bf16.xpose.msra.mxu0 %v826
        %830 = vmatprep.subr.bf16.mxu0 0
        %831 = vmatpush1.bf16.xpose.msra.mxu0 0
        %832 = vmatprep.subr.bf16.mxu0 0
        %833 = vmatpush1.bf16.xpose.msra.mxu0 0
        %834 = vmatprep.subr.bf16.mxu0 0
        %835 = vmatpush1.bf16.xpose.msra.mxu0 0
        %836 = vmatprep.subr.bf16.mxu0 0
        %837 = vmatpush1.bf16.xpose.msra.mxu0 0
        %838 = vmatprep.subr.bf16.mxu0 0
        %839 = vmatpush1.bf16.xpose.msra.mxu0 0
        %840 = vmatprep.subr.bf16.mxu0 0
        %841 = vmatpush1.bf16.xpose.msra.mxu0 0
        %842 = vmatprep.subr.bf16.mxu0 0
        %843 = vmatpush1.bf16.xpose.msra.mxu0 0
        %844 = vmatprep.subr.bf16.mxu0 0
        %845 = vmatpush1.bf16.xpose.msra.mxu0 0
        %846 = vmatprep.subr.bf16.mxu0 0
        %847 = vmatpush1.bf16.xpose.msra.mxu0 0
        %848 = vmatprep.subr.bf16.mxu0 0
        %849 = vmatpush1.bf16.xpose.msra.mxu0 0
        %850 = vmatprep.subr.bf16.mxu0 0
        %851 = vmatpush1.bf16.xpose.msra.mxu0 0
        %852 = vmatprep.subr.bf16.mxu0 0
        %853 = vmatpush1.bf16.xpose.msra.mxu0 0
        %854 = vmatprep.subr.bf16.mxu0 0
        %855 = vmatpush1.bf16.xpose.msra.mxu0 0
        %856 = vmatprep.subr.bf16.mxu0 0
        %857 = vmatpush1.bf16.xpose.msra.mxu0 0
        %858 = vmatprep.subr.bf16.mxu0 0
        %859 = vmatpush1.bf16.xpose.msra.mxu0 0
        %860 = vmatprep.mubr.bf16.mxu0 0
        %861 = vmatmul.mubr.bf16.gmra.mrb[0].mxu0 %v823
        %v862 = vpop.f32.mrb[0].mxu0
        %v863 = vadd.f32 0.0, %v862
        %v864 = vpop.f32.mrb[0].mxu0
        %v865 = vpop.f32.mrb[0].mxu0
        %v866 = vpop.f32.mrb[0].mxu0
        %867 = vdwg.mxu0
        %v869 = vsel %vm775, %v764, 0
        %v872 = vsel %vm775, %v769, 0
        %874 = vmatprep.subr.bf16.mxu0 0
        %875 = vmatpush1.bf16.xpose.msra.mxu0 %v872
        %876 = vmatprep.subr.bf16.mxu0 0
        %877 = vmatpush1.bf16.xpose.msra.mxu0 0
        %878 = vmatprep.subr.bf16.mxu0 0
        %879 = vmatpush1.bf16.xpose.msra.mxu0 0
        %880 = vmatprep.subr.bf16.mxu0 0
        %881 = vmatpush1.bf16.xpose.msra.mxu0 0
        %882 = vmatprep.subr.bf16.mxu0 0
        %883 = vmatpush1.bf16.xpose.msra.mxu0 0
        %884 = vmatprep.subr.bf16.mxu0 0
        %885 = vmatpush1.bf16.xpose.msra.mxu0 0
        %886 = vmatprep.subr.bf16.mxu0 0
        %887 = vmatpush1.bf16.xpose.msra.mxu0 0
        %888 = vmatprep.subr.bf16.mxu0 0
        %889 = vmatpush1.bf16.xpose.msra.mxu0 0
        %890 = vmatprep.subr.bf16.mxu0 0
        %891 = vmatpush1.bf16.xpose.msra.mxu0 0
        %892 = vmatprep.subr.bf16.mxu0 0
        %893 = vmatpush1.bf16.xpose.msra.mxu0 0
        %894 = vmatprep.subr.bf16.mxu0 0
        %895 = vmatpush1.bf16.xpose.msra.mxu0 0
        %896 = vmatprep.subr.bf16.mxu0 0
        %897 = vmatpush1.bf16.xpose.msra.mxu0 0
        %898 = vmatprep.subr.bf16.mxu0 0
        %899 = vmatpush1.bf16.xpose.msra.mxu0 0
        %900 = vmatprep.subr.bf16.mxu0 0
        %901 = vmatpush1.bf16.xpose.msra.mxu0 0
        %902 = vmatprep.subr.bf16.mxu0 0
        %903 = vmatpush1.bf16.xpose.msra.mxu0 0
        %904 = vmatprep.subr.bf16.mxu0 0
        %905 = vmatpush1.bf16.xpose.msra.mxu0 0
        %906 = vmatprep.mubr.bf16.mxu0 0
        %907 = vmatmul.mubr.bf16.gmra.mrb[0].mxu0 %v869
        %v908 = vpop.f32.mrb[0].mxu0
        %v909 = vadd.f32 0.0, %v908
        %v910 = vpop.f32.mrb[0].mxu0
        %v911 = vpop.f32.mrb[0].mxu0
        %v912 = vpop.f32.mrb[0].mxu0
        %913 = vdwg.mxu0
        %v915 = vsel %vm775, %v766, 0
        %v918 = vsel %vm775, %v770, 0
        %920 = vmatprep.subr.bf16.mxu0 0
        %921 = vmatpush1.bf16.xpose.msra.mxu0 %v918
        %922 = vmatprep.subr.bf16.mxu0 0
        %923 = vmatpush1.bf16.xpose.msra.mxu0 0
        %924 = vmatprep.subr.bf16.mxu0 0
        %925 = vmatpush1.bf16.xpose.msra.mxu0 0
        %926 = vmatprep.subr.bf16.mxu0 0
        %927 = vmatpush1.bf16.xpose.msra.mxu0 0
        %928 = vmatprep.subr.bf16.mxu0 0
        %929 = vmatpush1.bf16.xpose.msra.mxu0 0
        %930 = vmatprep.subr.bf16.mxu0 0
        %931 = vmatpush1.bf16.xpose.msra.mxu0 0
        %932 = vmatprep.subr.bf16.mxu0 0
        %933 = vmatpush1.bf16.xpose.msra.mxu0 0
        %934 = vmatprep.subr.bf16.mxu0 0
        %935 = vmatpush1.bf16.xpose.msra.mxu0 0
        %936 = vmatprep.subr.bf16.mxu0 0
        %937 = vmatpush1.bf16.xpose.msra.mxu0 0
        %938 = vmatprep.subr.bf16.mxu0 0
        %939 = vmatpush1.bf16.xpose.msra.mxu0 0
        %940 = vmatprep.subr.bf16.mxu0 0
        %941 = vmatpush1.bf16.xpose.msra.mxu0 0
        %942 = vmatprep.subr.bf16.mxu0 0
        %943 = vmatpush1.bf16.xpose.msra.mxu0 0
        %944 = vmatprep.subr.bf16.mxu0 0
        %945 = vmatpush1.bf16.xpose.msra.mxu0 0
        %946 = vmatprep.subr.bf16.mxu0 0
        %947 = vmatpush1.bf16.xpose.msra.mxu0 0
        %948 = vmatprep.subr.bf16.mxu0 0
        %949 = vmatpush1.bf16.xpose.msra.mxu0 0
        %950 = vmatprep.subr.bf16.mxu0 0
        %951 = vmatpush1.bf16.xpose.msra.mxu0 0
        %952 = vmatprep.mubr.bf16.mxu0 0
        %953 = vmatmul.mubr.bf16.gmra.mrb[0].mxu0 %v915
        %v954 = vpop.f32.mrb[0].mxu0
        %v955 = vadd.f32 0.0, %v954
        %v956 = vpop.f32.mrb[0].mxu0
        %v957 = vpop.f32.mrb[0].mxu0
        %v958 = vpop.f32.mrb[0].mxu0
        %959 = vdwg.mxu0
        %v960 = vsel %vm775, %v817, -inf
        %961 = vmax.xlane.f32.xlu0 %v960
        %v962 = vpop.xlane.xlu0 %961
        %v963 = vsel %vm775, %v863, -inf
        %964 = vmax.xlane.f32.xlu0 %v963
        %v965 = vpop.xlane.xlu0 %964
        %v966 = vsel %vm775, %v909, -inf
        %967 = vmax.xlane.f32.xlu0 %v966
        %v968 = vpop.xlane.xlu0 %967
        %v969 = vsel %vm775, %v955, -inf
        %970 = vmax.xlane.f32.xlu0 %v969
        %v971 = vpop.xlane.xlu0 %970
        %v972 = vsub.f32 %v817, %v962
        %v973 = vsub.f32 %v863, %v965
        %v974 = vsub.f32 %v909, %v968
        %v975 = vsub.f32 %v955, %v971
        %v976 = vmul.f32 %v972, 1.442695
        %v977 = vpow.pop %v976
        %v978 = vmul.f32 %v973, 1.442695
        %v979 = vpow.pop %v978
        %v980 = vmul.f32 %v974, 1.442695
        %v981 = vpow.pop %v980
        %v982 = vmul.f32 %v975, 1.442695
        %v983 = vpow.pop %v982
        %v984 = vsel %vm775, %v977, 0.0
        %985 = vadd.xlane.f32.xlu0 %v984
        %v986 = vpop.xlane.xlu0 %985
        %v987 = vsel %vm775, %v979, 0.0
        %988 = vadd.xlane.f32.xlu0 %v987
        %v989 = vpop.xlane.xlu0 %988
        %v990 = vsel %vm775, %v981, 0.0
        %991 = vadd.xlane.f32.xlu0 %v990
        %v992 = vpop.xlane.xlu0 %991
        %v993 = vsel %vm775, %v983, 0.0
        %994 = vadd.xlane.f32.xlu0 %v993
        %v995 = vpop.xlane.xlu0 %994
        %v996 = vrcp.pop %v986
        %v997 = vrcp.pop %v989
        %v998 = vrcp.pop %v992
        %v999 = vrcp.pop %v995
        %v1000 = vmul.f32 %v977, %v996
        %v1001 = vmul.f32 %v979, %v997
        %v1002 = vmul.f32 %v981, %v998
        %v1003 = vmul.f32 %v983, %v999
        %v1004 = vpack.c.bf16 %v1000, %v1000
        %v1005 = vpack.c.bf16 %v1001, %v1001
        %v1006 = vpack.c.bf16 %v1002, %v1002
        %v1007 = vpack.c.bf16 %v1003, %v1003
        %v1009 = vsel %vm775, %v1004, 0
        %vm1011 = vcmask 1043456
        %v1013 = vsel %vm1011, %v771, 0
        %1015 = vmatprep.subr.bf16.mxu0 0
        %1016 = vmatpush1.bf16.msra.mxu0 %v1013
        %1017 = vmatprep.subr.bf16.mxu0 0
        %1018 = vmatpush1.bf16.msra.mxu0 0
        %1019 = vmatprep.subr.bf16.mxu0 0
        %1020 = vmatpush1.bf16.msra.mxu0 0
        %1021 = vmatprep.subr.bf16.mxu0 0
        %1022 = vmatpush1.bf16.msra.mxu0 0
        %1023 = vmatprep.subr.bf16.mxu0 0
        %1024 = vmatpush1.bf16.msra.mxu0 0
        %1025 = vmatprep.subr.bf16.mxu0 0
        %1026 = vmatpush1.bf16.msra.mxu0 0
        %1027 = vmatprep.subr.bf16.mxu0 0
        %1028 = vmatpush1.bf16.msra.mxu0 0
        %1029 = vmatprep.subr.bf16.mxu0 0
        %1030 = vmatpush1.bf16.msra.mxu0 0
        %1031 = vmatprep.subr.bf16.mxu0 0
        %1032 = vmatpush1.bf16.msra.mxu0 0
        %1033 = vmatprep.subr.bf16.mxu0 0
        %1034 = vmatpush1.bf16.msra.mxu0 0
        %1035 = vmatprep.subr.bf16.mxu0 0
        %1036 = vmatpush1.bf16.msra.mxu0 0
        %1037 = vmatprep.subr.bf16.mxu0 0
        %1038 = vmatpush1.bf16.msra.mxu0 0
        %1039 = vmatprep.subr.bf16.mxu0 0
        %1040 = vmatpush1.bf16.msra.mxu0 0
        %1041 = vmatprep.subr.bf16.mxu0 0
        %1042 = vmatpush1.bf16.msra.mxu0 0
        %1043 = vmatprep.subr.bf16.mxu0 0
        %1044 = vmatpush1.bf16.msra.mxu0 0
        %1045 = vmatprep.subr.bf16.mxu0 0
        %1046 = vmatpush1.bf16.msra.mxu0 0
        %1047 = vmatprep.mubr.bf16.mxu0 0
        %1048 = vmatmul.mubr.bf16.gmra.mrb[0].mxu0 %v1009
        %v1049 = vpop.f32.mrb[0].mxu0
        %v1050 = vadd.f32 0.0, %v1049
        %v1051 = vpop.f32.mrb[0].mxu0
        %v1052 = vpop.f32.mrb[0].mxu0
        %v1053 = vpop.f32.mrb[0].mxu0
        %1054 = vdwg.mxu0
        %v1056 = vsel %vm775, %v1005, 0
        %v1059 = vsel %vm1011, %v772, 0
        %1061 = vmatprep.subr.bf16.mxu0 0
        %1062 = vmatpush1.bf16.msra.mxu0 %v1059
        %1063 = vmatprep.subr.bf16.mxu0 0
        %1064 = vmatpush1.bf16.msra.mxu0 0
        %1065 = vmatprep.subr.bf16.mxu0 0
        %1066 = vmatpush1.bf16.msra.mxu0 0
        %1067 = vmatprep.subr.bf16.mxu0 0
        %1068 = vmatpush1.bf16.msra.mxu0 0
        %1069 = vmatprep.subr.bf16.mxu0 0
        %1070 = vmatpush1.bf16.msra.mxu0 0
        %1071 = vmatprep.subr.bf16.mxu0 0
        %1072 = vmatpush1.bf16.msra.mxu0 0
        %1073 = vmatprep.subr.bf16.mxu0 0
        %1074 = vmatpush1.bf16.msra.mxu0 0
        %1075 = vmatprep.subr.bf16.mxu0 0
        %1076 = vmatpush1.bf16.msra.mxu0 0
        %1077 = vmatprep.subr.bf16.mxu0 0
        %1078 = vmatpush1.bf16.msra.mxu0 0
        %1079 = vmatprep.subr.bf16.mxu0 0
        %1080 = vmatpush1.bf16.msra.mxu0 0
        %1081 = vmatprep.subr.bf16.mxu0 0
        %1082 = vmatpush1.bf16.msra.mxu0 0
        %1083 = vmatprep.subr.bf16.mxu0 0
        %1084 = vmatpush1.bf16.msra.mxu0 0
        %1085 = vmatprep.subr.bf16.mxu0 0
        %1086 = vmatpush1.bf16.msra.mxu0 0
        %1087 = vmatprep.subr.bf16.mxu0 0
        %1088 = vmatpush1.bf16.msra.mxu0 0
        %1089 = vmatprep.subr.bf16.mxu0 0
        %1090 = vmatpush1.bf16.msra.mxu0 0
        %1091 = vmatprep.subr.bf16.mxu0 0
        %1092 = vmatpush1.bf16.msra.mxu0 0
        %1093 = vmatprep.mubr.bf16.mxu0 0
        %1094 = vmatmul.mubr.bf16.gmra.mrb[0].mxu0 %v1056
        %v1095 = vpop.f32.mrb[0].mxu0
        %v1096 = vadd.f32 0.0, %v1095
        %v1097 = vpop.f32.mrb[0].mxu0
        %v1098 = vpop.f32.mrb[0].mxu0
        %v1099 = vpop.f32.mrb[0].mxu0
        %1100 = vdwg.mxu0
        %v1102 = vsel %vm775, %v1006, 0
        %v1105 = vsel %vm1011, %v773, 0
        %1107 = vmatprep.subr.bf16.mxu0 0
        %1108 = vmatpush1.bf16.msra.mxu0 %v1105
        %1109 = vmatprep.subr.bf16.mxu0 0
        %1110 = vmatpush1.bf16.msra.mxu0 0
        %1111 = vmatprep.subr.bf16.mxu0 0
        %1112 = vmatpush1.bf16.msra.mxu0 0
        %1113 = vmatprep.subr.bf16.mxu0 0
        %1114 = vmatpush1.bf16.msra.mxu0 0
        %1115 = vmatprep.subr.bf16.mxu0 0
        %1116 = vmatpush1.bf16.msra.mxu0 0
        %1117 = vmatprep.subr.bf16.mxu0 0
        %1118 = vmatpush1.bf16.msra.mxu0 0
        %1119 = vmatprep.subr.bf16.mxu0 0
        %1120 = vmatpush1.bf16.msra.mxu0 0
        %1121 = vmatprep.subr.bf16.mxu0 0
        %1122 = vmatpush1.bf16.msra.mxu0 0
        %1123 = vmatprep.subr.bf16.mxu0 0
        %1124 = vmatpush1.bf16.msra.mxu0 0
        %1125 = vmatprep.subr.bf16.mxu0 0
        %1126 = vmatpush1.bf16.msra.mxu0 0
        %1127 = vmatprep.subr.bf16.mxu0 0
        %1128 = vmatpush1.bf16.msra.mxu0 0
        %1129 = vmatprep.subr.bf16.mxu0 0
        %1130 = vmatpush1.bf16.msra.mxu0 0
        %1131 = vmatprep.subr.bf16.mxu0 0
        %1132 = vmatpush1.bf16.msra.mxu0 0
        %1133 = vmatprep.subr.bf16.mxu0 0
        %1134 = vmatpush1.bf16.msra.mxu0 0
        %1135 = vmatprep.subr.bf16.mxu0 0
        %1136 = vmatpush1.bf16.msra.mxu0 0
        %1137 = vmatprep.subr.bf16.mxu0 0
        %1138 = vmatpush1.bf16.msra.mxu0 0
        %1139 = vmatprep.mubr.bf16.mxu0 0
        %1140 = vmatmul.mubr.bf16.gmra.mrb[0].mxu0 %v1102
        %v1141 = vpop.f32.mrb[0].mxu0
        %v1142 = vadd.f32 0.0, %v1141
        %v1143 = vpop.f32.mrb[0].mxu0
        %v1144 = vpop.f32.mrb[0].mxu0
        %v1145 = vpop.f32.mrb[0].mxu0
        %1146 = vdwg.mxu0
        %v1148 = vsel %vm775, %v1007, 0
        %v1151 = vsel %vm1011, %v774, 0
        %1153 = vmatprep.subr.bf16.mxu0 0
        %1154 = vmatpush1.bf16.msra.mxu0 %v1151
        %1155 = vmatprep.subr.bf16.mxu0 0
        %1156 = vmatpush1.bf16.msra.mxu0 0
        %1157 = vmatprep.subr.bf16.mxu0 0
        %1158 = vmatpush1.bf16.msra.mxu0 0
        %1159 = vmatprep.subr.bf16.mxu0 0
        %1160 = vmatpush1.bf16.msra.mxu0 0
        %1161 = vmatprep.subr.bf16.mxu0 0
        %1162 = vmatpush1.bf16.msra.mxu0 0
        %1163 = vmatprep.subr.bf16.mxu0 0
        %1164 = vmatpush1.bf16.msra.mxu0 0
        %1165 = vmatprep.subr.bf16.mxu0 0
        %1166 = vmatpush1.bf16.msra.mxu0 0
        %1167 = vmatprep.subr.bf16.mxu0 0
        %1168 = vmatpush1.bf16.msra.mxu0 0
        %1169 = vmatprep.subr.bf16.mxu0 0
        %1170 = vmatpush1.bf16.msra.mxu0 0
        %1171 = vmatprep.subr.bf16.mxu0 0
        %1172 = vmatpush1.bf16.msra.mxu0 0
        %1173 = vmatprep.subr.bf16.mxu0 0
        %1174 = vmatpush1.bf16.msra.mxu0 0
        %1175 = vmatprep.subr.bf16.mxu0 0
        %1176 = vmatpush1.bf16.msra.mxu0 0
        %1177 = vmatprep.subr.bf16.mxu0 0
        %1178 = vmatpush1.bf16.msra.mxu0 0
        %1179 = vmatprep.subr.bf16.mxu0 0
        %1180 = vmatpush1.bf16.msra.mxu0 0
        %1181 = vmatprep.subr.bf16.mxu0 0
        %1182 = vmatpush1.bf16.msra.mxu0 0
        %1183 = vmatprep.subr.bf16.mxu0 0
        %1184 = vmatpush1.bf16.msra.mxu0 0
        %1185 = vmatprep.mubr.bf16.mxu0 0
        %1186 = vmatmul.mubr.bf16.gmra.mrb[0].mxu0 %v1148
        %v1187 = vpop.f32.mrb[0].mxu0
        %v1188 = vadd.f32 0.0, %v1187
        %v1189 = vpop.f32.mrb[0].mxu0
        %v1190 = vpop.f32.mrb[0].mxu0
        %v1191 = vpop.f32.mrb[0].mxu0
        %1192 = vdwg.mxu0
        %1194 = vrot.lane.b32.xlu0 %v1096, 8
        %v1195 = vpop.permute.xlu0 %1194
        %1198 = vrot.lane.b32.xlu0 %v1142, 16
        %v1199 = vpop.permute.xlu0 %1198
        %1202 = vrot.lane.b32.xlu0 %v1188, 24
        %v1203 = vpop.permute.xlu0 %1202
        %v1205 = vsel %vm775, %v1050, %v1195
        %vm1206 = vcmask 130048
        %v1207 = vsel %vm1206, %v1205, %v1199
        %vm1208 = vcmask 195584
        %v1209 = vsel %vm1208, %v1207, %v1203
        %v1210 = vpack.c.bf16 %v1209, %v1209
        %v1211 = vld [vmem:[%s5] sm:$0xf]
        %v1212 = vld [vmem:[%s5 + $0x4] sm:$0xf]
        %v1213 = vld [vmem:[%s5 + $0x8] sm:$0xf]
        %v1214 = vld [vmem:[%s5 + $0xc] sm:$0xf]
        %v1215 = vld [vmem:[#allocation7] sm:$0x1]
        %v1217 = vlaneseq
        %v1218 = vshrl.u32 %v1217, 7
        %v1219 = vsub.s32 0, %v1218
        %v1220 = vrot.slane %v1215, %v1219
        %v1226 = vunpack.c.l.b16 %v1211
        %v1227 = vunpack.c.l.b16 %v1212
        %v1228 = vunpack.c.l.b16 %v1213
        %v1229 = vunpack.c.l.b16 %v1214
        %v1230 = vpack.c.b16 %v1227, %v1226
        %v1231 = vpack.c.b16 %v1229, %v1228
        %v1235 = vsel %vm715, %v1210, 0
        %1237 = vmatprep.subr.bf16.mxu0 0
        %1238 = vmatpush1.bf16.msra.mxu0 %v1230
        %1239 = vmatprep.subr.bf16.mxu0 0
        %1240 = vmatpush1.bf16.msra.mxu0 %v1231
        %1241 = vmatprep.subr.bf16.mxu0 0
        %1242 = vmatpush1.bf16.msra.mxu0 0
        %1243 = vmatprep.subr.bf16.mxu0 0
        %1244 = vmatpush1.bf16.msra.mxu0 0
        %1245 = vmatprep.subr.bf16.mxu0 0
        %1246 = vmatpush1.bf16.msra.mxu0 0
        %1247 = vmatprep.subr.bf16.mxu0 0
        %1248 = vmatpush1.bf16.msra.mxu0 0
        %1249 = vmatprep.subr.bf16.mxu0 0
        %1250 = vmatpush1.bf16.msra.mxu0 0
        %1251 = vmatprep.subr.bf16.mxu0 0
        %1252 = vmatpush1.bf16.msra.mxu0 0
        %1253 = vmatprep.subr.bf16.mxu0 0
        %1254 = vmatpush1.bf16.msra.mxu0 0
        %1255 = vmatprep.subr.bf16.mxu0 0
        %1256 = vmatpush1.bf16.msra.mxu0 0
        %1257 = vmatprep.subr.bf16.mxu0 0
        %1258 = vmatpush1.bf16.msra.mxu0 0
        %1259 = vmatprep.subr.bf16.mxu0 0
        %1260 = vmatpush1.bf16.msra.mxu0 0
        %1261 = vmatprep.subr.bf16.mxu0 0
        %1262 = vmatpush1.bf16.msra.mxu0 0
        %1263 = vmatprep.subr.bf16.mxu0 0
        %1264 = vmatpush1.bf16.msra.mxu0 0
        %1265 = vmatprep.subr.bf16.mxu0 0
        %1266 = vmatpush1.bf16.msra.mxu0 0
        %1267 = vmatprep.subr.bf16.mxu0 0
        %1268 = vmatpush1.bf16.msra.mxu0 0
        %1269 = vmatprep.mubr.bf16.mxu0 0
        %1270 = vmatmul.mubr.bf16.gmra.mrb[0].mxu0 %v1235
        %v1271 = vpop.f32.mrb[0].mxu0
        %v1272 = vadd.f32 %v1220, %v1271
        %v1273 = vpop.f32.mrb[0].mxu0
        %v1274 = vpop.f32.mrb[0].mxu0
        %v1275 = vpop.f32.mrb[0].mxu0
        %1276 = vdwg.mxu0
        %v1277 = vadd.f32 %v1272, %v686
        %v1278 = vld [vmem:[#allocation9] sm:$0x1]
        %v1279 = vld [vmem:[#allocation10] sm:$0x1]
        %v1280 = vsel %vm715, %v1277, 0.0
        %1281 = vadd.xlane.f32.xlu0 %v1280
        %v1282 = vpop.xlane.xlu0 %1281
        %v1283 = vrcp.pop 32.0
        %v1284 = vmul.f32 %v1282, %v1283
        %v1285 = vsub.f32 %v1277, %v1284
        %v1286 = vmul.f32 %v1285, %v1285
        %v1287 = vsel %vm715, %v1286, 0.0
        %1288 = vadd.xlane.f32.xlu0 %v1287
        %v1289 = vpop.xlane.xlu0 %1288
        %v1290 = vmul.f32 %v1289, %v1283
        %v1291 = vadd.f32 %v1290, 1e-05
        %v1292 = vrsqrt.pop %v1291
        %v1293 = vmul.f32 %v1285, %v1292
        %v1295 = vlaneseq
        %v1296 = vshrl.u32 %v1295, 7
        %v1297 = vsub.s32 0, %v1296
        %v1298 = vrot.slane %v1278, %v1297
        %v1300 = vmul.f32 %v1293, %v1298
        %v1302 = vlaneseq
        %v1303 = vshrl.u32 %v1302, 7
        %v1304 = vsub.s32 0, %v1303
        %v1305 = vrot.slane %v1279, %v1304
        %v1307 = vadd.f32 %v1300, %v1305
        %v1308 = vpack.c.bf16 %v1307, %v1307
        %v1309 = vld [vmem:[%s9] sm:$0xf]
        %v1310 = vld [vmem:[%s9 + $0x4] sm:$0xf]
        %v1311 = vld [vmem:[%s9 + $0x8] sm:$0xf]
        %v1312 = vld [vmem:[%s9 + $0xc] sm:$0xf]
        %v1313 = vld [vmem:[#allocation12] sm:$0x1]
        %v1315 = vlaneseq
        %v1316 = vshrl.u32 %v1315, 7
        %v1317 = vsub.s32 0, %v1316
        %v1318 = vrot.slane %v1313, %v1317
        %v1324 = vunpack.c.l.b16 %v1309
        %v1325 = vunpack.c.l.b16 %v1310
        %v1326 = vunpack.c.l.b16 %v1311
        %v1327 = vunpack.c.l.b16 %v1312
        %v1328 = vpack.c.b16 %v1325, %v1324
        %v1329 = vpack.c.b16 %v1327, %v1326
        %v1333 = vsel %vm715, %v1308, 0
        %1335 = vmatprep.subr.bf16.mxu0 0
        %1336 = vmatpush1.bf16.msra.mxu0 %v1328
        %1337 = vmatprep.subr.bf16.mxu0 0
        %1338 = vmatpush1.bf16.msra.mxu0 %v1329
        %1339 = vmatprep.subr.bf16.mxu0 0
        %1340 = vmatpush1.bf16.msra.mxu0 0
        %1341 = vmatprep.subr.bf16.mxu0 0
        %1342 = vmatpush1.bf16.msra.mxu0 0
        %1343 = vmatprep.subr.bf16.mxu0 0
        %1344 = vmatpush1.bf16.msra.mxu0 0
        %1345 = vmatprep.subr.bf16.mxu0 0
        %1346 = vmatpush1.bf16.msra.mxu0 0
        %1347 = vmatprep.subr.bf16.mxu0 0
        %1348 = vmatpush1.bf16.msra.mxu0 0
        %1349 = vmatprep.subr.bf16.mxu0 0
        %1350 = vmatpush1.bf16.msra.mxu0 0
        %1351 = vmatprep.subr.bf16.mxu0 0
        %1352 = vmatpush1.bf16.msra.mxu0 0
        %1353 = vmatprep.subr.bf16.mxu0 0
        %1354 = vmatpush1.bf16.msra.mxu0 0
        %1355 = vmatprep.subr.bf16.mxu0 0
        %1356 = vmatpush1.bf16.msra.mxu0 0
        %1357 = vmatprep.subr.bf16.mxu0 0
        %1358 = vmatpush1.bf16.msra.mxu0 0
        %1359 = vmatprep.subr.bf16.mxu0 0
        %1360 = vmatpush1.bf16.msra.mxu0 0
        %1361 = vmatprep.subr.bf16.mxu0 0
        %1362 = vmatpush1.bf16.msra.mxu0 0
        %1363 = vmatprep.subr.bf16.mxu0 0
        %1364 = vmatpush1.bf16.msra.mxu0 0
        %1365 = vmatprep.subr.bf16.mxu0 0
        %1366 = vmatpush1.bf16.msra.mxu0 0
        %1367 = vmatprep.mubr.bf16.mxu0 0
        %1368 = vmatmul.mubr.bf16.gmra.mrb[0].mxu0 %v1333
        %v1369 = vpop.f32.mrb[0].mxu0
        %v1370 = vadd.f32 %v1318, %v1369
        %v1371 = vpop.f32.mrb[0].mxu0
        %v1372 = vpop.f32.mrb[0].mxu0
        %v1373 = vpop.f32.mrb[0].mxu0
        %1374 = vdwg.mxu0
        %v1375 = vmul.f32 %v1370, %v1370
        %v1376 = vmul.f32 %v1370, %v1375
        %v1377 = vmul.f32 %v1376, 0.044715
        %v1378 = vadd.f32 %v1370, %v1377
        %v1379 = vmul.f32 %v1378, 0.7978846
        %v1380 = vtanh.pop %v1379
        %v1381 = vadd.f32 %v1380, 1.0
        %v1382 = vmul.f32 %v1381, 0.5
        %v1383 = vmul.f32 %v1370, %v1382
        %v1384 = vpack.c.bf16 %v1383, %v1383
        %v1385 = vld [vmem:[%s11] sm:$0xf]
        %v1386 = vld [vmem:[%s11 + $0x4] sm:$0xf]
        %v1387 = vld [vmem:[%s11 + $0x8] sm:$0xf]
        %v1388 = vld [vmem:[%s11 + $0xc] sm:$0xf]
        %v1389 = vld [vmem:[%s11 + $0x10] sm:$0xf]
        %v1390 = vld [vmem:[%s11 + $0x14] sm:$0xf]
        %v1391 = vld [vmem:[%s11 + $0x18] sm:$0xf]
        %v1392 = vld [vmem:[%s11 + $0x1c] sm:$0xf]
        %v1393 = vld [vmem:[#allocation13] sm:$0x1]
        %v1395 = vlaneseq
        %v1396 = vshrl.u32 %v1395, 7
        %v1397 = vsub.s32 0, %v1396
        %v1398 = vrot.slane %v1393, %v1397
        %v1408 = vunpack.c.l.b16 %v1385
        %v1409 = vunpack.c.l.b16 %v1386
        %v1410 = vunpack.c.l.b16 %v1387
        %v1411 = vunpack.c.l.b16 %v1388
        %v1412 = vunpack.c.l.b16 %v1389
        %v1413 = vunpack.c.l.b16 %v1390
        %v1414 = vunpack.c.l.b16 %v1391
        %v1415 = vunpack.c.l.b16 %v1392
        %v1416 = vpack.c.b16 %v1409, %v1408
        %v1417 = vpack.c.b16 %v1411, %v1410
        %v1418 = vpack.c.b16 %v1413, %v1412
        %v1419 = vpack.c.b16 %v1415, %v1414
        %vm1424 = vcmask 523264
        %v1426 = vsel %vm1424, %v1384, 0
        %1428 = vmatprep.subr.bf16.mxu0 0
        %1429 = vmatpush1.bf16.msra.mxu0 %v1416
        %1430 = vmatprep.subr.bf16.mxu0 0
        %1431 = vmatpush1.bf16.msra.mxu0 %v1417
        %1432 = vmatprep.subr.bf16.mxu0 0
        %1433 = vmatpush1.bf16.msra.mxu0 %v1418
        %1434 = vmatprep.subr.bf16.mxu0 0
        %1435 = vmatpush1.bf16.msra.mxu0 %v1419
        %1436 = vmatprep.subr.bf16.mxu0 0
        %1437 = vmatpush1.bf16.msra.mxu0 0
        %1438 = vmatprep.subr.bf16.mxu0 0
        %1439 = vmatpush1.bf16.msra.mxu0 0
        %1440 = vmatprep.subr.bf16.mxu0 0
        %1441 = vmatpush1.bf16.msra.mxu0 0
        %1442 = vmatprep.subr.bf16.mxu0 0
        %1443 = vmatpush1.bf16.msra.mxu0 0
        %1444 = vmatprep.subr.bf16.mxu0 0
        %1445 = vmatpush1.bf16.msra.mxu0 0
        %1446 = vmatprep.subr.bf16.mxu0 0
        %1447 = vmatpush1.bf16.msra.mxu0 0
        %1448 = vmatprep.subr.bf16.mxu0 0
        %1449 = vmatpush1.bf16.msra.mxu0 0
        %1450 = vmatprep.subr.bf16.mxu0 0
        %1451 = vmatpush1.bf16.msra.mxu0 0
        %1452 = vmatprep.subr.bf16.mxu0 0
        %1453 = vmatpush1.bf16.msra.mxu0 0
        %1454 = vmatprep.subr.bf16.mxu0 0
        %1455 = vmatpush1.bf16.msra.mxu0 0
        %1456 = vmatprep.subr.bf16.mxu0 0
        %1457 = vmatpush1.bf16.msra.mxu0 0
        %1458 = vmatprep.subr.bf16.mxu0 0
        %1459 = vmatpush1.bf16.msra.mxu0 0
        %1460 = vmatprep.mubr.bf16.mxu0 0
        %1461 = vmatmul.mubr.bf16.gmra.mrb[0].mxu0 %v1426
        %v1462 = vpop.f32.mrb[0].mxu0
        %v1463 = vadd.f32 %v1398, %v1462
        %v1464 = vpop.f32.mrb[0].mxu0
        %v1465 = vpop.f32.mrb[0].mxu0
        %v1466 = vpop.f32.mrb[0].mxu0
        %1467 = vdwg.mxu0
        %v1468 = vadd.f32 %v1463, %v1277
        %1469 = vst.msk [vmem:[%s531] sm:$0xff] %vm715, %v1468
        %p1470 = scmp.lt.s32.totalorder %s32, 1
        %s1471 = scalar_select %p1470, %s32, 1
        %p1472 = scmp.lt.s32.totalorder %s33, 0
        %s1473 = scalar_select %p1472, %s33, 0
        %s1474 = sadd.s32 %s1473, %s1471
        %s1475 = smul.addr %s1474, 8
        %s1476 = scalar_lea.vmem %s13, %s1475
        // Predicated region
        $region101: #{transformer_apply.2} parent=71 // pred_check
          %p1477 = pneg %p338
        $region102: #{transformer_apply.2} parent=71 // pred_check_branch
          %1479 = sbr.rel (%p1477) target = $region104
        $region103: #{transformer_apply.2} parent=71 // pred_region
          _
        $region104: #{transformer_apply.2} parent=71 // pred_fallthru
          _
      $region72: #{transformer_apply.2} parent=5 // pred_fallthru
        _
      %p1480 = scmp.le.s32.totalorder 2, %s23
      // Predicated region
      $region105: #{transformer_apply.2} parent=5 // pred_check
        %p1481 = pneg %p1480
      $region106: #{transformer_apply.2} parent=5 // pred_check_branch
        %1483 = sbr.rel (%p1481) target = $region108
      $region107: #{transformer_apply.2} parent=5 // pred_region
        %s1484 = ssub.s32 %s23, 2
        // Predicated region
        $region109: #{transformer_apply.2} parent=107 // pred_check
          %p1485 = pneg %p344
        $region110: #{transformer_apply.2} parent=107 // pred_check_branch
          %1487 = sbr.rel (%p1485) target = $region112
        $region111: #{transformer_apply.2} parent=107 // pred_region
          %p1488 = scmp.lt.s32.totalorder %s34, 1
          %s1489 = scalar_select %p1488, %s34, 1
          %p1490 = scmp.lt.s32.totalorder %s35, 0
          %s1491 = scalar_select %p1490, %s35, 0
          %s1492 = sadd.s32 %s1491, %s1489
          %s1493 = smul.addr %s1492, 8
          %s1494 = scalar_lea.vmem %s13, %s1493
        $region112: #{transformer_apply.2} parent=107 // pred_fallthru
          _
      $region108: #{transformer_apply.2} parent=5 // pred_fallthru
        _
    $region6: #{transformer_apply.2} parent=1 // loop_footer
      %s27 = sadd.s32 1, %s23
    $region7: #{transformer_apply.2} parent=1 // loop_footer_branch
      %22 = sbr.rel target = $region3
    $region8: #{transformer_apply.2} parent=1 // loop_exit
      _
    %1495 = vsyncpa [#allocation6], 1
    %s1496 = scalar_lea.sflag [#allocation6], 1
    %1497 = vsyncpa %s1496, 1
    %1498 = vsyncpa [#allocation8], 1
    %1499 = vsyncpa [#allocation11], 1
    %1500 = vsyncpa [#allocation14], 1

// kernel: transformer_apply.3
$region0: #{transformer_apply.3}
  #allocation0 [shape = 'u32[]', space=smem, size = 0x4, offset = 0x4, fixed_abs, tag = 'smem constant byte address 0x4 - core index']
  #allocation1 [shape = 'u32[144,128]{1,0:T(1,128)}', space=vmem, size = 0x12000, scoped, tag = 'internal scratch']
  #allocation2 [shape = 'bf16[8,32]{1,0:T(8,128)(2,1)}', space=vmem, size = 0x800, scoped, tag = 'scratch operand']
  #allocation3 [shape = 'bf16[4,8,8]{2,1,0:T(8,128)(2,1)}', space=vmem, size = 0x2000, scoped, tag = 'scratch operand']
  #allocation4 [shape = 'bf16[4,8,8]{2,1,0:T(8,128)(2,1)}', space=vmem, size = 0x2000, scoped, tag = 'scratch operand']
  %s0 = inlined_call_operand.vmem [shape: f32[2,8,32], index: 0, kind: input, shape index: {}]
  %s1 = inlined_call_operand.vmem [shape: f32[1,32], index: 1, kind: input, shape index: {}]
  %s2 = inlined_call_operand.vmem [shape: f32[1,32], index: 2, kind: input, shape index: {}]
  %s3 = inlined_call_operand.vmem [shape: bf16[32,96], index: 3, kind: input, shape index: {}]
  %s4 = inlined_call_operand.vmem [shape: f32[1,96], index: 4, kind: input, shape index: {}]
  %s5 = inlined_call_operand.vmem [shape: bf16[32,32], index: 5, kind: input, shape index: {}]
  %s6 = inlined_call_operand.vmem [shape: f32[1,32], index: 6, kind: input, shape index: {}]
  %s7 = inlined_call_operand.vmem [shape: f32[1,32], index: 7, kind: input, shape index: {}]
  %s8 = inlined_call_operand.vmem [shape: f32[1,32], index: 8, kind: input, shape index: {}]
  %s9 = inlined_call_operand.vmem [shape: bf16[32,64], index: 9, kind: input, shape index: {}]
  %s10 = inlined_call_operand.vmem [shape: f32[1,64], index: 10, kind: input, shape index: {}]
  %s11 = inlined_call_operand.vmem [shape: bf16[64,32], index: 11, kind: input, shape index: {}]
  %s12 = inlined_call_operand.vmem [shape: f32[1,32], index: 12, kind: input, shape index: {}]
  %s13 = inlined_call_operand.hbm [shape: f32[2,8,32], index: 13, kind: output, shape index: {}]
  %s14 = sld [smem:[#allocation0]]
  $region89: #{transformer_apply.3} parent=0
    _
  %s16 = ssub.s32 1, %s14
  %s17 = scalar_select 0, %s16, %s14
  $region1: #{transformer_apply.3} parent=0
    #allocation5 [shape = 'u8[8192]{0}', space=vmem, size = 0x2000, scoped, tag = 'output window, operand 0']
    #allocation6 [shape = 's32[2]{0}', space=sflag, size = 0x8, scoped, tag = 'scoped memory for transformer_apply.3']
    %18 = vsyncpa [#allocation6], 0
    %s19 = scalar_lea.sflag [#allocation6], 1
    %20 = vsyncpa %s19, 0
    loop: start=0, step=1, limit=4
    $region2: #{transformer_apply.3} parent=1 // loop_pre_header
      _
    $region3: #{transformer_apply.3} parent=1 // loop_header
      %s22 = sphi 0, %s26
      %p23 = scmp.ge.s32.totalorder %s22, 4
      %s29 = sphi 0, %s41
      %s30 = sphi 0, %s37
      %s31 = sphi 0, %s29
      %s32 = sphi 0, %s30
      %s33 = sphi 0, %s31
      %s34 = sphi 0, %s32
      %s44 = sphi 0, %s46
      %s47 = sphi 0, %s44
      %s48 = sphi 0, %s47
      %s64 = sphi 0, %s48
      %s68 = sphi 0, %s68
      %s70 = sphi 0, %s68
      %s71 = sphi 0, %s70
      %s85 = sphi 0, %s71
      %s89 = sphi 0, %s89
      %s91 = sphi 0, %s89
      %s92 = sphi 0, %s91
      %s106 = sphi 0, %s92
      %s110 = sphi 0, %s110
      %s112 = sphi 0, %s110
      %s113 = sphi 0, %s112
      %s127 = sphi 0, %s113
      %s131 = sphi 0, %s131
      %s133 = sphi 0, %s131
      %s134 = sphi 0, %s133
      %s148 = sphi 0, %s134
      %s152 = sphi 0, %s152
      %s154 = sphi 0, %s152
      %s155 = sphi 0, %s154
      %s169 = sphi 0, %s155
      %s173 = sphi 0, %s173
      %s175 = sphi 0, %s173
      %s176 = sphi 0, %s175
      %s190 = sphi 0, %s176
      %s194 = sphi 0, %s194
      %s196 = sphi 0, %s194
      %s197 = sphi 0, %s196
      %s211 = sphi 0, %s197
      %s215 = sphi 0, %s215
      %s217 = sphi 0, %s215
      %s218 = sphi 0, %s217
      %s232 = sphi 0, %s218
      %s236 = sphi 0, %s236
      %s238 = sphi 0, %s236
      %s239 = sphi 0, %s238
      %s253 = sphi 0, %s239
      %s257 = sphi 0, %s257
      %s259 = sphi 0, %s257
      %s260 = sphi 0, %s259
      %s274 = sphi 0, %s260
      %s278 = sphi 0, %s278
      %s280 = sphi 0, %s278
      %s281 = sphi 0, %s280
      %s295 = sphi 0, %s281
      %s299 = sphi 0, %s299
      %s301 = sphi 0, %s299
      %s302 = sphi 0, %s301
      %s316 = sphi 0, %s302
      %s324 = sphi 0, %s326
      %s327 = sphi 0, %s324
      %s328 = sphi 0, %s327
      %s344 = sphi 0, %s328
    $region4: #{transformer_apply.3} parent=1 // loop_header_branch
      %25 = sbr.rel (%p23) target = $region8
    $region5: #{transformer_apply.3} parent=1 // loop_body
      %s27 = ssub.s32 %s22, 1
      %s28 = ssub.s32 %s22, 2
      %s35 = sadd.s32 1, %s30
      %p36 = scmp.ge.s32.totalorder %s35, 1
      %s37 = scalar_select %p36, 0, %s35
      %s38 = sadd.s32 1, %s29
      %s39 = scalar_select %p36, %s38, %s29
      %p40 = scmp.ge.s32.totalorder %s39, 2
      %s41 = scalar_select %p40, 0, %s39
      %s42 = ssub.s32 %s29, %s41
      %p43 = scmp.eq.s32.totalorder %s42, 0
      %s45 = sadd.s32 %s44, 1
      %s46 = scalar_select %p43, %s44, %s45
      %p49 = pneg %p43
      %p50 = scmp.eq.s32.totalorder %s22, 1
      %p51 = por %p49, %p50
      %p52 = scmp.ne.s32.totalorder %s44, %s47
      %p53 = scmp.eq.s32.totalorder %s22, 0
      %p54 = por %p52, %p53
      %p55 = scmp.ne.s32.totalorder %s44, %s47
      %p56 = scmp.eq.s32.totalorder %s27, 1
      %p57 = por %p55, %p56
      %p58 = scmp.ne.s32.totalorder %s47, %s48
      %p59 = scmp.eq.s32.totalorder %s27, 0
      %p60 = por %p58, %p59
      %p61 = scmp.ne.s32.totalorder %s47, %s48
      %p62 = scmp.eq.s32.totalorder %s28, 1
      %p63 = por %p61, %p62
      %p65 = scmp.ne.s32.totalorder %s48, %s64
      %p66 = scmp.eq.s32.totalorder %s28, 0
      %p67 = por %p65, %p66
      %s69 = sadd.s32 %s68, 1
      %p72 = scmp.eq.s32.totalorder %s22, 1
      %p73 = scmp.ne.s32.totalorder %s68, %s70
      %p74 = scmp.eq.s32.totalorder %s22, 0
      %p75 = por %p73, %p74
      %p76 = scmp.ne.s32.totalorder %s68, %s70
      %p77 = scmp.eq.s32.totalorder %s27, 1
      %p78 = por %p76, %p77
      %p79 = scmp.ne.s32.totalorder %s70, %s71
      %p80 = scmp.eq.s32.totalorder %s27, 0
      %p81 = por %p79, %p80
      %p82 = scmp.ne.s32.totalorder %s70, %s71
      %p83 = scmp.eq.s32.totalorder %s28, 1
      %p84 = por %p82, %p83
      %p86 = scmp.ne.s32.totalorder %s71, %s85
      %p87 = scmp.eq.s32.totalorder %s28, 0
      %p88 = por %p86, %p87
      %s90 = sadd.s32 %s89, 1
      %p93 = scmp.eq.s32.totalorder %s22, 1
      %p94 = scmp.ne.s32.totalorder %s89, %s91
      %p95 = scmp.eq.s32.totalorder %s22, 0
      %p96 = por %p94, %p95
      %p97 = scmp.ne.s32.totalorder %s89, %s91
      %p98 = scmp.eq.s32.totalorder %s27, 1
      %p99 = por %p97, %p98
      %p100 = scmp.ne.s32.totalorder %s91, %s92
      %p101 = scmp.eq.s32.totalorder %s27, 0
      %p102 = por %p100, %p101
      %p103 = scmp.ne.s32.totalorder %s91, %s92
      %p104 = scmp.eq.s32.totalorder %s28, 1
      %p105 = por %p103, %p104
      %p107 = scmp.ne.s32.totalorder %s92, %s106
      %p108 = scmp.eq.s32.totalorder %s28, 0
      %p109 = por %p107, %p108
      %s111 = sadd.s32 %s110, 1
      %p114 = scmp.eq.s32.totalorder %s22, 1
      %p115 = scmp.ne.s32.totalorder %s110, %s112
      %p116 = scmp.eq.s32.totalorder %s22, 0
      %p117 = por %p115, %p116
      %p118 = scmp.ne.s32.totalorder %s110, %s112
      %p119 = scmp.eq.s32.totalorder %s27, 1
      %p120 = por %p118, %p119
      %p121 = scmp.ne.s32.totalorder %s112, %s113
      %p122 = scmp.eq.s32.totalorder %s27, 0
      %p123 = por %p121, %p122
      %p124 = scmp.ne.s32.totalorder %s112, %s113
      %p125 = scmp.eq.s32.totalorder %s28, 1
      %p126 = por %p124, %p125
      %p128 = scmp.ne.s32.totalorder %s113, %s127
      %p129 = scmp.eq.s32.totalorder %s28, 0
      %p130 = por %p128, %p129
      %s132 = sadd.s32 %s131, 1
      %p135 = scmp.eq.s32.totalorder %s22, 1
      %p136 = scmp.ne.s32.totalorder %s131, %s133
      %p137 = scmp.eq.s32.totalorder %s22, 0
      %p138 = por %p136, %p137
      %p139 = scmp.ne.s32.totalorder %s131, %s133
      %p140 = scmp.eq.s32.totalorder %s27, 1
      %p141 = por %p139, %p140
      %p142 = scmp.ne.s32.totalorder %s133, %s134
      %p143 = scmp.eq.s32.totalorder %s27, 0
      %p144 = por %p142, %p143
      %p145 = scmp.ne.s32.totalorder %s133, %s134
      %p146 = scmp.eq.s32.totalorder %s28, 1
      %p147 = por %p145, %p146
      %p149 = scmp.ne.s32.totalorder %s134, %s148
      %p150 = scmp.eq.s32.totalorder %s28, 0
      %p151 = por %p149, %p150
      %s153 = sadd.s32 %s152, 1
      %p156 = scmp.eq.s32.totalorder %s22, 1
      %p157 = scmp.ne.s32.totalorder %s152, %s154
      %p158 = scmp.eq.s32.totalorder %s22, 0
      %p159 = por %p157, %p158
      %p160 = scmp.ne.s32.totalorder %s152, %s154
      %p161 = scmp.eq.s32.totalorder %s27, 1
      %p162 = por %p160, %p161
      %p163 = scmp.ne.s32.totalorder %s154, %s155
      %p164 = scmp.eq.s32.totalorder %s27, 0
      %p165 = por %p163, %p164
      %p166 = scmp.ne.s32.totalorder %s154, %s155
      %p167 = scmp.eq.s32.totalorder %s28, 1
      %p168 = por %p166, %p167
      %p170 = scmp.ne.s32.totalorder %s155, %s169
      %p171 = scmp.eq.s32.totalorder %s28, 0
      %p172 = por %p170, %p171
      %s174 = sadd.s32 %s173, 1
      %p177 = scmp.eq.s32.totalorder %s22, 1
      %p178 = scmp.ne.s32.totalorder %s173, %s175
      %p179 = scmp.eq.s32.totalorder %s22, 0
      %p180 = por %p178, %p179
      %p181 = scmp.ne.s32.totalorder %s173, %s175
      %p182 = scmp.eq.s32.totalorder %s27, 1
      %p183 = por %p181, %p182
      %p184 = scmp.ne.s32.totalorder %s175, %s176
      %p185 = scmp.eq.s32.totalorder %s27, 0
      %p186 = por %p184, %p185
      %p187 = scmp.ne.s32.totalorder %s175, %s176
      %p188 = scmp.eq.s32.totalorder %s28, 1
      %p189 = por %p187, %p188
      %p191 = scmp.ne.s32.totalorder %s176, %s190
      %p192 = scmp.eq.s32.totalorder %s28, 0
      %p193 = por %p191, %p192
      %s195 = sadd.s32 %s194, 1
      %p198 = scmp.eq.s32.totalorder %s22, 1
      %p199 = scmp.ne.s32.totalorder %s194, %s196
      %p200 = scmp.eq.s32.totalorder %s22, 0
      %p201 = por %p199, %p200
      %p202 = scmp.ne.s32.totalorder %s194, %s196
      %p203 = scmp.eq.s32.totalorder %s27, 1
      %p204 = por %p202, %p203
      %p205 = scmp.ne.s32.totalorder %s196, %s197
      %p206 = scmp.eq.s32.totalorder %s27, 0
      %p207 = por %p205, %p206
      %p208 = scmp.ne.s32.totalorder %s196, %s197
      %p209 = scmp.eq.s32.totalorder %s28, 1
      %p210 = por %p208, %p209
      %p212 = scmp.ne.s32.totalorder %s197, %s211
      %p213 = scmp.eq.s32.totalorder %s28, 0
      %p214 = por %p212, %p213
      %s216 = sadd.s32 %s215, 1
      %p219 = scmp.eq.s32.totalorder %s22, 1
      %p220 = scmp.ne.s32.totalorder %s215, %s217
      %p221 = scmp.eq.s32.totalorder %s22, 0
      %p222 = por %p220, %p221
      %p223 = scmp.ne.s32.totalorder %s215, %s217
      %p224 = scmp.eq.s32.totalorder %s27, 1
      %p225 = por %p223, %p224
      %p226 = scmp.ne.s32.totalorder %s217, %s218
      %p227 = scmp.eq.s32.totalorder %s27, 0
      %p228 = por %p226, %p227
      %p229 = scmp.ne.s32.totalorder %s217, %s218
      %p230 = scmp.eq.s32.totalorder %s28, 1
      %p231 = por %p229, %p230
      %p233 = scmp.ne.s32.totalorder %s218, %s232
      %p234 = scmp.eq.s32.totalorder %s28, 0
      %p235 = por %p233, %p234
      %s237 = sadd.s32 %s236, 1
      %p240 = scmp.eq.s32.totalorder %s22, 1
      %p241 = scmp.ne.s32.totalorder %s236, %s238
      %p242 = scmp.eq.s32.totalorder %s22, 0
      %p243 = por %p241, %p242
      %p244 = scmp.ne.s32.totalorder %s236, %s238
      %p245 = scmp.eq.s32.totalorder %s27, 1
      %p246 = por %p244, %p245
      %p247 = scmp.ne.s32.totalorder %s238, %s239
      %p248 = scmp.eq.s32.totalorder %s27, 0
      %p249 = por %p247, %p248
      %p250 = scmp.ne.s32.totalorder %s238, %s239
      %p251 = scmp.eq.s32.totalorder %s28, 1
      %p252 = por %p250, %p251
      %p254 = scmp.ne.s32.totalorder %s239, %s253
      %p255 = scmp.eq.s32.totalorder %s28, 0
      %p256 = por %p254, %p255
      %s258 = sadd.s32 %s257, 1
      %p261 = scmp.eq.s32.totalorder %s22, 1
      %p262 = scmp.ne.s32.totalorder %s257, %s259
      %p263 = scmp.eq.s32.totalorder %s22, 0
      %p264 = por %p262, %p263
      %p265 = scmp.ne.s32.totalorder %s257, %s259
      %p266 = scmp.eq.s32.totalorder %s27, 1
      %p267 = por %p265, %p266
      %p268 = scmp.ne.s32.totalorder %s259, %s260
      %p269 = scmp.eq.s32.totalorder %s27, 0
      %p270 = por %p268, %p269
      %p271 = scmp.ne.s32.totalorder %s259, %s260
      %p272 = scmp.eq.s32.totalorder %s28, 1
      %p273 = por %p271, %p272
      %p275 = scmp.ne.s32.totalorder %s260, %s274
      %p276 = scmp.eq.s32.totalorder %s28, 0
      %p277 = por %p275, %p276
      %s279 = sadd.s32 %s278, 1
      %p282 = scmp.eq.s32.totalorder %s22, 1
      %p283 = scmp.ne.s32.totalorder %s278, %s280
      %p284 = scmp.eq.s32.totalorder %s22, 0
      %p285 = por %p283, %p284
      %p286 = scmp.ne.s32.totalorder %s278, %s280
      %p287 = scmp.eq.s32.totalorder %s27, 1
      %p288 = por %p286, %p287
      %p289 = scmp.ne.s32.totalorder %s280, %s281
      %p290 = scmp.eq.s32.totalorder %s27, 0
      %p291 = por %p289, %p290
      %p292 = scmp.ne.s32.totalorder %s280, %s281
      %p293 = scmp.eq.s32.totalorder %s28, 1
      %p294 = por %p292, %p293
      %p296 = scmp.ne.s32.totalorder %s281, %s295
      %p297 = scmp.eq.s32.totalorder %s28, 0
      %p298 = por %p296, %p297
      %s300 = sadd.s32 %s299, 1
      %p303 = scmp.eq.s32.totalorder %s22, 1
      %p304 = scmp.ne.s32.totalorder %s299, %s301
      %p305 = scmp.eq.s32.totalorder %s22, 0
      %p306 = por %p304, %p305
      %p307 = scmp.ne.s32.totalorder %s299, %s301
      %p308 = scmp.eq.s32.totalorder %s27, 1
      %p309 = por %p307, %p308
      %p310 = scmp.ne.s32.totalorder %s301, %s302
      %p311 = scmp.eq.s32.totalorder %s27, 0
      %p312 = por %p310, %p311
      %p313 = scmp.ne.s32.totalorder %s301, %s302
      %p314 = scmp.eq.s32.totalorder %s28, 1
      %p315 = por %p313, %p314
      %p317 = scmp.ne.s32.totalorder %s302, %s316
      %p318 = scmp.eq.s32.totalorder %s28, 0
      %p319 = por %p317, %p318
      %s320 = ssub.s32 %s29, %s41
      %s321 = ssub.s32 %s30, %s37
      %s322 = sor.u32 %s320, %s321
      %p323 = scmp.eq.s32.totalorder %s322, 0
      %s325 = sadd.s32 %s324, 1
      %s326 = scalar_select %p323, %s324, %s325
      %p329 = pneg %p323
      %p330 = scmp.eq.s32.totalorder %s22, 1
      %p331 = por %p329, %p330
      %p332 = scmp.ne.s32.totalorder %s324, %s327
      %p333 = scmp.eq.s32.totalorder %s22, 0
      %p334 = por %p332, %p333
      %p335 = scmp.ne.s32.totalorder %s324, %s327
      %p336 = scmp.eq.s32.totalorder %s27, 1
      %p337 = por %p335, %p336
      %p338 = scmp.ne.s32.totalorder %s327, %s328
      %p339 = scmp.eq.s32.totalorder %s27, 0
      %p340 = por %p338, %p339
      %p341 = scmp.ne.s32.totalorder %s327, %s328
      %p342 = scmp.eq.s32.totalorder %s28, 1
      %p343 = por %p341, %p342
      %p345 = scmp.ne.s32.totalorder %s328, %s344
      %p346 = scmp.eq.s32.totalorder %s28, 0
      %p347 = por %p345, %p346
      %p348 = scmp.le.s32.totalorder 1, %s22
      %p349 = scmp.lt.s32.totalorder %s22, 3
      %p350 = pnand %p348, %p349
      %p351 = pneg %p350
      // Predicated region
      $region9: #{transformer_apply.3} parent=5 // pred_check
        _
      $region10: #{transformer_apply.3} parent=5 // pred_check_branch
        %353 = sbr.rel (%p350) target = $region12
      $region11: #{transformer_apply.3} parent=5 // pred_region
        %s354 = ssub.s32 %s22, 1
        // Predicated region
        $region13: #{transformer_apply.3} parent=11 // pred_check
          %p355 = pneg %p81
        $region14: #{transformer_apply.3} parent=11 // pred_check_branch
          %357 = sbr.rel (%p355) target = $region16
        $region15: #{transformer_apply.3} parent=11 // pred_region
          _
        $region16: #{transformer_apply.3} parent=11 // pred_fallthru
          _
        // Predicated region
        $region17: #{transformer_apply.3} parent=11 // pred_check
          %p358 = pneg %p102
        $region18: #{transformer_apply.3} parent=11 // pred_check_branch
          %360 = sbr.rel (%p358) target = $region20
        $region19: #{transformer_apply.3} parent=11 // pred_region
          _
        $region20: #{transformer_apply.3} parent=11 // pred_fallthru
          _
        // Predicated region
        $region21: #{transformer_apply.3} parent=11 // pred_check
          %p361 = pneg %p123
        $region22: #{transformer_apply.3} parent=11 // pred_check_branch
          %363 = sbr.rel (%p361) target = $region24
        $region23: #{transformer_apply.3} parent=11 // pred_region
          _
        $region24: #{transformer_apply.3} parent=11 // pred_fallthru
          _
        // Predicated region
        $region25: #{transformer_apply.3} parent=11 // pred_check
          %p364 = pneg %p144
        $region26: #{transformer_apply.3} parent=11 // pred_check_branch
          %366 = sbr.rel (%p364) target = $region28
        $region27: #{transformer_apply.3} parent=11 // pred_region
          _
        $region28: #{transformer_apply.3} parent=11 // pred_fallthru
          _
        // Predicated region
        $region29: #{transformer_apply.3} parent=11 // pred_check
          %p367 = pneg %p165
        $region30: #{transformer_apply.3} parent=11 // pred_check_branch
          %369 = sbr.rel (%p367) target = $region32
        $region31: #{transformer_apply.3} parent=11 // pred_region
          _
        $region32: #{transformer_apply.3} parent=11 // pred_fallthru
          _
        // Predicated region
        $region33: #{transformer_apply.3} parent=11 // pred_check
          %p370 = pneg %p186
        $region34: #{transformer_apply.3} parent=11 // pred_check_branch
          %372 = sbr.rel (%p370) target = $region36
        $region35: #{transformer_apply.3} parent=11 // pred_region
          _
        $region36: #{transformer_apply.3} parent=11 // pred_fallthru
          _
        // Predicated region
        $region37: #{transformer_apply.3} parent=11 // pred_check
          %p373 = pneg %p207
        $region38: #{transformer_apply.3} parent=11 // pred_check_branch
          %375 = sbr.rel (%p373) target = $region40
        $region39: #{transformer_apply.3} parent=11 // pred_region
          _
        $region40: #{transformer_apply.3} parent=11 // pred_fallthru
          _
        // Predicated region
        $region41: #{transformer_apply.3} parent=11 // pred_check
          %p376 = pneg %p228
        $region42: #{transformer_apply.3} parent=11 // pred_check_branch
          %378 = sbr.rel (%p376) target = $region44
        $region43: #{transformer_apply.3} parent=11 // pred_region
          _
        $region44: #{transformer_apply.3} parent=11 // pred_fallthru
          _
        // Predicated region
        $region45: #{transformer_apply.3} parent=11 // pred_check
          %p379 = pneg %p249
        $region46: #{transformer_apply.3} parent=11 // pred_check_branch
          %381 = sbr.rel (%p379) target = $region48
        $region47: #{transformer_apply.3} parent=11 // pred_region
          _
        $region48: #{transformer_apply.3} parent=11 // pred_fallthru
          _
        // Predicated region
        $region49: #{transformer_apply.3} parent=11 // pred_check
          %p382 = pneg %p270
        $region50: #{transformer_apply.3} parent=11 // pred_check_branch
          %384 = sbr.rel (%p382) target = $region52
        $region51: #{transformer_apply.3} parent=11 // pred_region
          _
        $region52: #{transformer_apply.3} parent=11 // pred_fallthru
          _
        // Predicated region
        $region53: #{transformer_apply.3} parent=11 // pred_check
          %p385 = pneg %p291
        $region54: #{transformer_apply.3} parent=11 // pred_check_branch
          %387 = sbr.rel (%p385) target = $region56
        $region55: #{transformer_apply.3} parent=11 // pred_region
          _
        $region56: #{transformer_apply.3} parent=11 // pred_fallthru
          _
        // Predicated region
        $region57: #{transformer_apply.3} parent=11 // pred_check
          %p388 = pneg %p312
        $region58: #{transformer_apply.3} parent=11 // pred_check_branch
          %390 = sbr.rel (%p388) target = $region60
        $region59: #{transformer_apply.3} parent=11 // pred_region
          _
        $region60: #{transformer_apply.3} parent=11 // pred_fallthru
          _
      $region12: #{transformer_apply.3} parent=5 // pred_fallthru
        _
      %p391 = scmp.lt.s32.totalorder %s22, 2
      // Predicated region
      $region61: #{transformer_apply.3} parent=5 // pred_check
        %p392 = pneg %p391
      $region62: #{transformer_apply.3} parent=5 // pred_check_branch
        %394 = sbr.rel (%p392) target = $region64
      $region63: #{transformer_apply.3} parent=5 // pred_region
        // Predicated region
        $region65: #{transformer_apply.3} parent=63 // pred_check
          %p395 = pneg %p54
        $region66: #{transformer_apply.3} parent=63 // pred_check_branch
          %397 = sbr.rel (%p395) target = $region68
        $region67: #{transformer_apply.3} parent=63 // pred_region
          %p398 = scmp.lt.s32.totalorder %s29, 1
          %s399 = scalar_select %p398, %s29, 1
          %s400 = smul.addr %s399, 8
          %s401 = scalar_lea.vmem %s0, %s400
        $region68: #{transformer_apply.3} parent=63 // pred_fallthru
          _
      $region64: #{transformer_apply.3} parent=5 // pred_fallthru
        _
      %p402 = scmp.le.s32.totalorder 1, %s22
      %p403 = scmp.lt.s32.totalorder %s22, 3
      %p404 = pnand %p402, %p403
      %p405 = pneg %p404
      // Predicated region
      $region69: #{transformer_apply.3} parent=5 // pred_check
        _
      $region70: #{transformer_apply.3} parent=5 // pred_check_branch
        %407 = sbr.rel (%p404) target = $region72
      $region71: #{transformer_apply.3} parent=5 // pred_region
        %s408 = ssub.s32 %s22, 1
        %p409 = scmp.lt.s32.totalorder %s31, 1
        %s410 = scalar_select %p409, %s31, 1
        %s411 = smul.addr %s410, 8
        %s412 = scalar_lea.vmem %s0, %s411
        %p413 = pneg %p60
        %p414 = pneg %p57
        %p415 = pneg %p81
        %p416 = pneg %p78
        %p417 = pneg %p102
        %p418 = pneg %p99
        %p419 = pneg %p123
        %p420 = pneg %p120
        %p421 = pneg %p144
        %p422 = pneg %p141
        %p423 = pneg %p165
        %p424 = pneg %p162
        %p425 = pneg %p186
        %p426 = pneg %p183
        %p427 = pneg %p207
        %p428 = pneg %p204
        %p429 = pneg %p228
        %p430 = pneg %p225
        %p431 = pneg %p249
        %p432 = pneg %p246
        %p433 = pneg %p270
        %p434 = pneg %p267
        %p435 = pneg %p291
        %p436 = pneg %p288
        %p437 = pneg %p312
        %p438 = pneg %p309
        %p439 = pneg %p340
        %p440 = pneg %p337
        %s441 = sand.u32 %s327, 1
        %s442 = scalar_lea.sflag [#allocation6], %s441
        %s443 = sand.u32 %s327, 1
        %s444 = smul.addr %s443, 8
        %s445 = scalar_lea.vmem [#allocation5], %s444
        %p446 = scmp.lt.s32.totalorder %s31, 1
        %s447 = scalar_select %p446, %s31, 1
        %s448 = smul.addr %s447, 8
        %s449 = scalar_lea.vmem %s0, %s448
        %s451 = smul.u32 %s32, 8
        %p452 = scmp.eq.s32.totalorder %s32, 0
        // Predicated region
        $region73: #{transformer_apply.3} parent=71 // pred_check
          %p453 = pneg %p452
        $region74: #{transformer_apply.3} parent=71 // pred_check_branch
          %455 = sbr.rel (%p453) target = $region76
        $region75: #{transformer_apply.3} parent=71 // pred_region
          %v456 = vld [vmem:[%s449] sm:$0xff]
          %v457 = vld [vmem:[%s1] sm:$0x1]
          %v458 = vld [vmem:[%s2] sm:$0x1]
          %vm459 = vcmask 261120
          %v460 = vsel %vm459, %v456, 0.0
          %461 = vadd.xlane.f32.xlu0 %v460
          %v462 = vpop.xlane.xlu0 %461
          %v463 = vrcp.pop 32.0
          %v464 = vmul.f32 %v462, %v463
          %v465 = vsub.f32 %v456, %v464
          %v466 = vmul.f32 %v465, %v465
          %v467 = vsel %vm459, %v466, 0.0
          %468 = vadd.xlane.f32.xlu0 %v467
          %v469 = vpop.xlane.xlu0 %468
          %v470 = vmul.f32 %v469, %v463
          %v471 = vadd.f32 %v470, 1e-05
          %v472 = vrsqrt.pop %v471
          %v473 = vmul.f32 %v465, %v472
          %v475 = vlaneseq
          %v476 = vshrl.u32 %v475, 7
          %v477 = vsub.s32 0, %v476
          %v478 = vrot.slane %v457, %v477
          %v480 = vmul.f32 %v473, %v478
          %v482 = vlaneseq
          %v483 = vshrl.u32 %v482, 7
          %v484 = vsub.s32 0, %v483
          %v485 = vrot.slane %v458, %v484
          %v487 = vadd.f32 %v480, %v485
          %v488 = vpack.c.bf16 %v487, %v487
          %vm489 = vcmask 257024
          %490 = vst.msk [vmem:[#allocation2] sm:$0xf] %vm489, %v488
          %v491 = vld [vmem:[%s3] sm:$0xf]
          %v492 = vld [vmem:[%s3 + $0x4] sm:$0xf]
          %v493 = vld [vmem:[%s3 + $0x8] sm:$0xf]
          %v494 = vld [vmem:[%s3 + $0xc] sm:$0xf]
          %v495 = vld [vmem:[%s4] sm:$0x1]
          %v497 = vlaneseq
          %v498 = vshrl.u32 %v497, 7
          %v499 = vsub.s32 0, %v498
          %v500 = vrot.slane %v495, %v499
          %v505 = vunpack.c.l.b16 %v491
          %v506 = vunpack.c.l.b16 %v492
          %v507 = vunpack.c.l.b16 %v493
          %v508 = vunpack.c.l.b16 %v494
          %v509 = vpack.c.b16 %v506, %v505
          %v510 = vpack.c.b16 %v508, %v507
          %511 = vrot.lane.b32.xlu0 %v509, 96
          %v512 = vpop.permute.xlu0 %511
          %513 = vrot.lane.b32.xlu0 %v510, 96
          %v514 = vpop.permute.xlu0 %513
          %517 = vrot.lane.b32.xlu0 %v500, 96
          %v518 = vpop.permute.xlu0 %517
          %v521 = vsel %vm459, %v488, 0
          %523 = vmatprep.subr.bf16.mxu0 0
          %524 = vmatpush1.bf16.msra.mxu0 %v512
          %525 = vmatprep.subr.bf16.mxu0 0
          %526 = vmatpush1.bf16.msra.mxu0 %v514
          %527 = vmatprep.subr.bf16.mxu0 0
          %528 = vmatpush1.bf16.msra.mxu0 0
          %529 = vmatprep.subr.bf16.mxu0 0
          %530 = vmatpush1.bf16.msra.mxu0 0
          %531 = vmatprep.subr.bf16.mxu0 0
          %532 = vmatpush1.bf16.msra.mxu0 0
          %533 = vmatprep.subr.bf16.mxu0 0
          %534 = vmatpush1.bf16.msra.mxu0 0
          %535 = vmatprep.subr.bf16.mxu0 0
          %536 = vmatpush1.bf16.msra.mxu0 0
          %537 = vmatprep.subr.bf16.mxu0 0
          %538 = vmatpush1.bf16.msra.mxu0 0
          %539 = vmatprep.subr.bf16.mxu0 0
          %540 = vmatpush1.bf16.msra.mxu0 0
          %541 = vmatprep.subr.bf16.mxu0 0
          %542 = vmatpush1.bf16.msra.mxu0 0
          %543 = vmatprep.subr.bf16.mxu0 0
          %544 = vmatpush1.bf16.msra.mxu0 0
          %545 = vmatprep.subr.bf16.mxu0 0
          %546 = vmatpush1.bf16.msra.mxu0 0
          %547 = vmatprep.subr.bf16.mxu0 0
          %548 = vmatpush1.bf16.msra.mxu0 0
          %549 = vmatprep.subr.bf16.mxu0 0
          %550 = vmatpush1.bf16.msra.mxu0 0
          %551 = vmatprep.subr.bf16.mxu0 0
          %552 = vmatpush1.bf16.msra.mxu0 0
          %553 = vmatprep.subr.bf16.mxu0 0
          %554 = vmatpush1.bf16.msra.mxu0 0
          %555 = vmatprep.mubr.bf16.mxu0 0
          %556 = vmatmul.mubr.bf16.gmra.mrb[0].mxu0 %v521
          %v557 = vpop.f32.mrb[0].mxu0
          %v558 = vadd.f32 %v518, %v557
          %v559 = vpop.f32.mrb[0].mxu0
          %v560 = vpop.f32.mrb[0].mxu0
          %v561 = vpop.f32.mrb[0].mxu0
          %562 = vdwg.mxu0
          %v563 = vpack.c.bf16 %v558, %v558
          %565 = vrot.lane.b32.xlu0 %v563, 120
          %v566 = vpop.permute.xlu0 %565
          %568 = vrot.lane.b32.xlu0 %v563, 112
          %v569 = vpop.permute.xlu0 %568
          %571 = vrot.lane.b32.xlu0 %v563, 104
          %v572 = vpop.permute.xlu0 %571
          %vm574 = vcmask 60416
          %575 = vst.msk [vmem:[#allocation3] sm:$0xf] %vm574, %v563
          %576 = vst.msk [vmem:[#allocation3 + $0x4] sm:$0xf] %vm574, %v566
          %577 = vst.msk [vmem:[#allocation3 + $0x8] sm:$0xf] %vm574, %v569
          %578 = vst.msk [vmem:[#allocation3 + $0xc] sm:$0xf] %vm574, %v572
          %v579 = vunpack.c.l.b16 %v563
          %v580 = vunpack.c.l.b16 %v566
          %v581 = vunpack.c.l.b16 %v569
          %v582 = vunpack.c.l.b16 %v572
          %v583 = vpack.c.b16 %v579, %v579
          %v584 = vpack.c.b16 %v580, %v580
          %v585 = vpack.c.b16 %v581, %v581
          %v586 = vpack.c.b16 %v582, %v582
          %587 = vrot.lane.b32.xlu0 %v583, 96
          %v588 = vpop.permute.xlu0 %587
          %589 = vrot.lane.b32.xlu0 %v584, 96
          %v590 = vpop.permute.xlu0 %589
          %591 = vrot.lane.b32.xlu0 %v585, 96
          %v592 = vpop.permute.xlu0 %591
          %593 = vrot.lane.b32.xlu0 %v586, 96
          %v594 = vpop.permute.xlu0 %593
          %599 = vst.msk [vmem:[#allocation4] sm:$0xf] %vm574, %v588
          %600 = vst.msk [vmem:[#allocation4 + $0x4] sm:$0xf] %vm574, %v590
          %601 = vst.msk [vmem:[#allocation4 + $0x8] sm:$0xf] %vm574, %v592
          %602 = vst.msk [vmem:[#allocation4 + $0xc] sm:$0xf] %vm574, %v594
        $region76: #{transformer_apply.3} parent=71 // pred_fallthru
          _
        %s603 = scalar_lea.vmem %s449, %s451
        %v604 = vld [vmem:[%s603] sm:$0xff]
        %s605 = sshra.s32 %s451, 3
        %s606 = sand.u32 %s451, 7
        %s607 = smul.addr %s605, 4
        %s608 = scalar_lea.vmem [#allocation2], %s607
        %v609 = vld [vmem:[%s608] sm:$0xf]
        %v610 = vld [vmem:[%s3] sm:$0xf]
        %v611 = vld [vmem:[%s3 + $0x4] sm:$0xf]
        %v612 = vld [vmem:[%s3 + $0x8] sm:$0xf]
        %v613 = vld [vmem:[%s3 + $0xc] sm:$0xf]
        %v614 = vld [vmem:[%s4] sm:$0x1]
        %v616 = vlaneseq
        %v617 = vshrl.u32 %v616, 7
        %v618 = vsub.s32 0, %v617
        %v619 = vrot.slane %v614, %v618
        %v625 = vunpack.c.l.b16 %v610
        %v626 = vunpack.c.l.b16 %v611
        %v627 = vunpack.c.l.b16 %v612
        %v628 = vunpack.c.l.b16 %v613
        %v629 = vpack.c.b16 %v626, %v625
        %v630 = vpack.c.b16 %v628, %v627
        %vm633 = vcmask 261120
        %v635 = vsel %vm633, %v609, 0
        %637 = vmatprep.subr.bf16.mxu0 0
        %638 = vmatpush1.bf16.msra.mxu0 %v629
        %639 = vmatprep.subr.bf16.mxu0 0
        %640 = vmatpush1.bf16.msra.mxu0 %v630
        %641 = vmatprep.subr.bf16.mxu0 0
        %642 = vmatpush1.bf16.msra.mxu0 0
        %643 = vmatprep.subr.bf16.mxu0 0
        %644 = vmatpush1.bf16.msra.mxu0 0
        %645 = vmatprep.subr.bf16.mxu0 0
        %646 = vmatpush1.bf16.msra.mxu0 0
        %647 = vmatprep.subr.bf16.mxu0 0
        %648 = vmatpush1.bf16.msra.mxu0 0
        %649 = vmatprep.subr.bf16.mxu0 0
        %650 = vmatpush1.bf16.msra.mxu0 0
        %651 = vmatprep.subr.bf16.mxu0 0
        %652 = vmatpush1.bf16.msra.mxu0 0
        %653 = vmatprep.subr.bf16.mxu0 0
        %654 = vmatpush1.bf16.msra.mxu0 0
        %655 = vmatprep.subr.bf16.mxu0 0
        %656 = vmatpush1.bf16.msra.mxu0 0
        %657 = vmatprep.subr.bf16.mxu0 0
        %658 = vmatpush1.bf16.msra.mxu0 0
        %659 = vmatprep.subr.bf16.mxu0 0
        %660 = vmatpush1.bf16.msra.mxu0 0
        %661 = vmatprep.subr.bf16.mxu0 0
        %662 = vmatpush1.bf16.msra.mxu0 0
        %663 = vmatprep.subr.bf16.mxu0 0
        %664 = vmatpush1.bf16.msra.mxu0 0
        %665 = vmatprep.subr.bf16.mxu0 0
        %666 = vmatpush1.bf16.msra.mxu0 0
        %667 = vmatprep.subr.bf16.mxu0 0
        %668 = vmatpush1.bf16.msra.mxu0 0
        %669 = vmatprep.mubr.bf16.mxu0 0
        %670 = vmatmul.mubr.bf16.gmra.mrb[0].mxu0 %v635
        %v671 = vpop.f32.mrb[0].mxu0
        %v672 = vadd.f32 %v619, %v671
        %v673 = vpop.f32.mrb[0].mxu0
        %v674 = vpop.f32.mrb[0].mxu0
        %v675 = vpop.f32.mrb[0].mxu0
        %676 = vdwg.mxu0
        %v677 = vpack.c.bf16 %v672, %v672
        %679 = vrot.lane.b32.xlu0 %v677, 120
        %v680 = vpop.permute.xlu0 %679
        %681 = vrot.lane.b32.xlu0 %v677, 112
        %v682 = vpop.permute.xlu0 %681
        %683 = vrot.lane.b32.xlu0 %v677, 104
        %v684 = vpop.permute.xlu0 %683
        %v685 = vld [vmem:[#allocation3] sm:$0xf]
        %v686 = vld [vmem:[#allocation3 + $0x4] sm:$0xf]
        %v687 = vld [vmem:[#allocation3 + $0x8] sm:$0xf]
        %v688 = vld [vmem:[#allocation3 + $0xc] sm:$0xf]
        %v689 = vld [vmem:[#allocation4] sm:$0xf]
        %v690 = vld [vmem:[#allocation4 + $0x4] sm:$0xf]
        %v691 = vld [vmem:[#allocation4 + $0x8] sm:$0xf]
        %v692 = vld [vmem:[#allocation4 + $0xc] sm:$0xf]
        %vm693 = vcmask 64512
        %v695 = vsel %vm693, %v677, 0
        %v698 = vsel %vm693, %v685, 0
        %700 = vmatprep.subr.bf16.mxu0 0
        %701 = vmatpush1.bf16.xpose.msra.mxu0 %v698
        %702 = vmatprep.subr.bf16.mxu0 0
        %703 = vmatpush1.bf16.xpose.msra.mxu0 0
        %704 = vmatprep.subr.bf16.mxu0 0
        %705 = vmatpush1.bf16.xpose.msra.mxu0 0
        %706 = vmatprep.subr.bf16.mxu0 0
        %707 = vmatpush1.bf16.xpose.msra.mxu0 0
        %708 = vmatprep.subr.bf16.mxu0 0
        %709 = vmatpush1.bf16.xpose.msra.mxu0 0
        %710 = vmatprep.subr.bf16.mxu0 0
        %711 = vmatpush1.bf16.xpose.msra.mxu0 0
        %712 = vmatprep.subr.bf16.mxu0 0
        %713 = vmatpush1.bf16.xpose.msra.mxu0 0
        %714 = vmatprep.subr.bf16.mxu0 0
        %715 = vmatpush1.bf16.xpose.msra.mxu0 0
        %716 = vmatprep.subr.bf16.mxu0 0
        %717 = vmatpush1.bf16.xpose.msra.mxu0 0
        %718 = vmatprep.subr.bf16.mxu0 0
        %719 = vmatpush1.bf16.xpose.msra.mxu0 0
        %720 = vmatprep.subr.bf16.mxu0 0
        %721 = vmatpush1.bf16.xpose.msra.mxu0 0
        %722 = vmatprep.subr.bf16.mxu0 0
        %723 = vmatpush1.bf16.xpose.msra.mxu0 0
        %724 = vmatprep.subr.bf16.mxu0 0
        %725 = vmatpush1.bf16.xpose.msra.mxu0 0
        %726 = vmatprep.subr.bf16.mxu0 0
        %727 = vmatpush1.bf16.xpose.msra.mxu0 0
        %728 = vmatprep.subr.bf16.mxu0 0
        %729 = vmatpush1.bf16.xpose.msra.mxu0 0
        %730 = vmatprep.subr.bf16.mxu0 0
        %731 = vmatpush1.bf16.xpose.msra.mxu0 0
        %732 = vmatprep.mubr.bf16.mxu0 0
        %733 = vmatmul.mubr.bf16.gmra.mrb[0].mxu0 %v695
        %v734 = vpop.f32.mrb[0].mxu0
        %v735 = vadd.f32 0.0, %v734
        %v736 = vpop.f32.mrb[0].mxu0
        %v737 = vpop.f32.mrb[0].mxu0
        %v738 = vpop.f32.mrb[0].mxu0
        %739 = vdwg.mxu0
        %v741 = vsel %vm693, %v680, 0
        %v744 = vsel %vm693, %v686, 0
        %746 = vmatprep.subr.bf16.mxu0 0
        %747 = vmatpush1.bf16.xpose.msra.mxu0 %v744
        %748 = vmatprep.subr.bf16.mxu0 0
        %749 = vmatpush1.bf16.xpose.msra.mxu0 0
        %750 = vmatprep.subr.bf16.mxu0 0
        %751 = vmatpush1.bf16.xpose.msra.mxu0 0
        %752 = vmatprep.subr.bf16.mxu0 0
        %753 = vmatpush1.bf16.xpose.msra.mxu0 0
        %754 = vmatprep.subr.bf16.mxu0 0
        %755 = vmatpush1.bf16.xpose.msra.mxu0 0
        %756 = vmatprep.subr.bf16.mxu0 0
        %757 = vmatpush1.bf16.xpose.msra.mxu0 0
        %758 = vmatprep.subr.bf16.mxu0 0
        %759 = vmatpush1.bf16.xpose.msra.mxu0 0
        %760 = vmatprep.subr.bf16.mxu0 0
        %761 = vmatpush1.bf16.xpose.msra.mxu0 0
        %762 = vmatprep.subr.bf16.mxu0 0
        %763 = vmatpush1.bf16.xpose.msra.mxu0 0
        %764 = vmatprep.subr.bf16.mxu0 0
        %765 = vmatpush1.bf16.xpose.msra.mxu0 0
        %766 = vmatprep.subr.bf16.mxu0 0
        %767 = vmatpush1.bf16.xpose.msra.mxu0 0
        %768 = vmatprep.subr.bf16.mxu0 0
        %769 = vmatpush1.bf16.xpose.msra.mxu0 0
        %770 = vmatprep.subr.bf16.mxu0 0
        %771 = vmatpush1.bf16.xpose.msra.mxu0 0
        %772 = vmatprep.subr.bf16.mxu0 0
        %773 = vmatpush1.bf16.xpose.msra.mxu0 0
        %774 = vmatprep.subr.bf16.mxu0 0
        %775 = vmatpush1.bf16.xpose.msra.mxu0 0
        %776 = vmatprep.subr.bf16.mxu0 0
        %777 = vmatpush1.bf16.xpose.msra.mxu0 0
        %778 = vmatprep.mubr.bf16.mxu0 0
        %779 = vmatmul.mubr.bf16.gmra.mrb[0].mxu0 %v741
        %v780 = vpop.f32.mrb[0].mxu0
        %v781 = vadd.f32 0.0, %v780
        %v782 = vpop.f32.mrb[0].mxu0
        %v783 = vpop.f32.mrb[0].mxu0
        %v784 = vpop.f32.mrb[0].mxu0
        %785 = vdwg.mxu0
        %v787 = vsel %vm693, %v682, 0
        %v790 = vsel %vm693, %v687, 0
        %792 = vmatprep.subr.bf16.mxu0 0
        %793 = vmatpush1.bf16.xpose.msra.mxu0 %v790
        %794 = vmatprep.subr.bf16.mxu0 0
        %795 = vmatpush1.bf16.xpose.msra.mxu0 0
        %796 = vmatprep.subr.bf16.mxu0 0
        %797 = vmatpush1.bf16.xpose.msra.mxu0 0
        %798 = vmatprep.subr.bf16.mxu0 0
        %799 = vmatpush1.bf16.xpose.msra.mxu0 0
        %800 = vmatprep.subr.bf16.mxu0 0
        %801 = vmatpush1.bf16.xpose.msra.mxu0 0
        %802 = vmatprep.subr.bf16.mxu0 0
        %803 = vmatpush1.bf16.xpose.msra.mxu0 0
        %804 = vmatprep.subr.bf16.mxu0 0
        %805 = vmatpush1.bf16.xpose.msra.mxu0 0
        %806 = vmatprep.subr.bf16.mxu0 0
        %807 = vmatpush1.bf16.xpose.msra.mxu0 0
        %808 = vmatprep.subr.bf16.mxu0 0
        %809 = vmatpush1.bf16.xpose.msra.mxu0 0
        %810 = vmatprep.subr.bf16.mxu0 0
        %811 = vmatpush1.bf16.xpose.msra.mxu0 0
        %812 = vmatprep.subr.bf16.mxu0 0
        %813 = vmatpush1.bf16.xpose.msra.mxu0 0
        %814 = vmatprep.subr.bf16.mxu0 0
        %815 = vmatpush1.bf16.xpose.msra.mxu0 0
        %816 = vmatprep.subr.bf16.mxu0 0
        %817 = vmatpush1.bf16.xpose.msra.mxu0 0
        %818 = vmatprep.subr.bf16.mxu0 0
        %819 = vmatpush1.bf16.xpose.msra.mxu0 0
        %820 = vmatprep.subr.bf16.mxu0 0
        %821 = vmatpush1.bf16.xpose.msra.mxu0 0
        %822 = vmatprep.subr.bf16.mxu0 0
        %823 = vmatpush1.bf16.xpose.msra.mxu0 0
        %824 = vmatprep.mubr.bf16.mxu0 0
        %825 = vmatmul.mubr.bf16.gmra.mrb[0].mxu0 %v787
        %v826 = vpop.f32.mrb[0].mxu0
        %v827 = vadd.f32 0.0, %v826
        %v828 = vpop.f32.mrb[0].mxu0
        %v829 = vpop.f32.mrb[0].mxu0
        %v830 = vpop.f32.mrb[0].mxu0
        %831 = vdwg.mxu0
        %v833 = vsel %vm693, %v684, 0
        %v836 = vsel %vm693, %v688, 0
        %838 = vmatprep.subr.bf16.mxu0 0
        %839 = vmatpush1.bf16.xpose.msra.mxu0 %v836
        %840 = vmatprep.subr.bf16.mxu0 0
        %841 = vmatpush1.bf16.xpose.msra.mxu0 0
        %842 = vmatprep.subr.bf16.mxu0 0
        %843 = vmatpush1.bf16.xpose.msra.mxu0 0
        %844 = vmatprep.subr.bf16.mxu0 0
        %845 = vmatpush1.bf16.xpose.msra.mxu0 0
        %846 = vmatprep.subr.bf16.mxu0 0
        %847 = vmatpush1.bf16.xpose.msra.mxu0 0
        %848 = vmatprep.subr.bf16.mxu0 0
        %849 = vmatpush1.bf16.xpose.msra.mxu0 0
        %850 = vmatprep.subr.bf16.mxu0 0
        %851 = vmatpush1.bf16.xpose.msra.mxu0 0
        %852 = vmatprep.subr.bf16.mxu0 0
        %853 = vmatpush1.bf16.xpose.msra.mxu0 0
        %854 = vmatprep.subr.bf16.mxu0 0
        %855 = vmatpush1.bf16.xpose.msra.mxu0 0
        %856 = vmatprep.subr.bf16.mxu0 0
        %857 = vmatpush1.bf16.xpose.msra.mxu0 0
        %858 = vmatprep.subr.bf16.mxu0 0
        %859 = vmatpush1.bf16.xpose.msra.mxu0 0
        %860 = vmatprep.subr.bf16.mxu0 0
        %861 = vmatpush1.bf16.xpose.msra.mxu0 0
        %862 = vmatprep.subr.bf16.mxu0 0
        %863 = vmatpush1.bf16.xpose.msra.mxu0 0
        %864 = vmatprep.subr.bf16.mxu0 0
        %865 = vmatpush1.bf16.xpose.msra.mxu0 0
        %866 = vmatprep.subr.bf16.mxu0 0
        %867 = vmatpush1.bf16.xpose.msra.mxu0 0
        %868 = vmatprep.subr.bf16.mxu0 0
        %869 = vmatpush1.bf16.xpose.msra.mxu0 0
        %870 = vmatprep.mubr.bf16.mxu0 0
        %871 = vmatmul.mubr.bf16.gmra.mrb[0].mxu0 %v833
        %v872 = vpop.f32.mrb[0].mxu0
        %v873 = vadd.f32 0.0, %v872
        %v874 = vpop.f32.mrb[0].mxu0
        %v875 = vpop.f32.mrb[0].mxu0
        %v876 = vpop.f32.mrb[0].mxu0
        %877 = vdwg.mxu0
        %v878 = vsel %vm693, %v735, -inf
        %879 = vmax.xlane.f32.xlu0 %v878
        %v880 = vpop.xlane.xlu0 %879
        %v881 = vsel %vm693, %v781, -inf
        %882 = vmax.xlane.f32.xlu0 %v881
        %v883 = vpop.xlane.xlu0 %882
        %v884 = vsel %vm693, %v827, -inf
        %885 = vmax.xlane.f32.xlu0 %v884
        %v886 = vpop.xlane.xlu0 %885
        %v887 = vsel %vm693, %v873, -inf
        %888 = vmax.xlane.f32.xlu0 %v887
        %v889 = vpop.xlane.xlu0 %888
        %v890 = vsub.f32 %v735, %v880
        %v891 = vsub.f32 %v781, %v883
        %v892 = vsub.f32 %v827, %v886
        %v893 = vsub.f32 %v873, %v889
        %v894 = vmul.f32 %v890, 1.442695
        %v895 = vpow.pop %v894
        %v896 = vmul.f32 %v891, 1.442695
        %v897 = vpow.pop %v896
        %v898 = vmul.f32 %v892, 1.442695
        %v899 = vpow.pop %v898
        %v900 = vmul.f32 %v893, 1.442695
        %v901 = vpow.pop %v900
        %v902 = vsel %vm693, %v895, 0.0
        %903 = vadd.xlane.f32.xlu0 %v902
        %v904 = vpop.xlane.xlu0 %903
        %v905 = vsel %vm693, %v897, 0.0
        %906 = vadd.xlane.f32.xlu0 %v905
        %v907 = vpop.xlane.xlu0 %906
        %v908 = vsel %vm693, %v899, 0.0
        %909 = vadd.xlane.f32.xlu0 %v908
        %v910 = vpop.xlane.xlu0 %909
        %v911 = vsel %vm693, %v901, 0.0
        %912 = vadd.xlane.f32.xlu0 %v911
        %v913 = vpop.xlane.xlu0 %912
        %v914 = vrcp.pop %v904
        %v915 = vrcp.pop %v907
        %v916 = vrcp.pop %v910
        %v917 = vrcp.pop %v913
        %v918 = vmul.f32 %v895, %v914
        %v919 = vmul.f32 %v897, %v915
        %v920 = vmul.f32 %v899, %v916
        %v921 = vmul.f32 %v901, %v917
        %v922 = vpack.c.bf16 %v918, %v918
        %v923 = vpack.c.bf16 %v919, %v919
        %v924 = vpack.c.bf16 %v920, %v920
        %v925 = vpack.c.bf16 %v921, %v921
        %v927 = vsel %vm693, %v922, 0
        %vm929 = vcmask 1043456
        %v931 = vsel %vm929, %v689, 0
        %933 = vmatprep.subr.bf16.mxu0 0
        %934 = vmatpush1.bf16.msra.mxu0 %v931
        %935 = vmatprep.subr.bf16.mxu0 0
        %936 = vmatpush1.bf16.msra.mxu0 0
        %937 = vmatprep.subr.bf16.mxu0 0
        %938 = vmatpush1.bf16.msra.mxu0 0
        %939 = vmatprep.subr.bf16.mxu0 0
        %940 = vmatpush1.bf16.msra.mxu0 0
        %941 = vmatprep.subr.bf16.mxu0 0
        %942 = vmatpush1.bf16.msra.mxu0 0
        %943 = vmatprep.subr.bf16.mxu0 0
        %944 = vmatpush1.bf16.msra.mxu0 0
        %945 = vmatprep.subr.bf16.mxu0 0
        %946 = vmatpush1.bf16.msra.mxu0 0
        %947 = vmatprep.subr.bf16.mxu0 0
        %948 = vmatpush1.bf16.msra.mxu0 0
        %949 = vmatprep.subr.bf16.mxu0 0
        %950 = vmatpush1.bf16.msra.mxu0 0
        %951 = vmatprep.subr.bf16.mxu0 0
        %952 = vmatpush1.bf16.msra.mxu0 0
        %953 = vmatprep.subr.bf16.mxu0 0
        %954 = vmatpush1.bf16.msra.mxu0 0
        %955 = vmatprep.subr.bf16.mxu0 0
        %956 = vmatpush1.bf16.msra.mxu0 0
        %957 = vmatprep.subr.bf16.mxu0 0
        %958 = vmatpush1.bf16.msra.mxu0 0
        %959 = vmatprep.subr.bf16.mxu0 0
        %960 = vmatpush1.bf16.msra.mxu0 0
        %961 = vmatprep.subr.bf16.mxu0 0
        %962 = vmatpush1.bf16.msra.mxu0 0
        %963 = vmatprep.subr.bf16.mxu0 0
        %964 = vmatpush1.bf16.msra.mxu0 0
        %965 = vmatprep.mubr.bf16.mxu0 0
        %966 = vmatmul.mubr.bf16.gmra.mrb[0].mxu0 %v927
        %v967 = vpop.f32.mrb[0].mxu0
        %v968 = vadd.f32 0.0, %v967
        %v969 = vpop.f32.mrb[0].mxu0
        %v970 = vpop.f32.mrb[0].mxu0
        %v971 = vpop.f32.mrb[0].mxu0
        %972 = vdwg.mxu0
        %v974 = vsel %vm693, %v923, 0
        %v977 = vsel %vm929, %v690, 0
        %979 = vmatprep.subr.bf16.mxu0 0
        %980 = vmatpush1.bf16.msra.mxu0 %v977
        %981 = vmatprep.subr.bf16.mxu0 0
        %982 = vmatpush1.bf16.msra.mxu0 0
        %983 = vmatprep.subr.bf16.mxu0 0
        %984 = vmatpush1.bf16.msra.mxu0 0
        %985 = vmatprep.subr.bf16.mxu0 0
        %986 = vmatpush1.bf16.msra.mxu0 0
        %987 = vmatprep.subr.bf16.mxu0 0
        %988 = vmatpush1.bf16.msra.mxu0 0
        %989 = vmatprep.subr.bf16.mxu0 0
        %990 = vmatpush1.bf16.msra.mxu0 0
        %991 = vmatprep.subr.bf16.mxu0 0
        %992 = vmatpush1.bf16.msra.mxu0 0
        %993 = vmatprep.subr.bf16.mxu0 0
        %994 = vmatpush1.bf16.msra.mxu0 0
        %995 = vmatprep.subr.bf16.mxu0 0
        %996 = vmatpush1.bf16.msra.mxu0 0
        %997 = vmatprep.subr.bf16.mxu0 0
        %998 = vmatpush1.bf16.msra.mxu0 0
        %999 = vmatprep.subr.bf16.mxu0 0
        %1000 = vmatpush1.bf16.msra.mxu0 0
        %1001 = vmatprep.subr.bf16.mxu0 0
        %1002 = vmatpush1.bf16.msra.mxu0 0
        %1003 = vmatprep.subr.bf16.mxu0 0
        %1004 = vmatpush1.bf16.msra.mxu0 0
        %1005 = vmatprep.subr.bf16.mxu0 0
        %1006 = vmatpush1.bf16.msra.mxu0 0
        %1007 = vmatprep.subr.bf16.mxu0 0
        %1008 = vmatpush1.bf16.msra.mxu0 0
        %1009 = vmatprep.subr.bf16.mxu0 0
        %1010 = vmatpush1.bf16.msra.mxu0 0
        %1011 = vmatprep.mubr.bf16.mxu0 0
        %1012 = vmatmul.mubr.bf16.gmra.mrb[0].mxu0 %v974
        %v1013 = vpop.f32.mrb[0].mxu0
        %v1014 = vadd.f32 0.0, %v1013
        %v1015 = vpop.f32.mrb[0].mxu0
        %v1016 = vpop.f32.mrb[0].mxu0
        %v1017 = vpop.f32.mrb[0].mxu0
        %1018 = vdwg.mxu0
        %v1020 = vsel %vm693, %v924, 0
        %v1023 = vsel %vm929, %v691, 0
        %1025 = vmatprep.subr.bf16.mxu0 0
        %1026 = vmatpush1.bf16.msra.mxu0 %v1023
        %1027 = vmatprep.subr.bf16.mxu0 0
        %1028 = vmatpush1.bf16.msra.mxu0 0
        %1029 = vmatprep.subr.bf16.mxu0 0
        %1030 = vmatpush1.bf16.msra.mxu0 0
        %1031 = vmatprep.subr.bf16.mxu0 0
        %1032 = vmatpush1.bf16.msra.mxu0 0
        %1033 = vmatprep.subr.bf16.mxu0 0
        %1034 = vmatpush1.bf16.msra.mxu0 0
        %1035 = vmatprep.subr.bf16.mxu0 0
        %1036 = vmatpush1.bf16.msra.mxu0 0
        %1037 = vmatprep.subr.bf16.mxu0 0
        %1038 = vmatpush1.bf16.msra.mxu0 0
        %1039 = vmatprep.subr.bf16.mxu0 0
        %1040 = vmatpush1.bf16.msra.mxu0 0
        %1041 = vmatprep.subr.bf16.mxu0 0
        %1042 = vmatpush1.bf16.msra.mxu0 0
        %1043 = vmatprep.subr.bf16.mxu0 0
        %1044 = vmatpush1.bf16.msra.mxu0 0
        %1045 = vmatprep.subr.bf16.mxu0 0
        %1046 = vmatpush1.bf16.msra.mxu0 0
        %1047 = vmatprep.subr.bf16.mxu0 0
        %1048 = vmatpush1.bf16.msra.mxu0 0
        %1049 = vmatprep.subr.bf16.mxu0 0
        %1050 = vmatpush1.bf16.msra.mxu0 0
        %1051 = vmatprep.subr.bf16.mxu0 0
        %1052 = vmatpush1.bf16.msra.mxu0 0
        %1053 = vmatprep.subr.bf16.mxu0 0
        %1054 = vmatpush1.bf16.msra.mxu0 0
        %1055 = vmatprep.subr.bf16.mxu0 0
        %1056 = vmatpush1.bf16.msra.mxu0 0
        %1057 = vmatprep.mubr.bf16.mxu0 0
        %1058 = vmatmul.mubr.bf16.gmra.mrb[0].mxu0 %v1020
        %v1059 = vpop.f32.mrb[0].mxu0
        %v1060 = vadd.f32 0.0, %v1059
        %v1061 = vpop.f32.mrb[0].mxu0
        %v1062 = vpop.f32.mrb[0].mxu0
        %v1063 = vpop.f32.mrb[0].mxu0
        %1064 = vdwg.mxu0
        %v1066 = vsel %vm693, %v925, 0
        %v1069 = vsel %vm929, %v692, 0
        %1071 = vmatprep.subr.bf16.mxu0 0
        %1072 = vmatpush1.bf16.msra.mxu0 %v1069
        %1073 = vmatprep.subr.bf16.mxu0 0
        %1074 = vmatpush1.bf16.msra.mxu0 0
        %1075 = vmatprep.subr.bf16.mxu0 0
        %1076 = vmatpush1.bf16.msra.mxu0 0
        %1077 = vmatprep.subr.bf16.mxu0 0
        %1078 = vmatpush1.bf16.msra.mxu0 0
        %1079 = vmatprep.subr.bf16.mxu0 0
        %1080 = vmatpush1.bf16.msra.mxu0 0
        %1081 = vmatprep.subr.bf16.mxu0 0
        %1082 = vmatpush1.bf16.msra.mxu0 0
        %1083 = vmatprep.subr.bf16.mxu0 0
        %1084 = vmatpush1.bf16.msra.mxu0 0
        %1085 = vmatprep.subr.bf16.mxu0 0
        %1086 = vmatpush1.bf16.msra.mxu0 0
        %1087 = vmatprep.subr.bf16.mxu0 0
        %1088 = vmatpush1.bf16.msra.mxu0 0
        %1089 = vmatprep.subr.bf16.mxu0 0
        %1090 = vmatpush1.bf16.msra.mxu0 0
        %1091 = vmatprep.subr.bf16.mxu0 0
        %1092 = vmatpush1.bf16.msra.mxu0 0
        %1093 = vmatprep.subr.bf16.mxu0 0
        %1094 = vmatpush1.bf16.msra.mxu0 0
        %1095 = vmatprep.subr.bf16.mxu0 0
        %1096 = vmatpush1.bf16.msra.mxu0 0
        %1097 = vmatprep.subr.bf16.mxu0 0
        %1098 = vmatpush1.bf16.msra.mxu0 0
        %1099 = vmatprep.subr.bf16.mxu0 0
        %1100 = vmatpush1.bf16.msra.mxu0 0
        %1101 = vmatprep.subr.bf16.mxu0 0
        %1102 = vmatpush1.bf16.msra.mxu0 0
        %1103 = vmatprep.mubr.bf16.mxu0 0
        %1104 = vmatmul.mubr.bf16.gmra.mrb[0].mxu0 %v1066
        %v1105 = vpop.f32.mrb[0].mxu0
        %v1106 = vadd.f32 0.0, %v1105
        %v1107 = vpop.f32.mrb[0].mxu0
        %v1108 = vpop.f32.mrb[0].mxu0
        %v1109 = vpop.f32.mrb[0].mxu0
        %1110 = vdwg.mxu0
        %1112 = vrot.lane.b32.xlu0 %v1014, 8
        %v1113 = vpop.permute.xlu0 %1112
        %1116 = vrot.lane.b32.xlu0 %v1060, 16
        %v1117 = vpop.permute.xlu0 %1116
        %1120 = vrot.lane.b32.xlu0 %v1106, 24
        %v1121 = vpop.permute.xlu0 %1120
        %v1123 = vsel %vm693, %v968, %v1113
        %vm1124 = vcmask 130048
        %v1125 = vsel %vm1124, %v1123, %v1117
        %vm1126 = vcmask 195584
        %v1127 = vsel %vm1126, %v1125, %v1121
        %v1128 = vpack.c.bf16 %v1127, %v1127
        %v1129 = vld [vmem:[%s5] sm:$0xf]
        %v1130 = vld [vmem:[%s5 + $0x4] sm:$0xf]
        %v1131 = vld [vmem:[%s5 + $0x8] sm:$0xf]
        %v1132 = vld [vmem:[%s5 + $0xc] sm:$0xf]
        %v1133 = vld [vmem:[%s6] sm:$0x1]
        %v1135 = vlaneseq
        %v1136 = vshrl.u32 %v1135, 7
        %v1137 = vsub.s32 0, %v1136
        %v1138 = vrot.slane %v1133, %v1137
        %v1144 = vunpack.c.l.b16 %v1129
        %v1145 = vunpack.c.l.b16 %v1130
        %v1146 = vunpack.c.l.b16 %v1131
        %v1147 = vunpack.c.l.b16 %v1132
        %v1148 = vpack.c.b16 %v1145, %v1144
        %v1149 = vpack.c.b16 %v1147, %v1146
        %v1153 = vsel %vm633, %v1128, 0
        %1155 = vmatprep.subr.bf16.mxu0 0
        %1156 = vmatpush1.bf16.msra.mxu0 %v1148
        %1157 = vmatprep.subr.bf16.mxu0 0
        %1158 = vmatpush1.bf16.msra.mxu0 %v1149
        %1159 = vmatprep.subr.bf16.mxu0 0
        %1160 = vmatpush1.bf16.msra.mxu0 0
        %1161 = vmatprep.subr.bf16.mxu0 0
        %1162 = vmatpush1.bf16.msra.mxu0 0
        %1163 = vmatprep.subr.bf16.mxu0 0
        %1164 = vmatpush1.bf16.msra.mxu0 0
        %1165 = vmatprep.subr.bf16.mxu0 0
        %1166 = vmatpush1.bf16.msra.mxu0 0
        %1167 = vmatprep.subr.bf16.mxu0 0
        %1168 = vmatpush1.bf16.msra.mxu0 0
        %1169 = vmatprep.subr.bf16.mxu0 0
        %1170 = vmatpush1.bf16.msra.mxu0 0
        %1171 = vmatprep.subr.bf16.mxu0 0
        %1172 = vmatpush1.bf16.msra.mxu0 0
        %1173 = vmatprep.subr.bf16.mxu0 0
        %1174 = vmatpush1.bf16.msra.mxu0 0
        %1175 = vmatprep.subr.bf16.mxu0 0
        %1176 = vmatpush1.bf16.msra.mxu0 0
        %1177 = vmatprep.subr.bf16.mxu0 0
        %1178 = vmatpush1.bf16.msra.mxu0 0
        %1179 = vmatprep.subr.bf16.mxu0 0
        %1180 = vmatpush1.bf16.msra.mxu0 0
        %1181 = vmatprep.subr.bf16.mxu0 0
        %1182 = vmatpush1.bf16.msra.mxu0 0
        %1183 = vmatprep.subr.bf16.mxu0 0
        %1184 = vmatpush1.bf16.msra.mxu0 0
        %1185 = vmatprep.subr.bf16.mxu0 0
        %1186 = vmatpush1.bf16.msra.mxu0 0
        %1187 = vmatprep.mubr.bf16.mxu0 0
        %1188 = vmatmul.mubr.bf16.gmra.mrb[0].mxu0 %v1153
        %v1189 = vpop.f32.mrb[0].mxu0
        %v1190 = vadd.f32 %v1138, %v1189
        %v1191 = vpop.f32.mrb[0].mxu0
        %v1192 = vpop.f32.mrb[0].mxu0
        %v1193 = vpop.f32.mrb[0].mxu0
        %1194 = vdwg.mxu0
        %v1195 = vadd.f32 %v1190, %v604
        %v1196 = vld [vmem:[%s7] sm:$0x1]
        %v1197 = vld [vmem:[%s8] sm:$0x1]
        %v1198 = vsel %vm633, %v1195, 0.0
        %1199 = vadd.xlane.f32.xlu0 %v1198
        %v1200 = vpop.xlane.xlu0 %1199
        %v1201 = vrcp.pop 32.0
        %v1202 = vmul.f32 %v1200, %v1201
        %v1203 = vsub.f32 %v1195, %v1202
        %v1204 = vmul.f32 %v1203, %v1203
        %v1205 = vsel %vm633, %v1204, 0.0
        %1206 = vadd.xlane.f32.xlu0 %v1205
        %v1207 = vpop.xlane.xlu0 %1206
        %v1208 = vmul.f32 %v1207, %v1201
        %v1209 = vadd.f32 %v1208, 1e-05
        %v1210 = vrsqrt.pop %v1209
        %v1211 = vmul.f32 %v1203, %v1210
        %v1213 = vlaneseq
        %v1214 = vshrl.u32 %v1213, 7
        %v1215 = vsub.s32 0, %v1214
        %v1216 = vrot.slane %v1196, %v1215
        %v1218 = vmul.f32 %v1211, %v1216
        %v1220 = vlaneseq
        %v1221 = vshrl.u32 %v1220, 7
        %v1222 = vsub.s32 0, %v1221
        %v1223 = vrot.slane %v1197, %v1222
        %v1225 = vadd.f32 %v1218, %v1223
        %v1226 = vpack.c.bf16 %v1225, %v1225
        %v1227 = vld [vmem:[%s9] sm:$0xf]
        %v1228 = vld [vmem:[%s9 + $0x4] sm:$0xf]
        %v1229 = vld [vmem:[%s9 + $0x8] sm:$0xf]
        %v1230 = vld [vmem:[%s9 + $0xc] sm:$0xf]
        %v1231 = vld [vmem:[%s10] sm:$0x1]
        %v1233 = vlaneseq
        %v1234 = vshrl.u32 %v1233, 7
        %v1235 = vsub.s32 0, %v1234
        %v1236 = vrot.slane %v1231, %v1235
        %v1242 = vunpack.c.l.b16 %v1227
        %v1243 = vunpack.c.l.b16 %v1228
        %v1244 = vunpack.c.l.b16 %v1229
        %v1245 = vunpack.c.l.b16 %v1230
        %v1246 = vpack.c.b16 %v1243, %v1242
        %v1247 = vpack.c.b16 %v1245, %v1244
        %v1251 = vsel %vm633, %v1226, 0
        %1253 = vmatprep.subr.bf16.mxu0 0
        %1254 = vmatpush1.bf16.msra.mxu0 %v1246
        %1255 = vmatprep.subr.bf16.mxu0 0
        %1256 = vmatpush1.bf16.msra.mxu0 %v1247
        %1257 = vmatprep.subr.bf16.mxu0 0
        %1258 = vmatpush1.bf16.msra.mxu0 0
        %1259 = vmatprep.subr.bf16.mxu0 0
        %1260 = vmatpush1.bf16.msra.mxu0 0
        %1261 = vmatprep.subr.bf16.mxu0 0
        %1262 = vmatpush1.bf16.msra.mxu0 0
        %1263 = vmatprep.subr.bf16.mxu0 0
        %1264 = vmatpush1.bf16.msra.mxu0 0
        %1265 = vmatprep.subr.bf16.mxu0 0
        %1266 = vmatpush1.bf16.msra.mxu0 0
        %1267 = vmatprep.subr.bf16.mxu0 0
        %1268 = vmatpush1.bf16.msra.mxu0 0
        %1269 = vmatprep.subr.bf16.mxu0 0
        %1270 = vmatpush1.bf16.msra.mxu0 0
        %1271 = vmatprep.subr.bf16.mxu0 0
        %1272 = vmatpush1.bf16.msra.mxu0 0
        %1273 = vmatprep.subr.bf16.mxu0 0
        %1274 = vmatpush1.bf16.msra.mxu0 0
        %1275 = vmatprep.subr.bf16.mxu0 0
        %1276 = vmatpush1.bf16.msra.mxu0 0
        %1277 = vmatprep.subr.bf16.mxu0 0
        %1278 = vmatpush1.bf16.msra.mxu0 0
        %1279 = vmatprep.subr.bf16.mxu0 0
        %1280 = vmatpush1.bf16.msra.mxu0 0
        %1281 = vmatprep.subr.bf16.mxu0 0
        %1282 = vmatpush1.bf16.msra.mxu0 0
        %1283 = vmatprep.subr.bf16.mxu0 0
        %1284 = vmatpush1.bf16.msra.mxu0 0
        %1285 = vmatprep.mubr.bf16.mxu0 0
        %1286 = vmatmul.mubr.bf16.gmra.mrb[0].mxu0 %v1251
        %v1287 = vpop.f32.mrb[0].mxu0
        %v1288 = vadd.f32 %v1236, %v1287
        %v1289 = vpop.f32.mrb[0].mxu0
        %v1290 = vpop.f32.mrb[0].mxu0
        %v1291 = vpop.f32.mrb[0].mxu0
        %1292 = vdwg.mxu0
        %v1293 = vmul.f32 %v1288, %v1288
        %v1294 = vmul.f32 %v1288, %v1293
        %v1295 = vmul.f32 %v1294, 0.044715
        %v1296 = vadd.f32 %v1288, %v1295
        %v1297 = vmul.f32 %v1296, 0.7978846
        %v1298 = vtanh.pop %v1297
        %v1299 = vadd.f32 %v1298, 1.0
        %v1300 = vmul.f32 %v1299, 0.5
        %v1301 = vmul.f32 %v1288, %v1300
        %v1302 = vpack.c.bf16 %v1301, %v1301
        %v1303 = vld [vmem:[%s11] sm:$0xf]
        %v1304 = vld [vmem:[%s11 + $0x4] sm:$0xf]
        %v1305 = vld [vmem:[%s11 + $0x8] sm:$0xf]
        %v1306 = vld [vmem:[%s11 + $0xc] sm:$0xf]
        %v1307 = vld [vmem:[%s11 + $0x10] sm:$0xf]
        %v1308 = vld [vmem:[%s11 + $0x14] sm:$0xf]
        %v1309 = vld [vmem:[%s11 + $0x18] sm:$0xf]
        %v1310 = vld [vmem:[%s11 + $0x1c] sm:$0xf]
        %v1311 = vld [vmem:[%s12] sm:$0x1]
        %v1313 = vlaneseq
        %v1314 = vshrl.u32 %v1313, 7
        %v1315 = vsub.s32 0, %v1314
        %v1316 = vrot.slane %v1311, %v1315
        %v1326 = vunpack.c.l.b16 %v1303
        %v1327 = vunpack.c.l.b16 %v1304
        %v1328 = vunpack.c.l.b16 %v1305
        %v1329 = vunpack.c.l.b16 %v1306
        %v1330 = vunpack.c.l.b16 %v1307
        %v1331 = vunpack.c.l.b16 %v1308
        %v1332 = vunpack.c.l.b16 %v1309
        %v1333 = vunpack.c.l.b16 %v1310
        %v1334 = vpack.c.b16 %v1327, %v1326
        %v1335 = vpack.c.b16 %v1329, %v1328
        %v1336 = vpack.c.b16 %v1331, %v1330
        %v1337 = vpack.c.b16 %v1333, %v1332
        %vm1342 = vcmask 523264
        %v1344 = vsel %vm1342, %v1302, 0
        %1346 = vmatprep.subr.bf16.mxu0 0
        %1347 = vmatpush1.bf16.msra.mxu0 %v1334
        %1348 = vmatprep.subr.bf16.mxu0 0
        %1349 = vmatpush1.bf16.msra.mxu0 %v1335
        %1350 = vmatprep.subr.bf16.mxu0 0
        %1351 = vmatpush1.bf16.msra.mxu0 %v1336
        %1352 = vmatprep.subr.bf16.mxu0 0
        %1353 = vmatpush1.bf16.msra.mxu0 %v1337
        %1354 = vmatprep.subr.bf16.mxu0 0
        %1355 = vmatpush1.bf16.msra.mxu0 0
        %1356 = vmatprep.subr.bf16.mxu0 0
        %1357 = vmatpush1.bf16.msra.mxu0 0
        %1358 = vmatprep.subr.bf16.mxu0 0
        %1359 = vmatpush1.bf16.msra.mxu0 0
        %1360 = vmatprep.subr.bf16.mxu0 0
        %1361 = vmatpush1.bf16.msra.mxu0 0
        %1362 = vmatprep.subr.bf16.mxu0 0
        %1363 = vmatpush1.bf16.msra.mxu0 0
        %1364 = vmatprep.subr.bf16.mxu0 0
        %1365 = vmatpush1.bf16.msra.mxu0 0
        %1366 = vmatprep.subr.bf16.mxu0 0
        %1367 = vmatpush1.bf16.msra.mxu0 0
        %1368 = vmatprep.subr.bf16.mxu0 0
        %1369 = vmatpush1.bf16.msra.mxu0 0
        %1370 = vmatprep.subr.bf16.mxu0 0
        %1371 = vmatpush1.bf16.msra.mxu0 0
        %1372 = vmatprep.subr.bf16.mxu0 0
        %1373 = vmatpush1.bf16.msra.mxu0 0
        %1374 = vmatprep.subr.bf16.mxu0 0
        %1375 = vmatpush1.bf16.msra.mxu0 0
        %1376 = vmatprep.subr.bf16.mxu0 0
        %1377 = vmatpush1.bf16.msra.mxu0 0
        %1378 = vmatprep.mubr.bf16.mxu0 0
        %1379 = vmatmul.mubr.bf16.gmra.mrb[0].mxu0 %v1344
        %v1380 = vpop.f32.mrb[0].mxu0
        %v1381 = vadd.f32 %v1316, %v1380
        %v1382 = vpop.f32.mrb[0].mxu0
        %v1383 = vpop.f32.mrb[0].mxu0
        %v1384 = vpop.f32.mrb[0].mxu0
        %1385 = vdwg.mxu0
        %v1386 = vadd.f32 %v1381, %v1195
        %1387 = vst.msk [vmem:[%s445] sm:$0xff] %vm633, %v1386
        %s1388 = sand.u32 %s327, 1
        %s1389 = scalar_lea.sflag [#allocation6], %s1388
        %s1390 = sand.u32 %s327, 1
        %s1391 = smul.addr %s1390, 8
        %s1392 = scalar_lea.vmem [#allocation5], %s1391
        // Predicated region
        $region77: #{transformer_apply.3} parent=71 // pred_check
          %p1393 = pneg %p337
        $region78: #{transformer_apply.3} parent=71 // pred_check_branch
          %1395 = sbr.rel (%p1393) target = $region80
        $region79: #{transformer_apply.3} parent=71 // pred_region
          %s1397 = ssub.s32 128, 128
          %1398 = vsyncadd %s1389, %s1397
          %s1399 = sadd.s32 %s32, %s31
          %s1400 = smul.addr %s1399, 128
          %s1401 = scalar_lea.hbm %s13, %s1400
          %s1403 = sshll.u32 %s1392, 4
          %s1404 = int_to_ptr.vmem [resolvable:$true] %s1403
          %1406 = dma.vmem_to_hbm [thread:$0]  %s1404, 128, %s1401, %s1389
        $region80: #{transformer_apply.3} parent=71 // pred_fallthru
          _
      $region72: #{transformer_apply.3} parent=5 // pred_fallthru
        _
      %p1407 = scmp.le.s32.totalorder 2, %s22
      // Predicated region
      $region81: #{transformer_apply.3} parent=5 // pred_check
        %p1408 = pneg %p1407
      $region82: #{transformer_apply.3} parent=5 // pred_check_branch
        %1410 = sbr.rel (%p1408) target = $region84
      $region83: #{transformer_apply.3} parent=5 // pred_region
        %s1411 = ssub.s32 %s22, 2
        // Predicated region
        $region85: #{transformer_apply.3} parent=83 // pred_check
          %p1412 = pneg %p343
        $region86: #{transformer_apply.3} parent=83 // pred_check_branch
          %1414 = sbr.rel (%p1412) target = $region88
        $region87: #{transformer_apply.3} parent=83 // pred_region
          %s1415 = sand.u32 %s328, 1
          %s1416 = scalar_lea.sflag [#allocation6], %s1415
          %s1417 = sand.u32 %s328, 1
          %s1418 = smul.addr %s1417, 8
          %s1419 = scalar_lea.vmem [#allocation5], %s1418
          %1420 = dma.done %s1416, 128
        $region88: #{transformer_apply.3} parent=83 // pred_fallthru
          _
      $region84: #{transformer_apply.3} parent=5 // pred_fallthru
        _
    $region6: #{transformer_apply.3} parent=1 // loop_footer
      %s26 = sadd.s32 1, %s22
    $region7: #{transformer_apply.3} parent=1 // loop_footer_branch
      %21 = sbr.rel target = $region3
    $region8: #{transformer_apply.3} parent=1 // loop_exit
      _
    %1421 = vsyncpa [#allocation6], 1
    %s1422 = scalar_lea.sflag [#allocation6], 1
    %1423 = vsyncpa %s1422, 1

</llo_original>
